<compile_context>
chip_gen: v5e
topology: v5e:2x2
jax: 0.10.0
libtpu: 0.0.40
codegen_flags: <defaults>
</compile_context>

<pallas_src>
import math
import functools

import jax
import jax.numpy as jnp
from jax.experimental import pallas as pl
from jax.experimental.pallas import tpu as pltpu


# ----------------------------- tiling / params helpers -----------------------------

def _round_up(x, m):
    return ((x + m - 1) // m) * m


def _row_tile_and_pad(M, target=256):
    """Row tile for M-tiled grids.  Pads M up to a multiple of the tile instead
    of silently falling back to one monolithic block for awkward M."""
    bm = target if M >= target else _round_up(M, 8)
    return bm, _round_up(M, bm)


def _pick_tile(dim, target, multiple):
    """Largest divisor of `dim` that is <= target and a multiple of `multiple`;
    if dim <= target (or no such divisor exists) the whole dim is one block."""
    if dim <= target:
        return dim
    for t in range(target, multiple - 1, -multiple):
        if dim % t == 0:
            return t
    return dim


def _vmem_limit_bytes():
    # Per-generation scoped-VMEM limit: defaults (16/32 MiB) are too small for
    # realistic weight tiles; v7x only has 64 MiB physical so stay under it.
    try:
        kind = jax.devices()[0].device_kind.lower()
    except Exception:
        return None
    if "v7" in kind or "7x" in kind:
        return 48 * 1024 * 1024
    if any(t in kind for t in ("v4", "v5", "v6")):
        return 96 * 1024 * 1024
    return None  # unknown / older generations: keep the compiler default


_VMEM_LIMIT = _vmem_limit_bytes()


def _params(dims):
    return pltpu.CompilerParams(dimension_semantics=dims,
                                vmem_limit_bytes=_VMEM_LIMIT)


# ----------------------------- linear: y = x @ w + b -----------------------------

def _linear_kernel(x_ref, w_ref, b_ref, o_ref, acc_ref):
    k = pl.program_id(2)

    @pl.when(k == 0)
    def _():
        acc_ref[...] = jnp.zeros_like(acc_ref)

    acc_ref[...] += jnp.dot(x_ref[...].astype(jnp.bfloat16), w_ref[...],
                            preferred_element_type=jnp.float32)

    @pl.when(k == pl.num_programs(2) - 1)
    def _():
        o_ref[...] = (acc_ref[...] + b_ref[...]).astype(o_ref.dtype)


def linear(x, w, b, out_dtype=jnp.bfloat16):
    M, K = x.shape
    N = w.shape[1]
    bm, Mp = _row_tile_and_pad(M)
    bn = _pick_tile(N, 1024, 128)   # streams weight column blocks (vocab proj)
    bk = _pick_tile(K, 2048, 128)   # K-reduction tiling for large D / d_ff
    if Mp != M:
        x = jnp.pad(x, ((0, Mp - M), (0, 0)))
    out = pl.pallas_call(
        _linear_kernel,
        out_shape=jax.ShapeDtypeStruct((Mp, N), out_dtype),
        grid=(Mp // bm, N // bn, K // bk),
        in_specs=[
            pl.BlockSpec((bm, bk), lambda i, j, k: (i, k)),
            pl.BlockSpec((bk, bn), lambda i, j, k: (k, j)),
            pl.BlockSpec((1, bn), lambda i, j, k: (0, j)),
        ],
        out_specs=pl.BlockSpec((bm, bn), lambda i, j, k: (i, j)),
        scratch_shapes=[pltpu.VMEM((bm, bn), jnp.float32)],
        compiler_params=_params(("parallel", "parallel", "arbitrary")),
    )(x, w, b)
    return out[:M] if Mp != M else out


# ----------------------- linear + residual + LayerNorm epilogue -----------------------

def _linear_res_ln_kernel(x_ref, w_ref, b_ref, r_ref, g_ref, bb_ref, o_ref, acc_ref):
    k = pl.program_id(1)

    @pl.when(k == 0)
    def _():
        acc_ref[...] = jnp.zeros_like(acc_ref)

    acc_ref[...] += jnp.dot(x_ref[...].astype(jnp.bfloat16), w_ref[...],
                            preferred_element_type=jnp.float32)

    @pl.when(k == pl.num_programs(1) - 1)
    def _():
        z = acc_ref[...] + b_ref[...] + r_ref[...].astype(jnp.float32)
        mean = jnp.mean(z, axis=-1, keepdims=True)
        var = jnp.mean((z - mean) ** 2, axis=-1, keepdims=True)
        o_ref[...] = ((z - mean) * jax.lax.rsqrt(var + 1e-5) * g_ref[...]
                      + bb_ref[...]).astype(o_ref.dtype)


def linear_res_ln(x, w, b, res, gamma, beta):
    M, K = x.shape
    N = w.shape[1]
    bm, Mp = _row_tile_and_pad(M)
    bk = _pick_tile(K, 2048, 128)
    if Mp != M:
        x = jnp.pad(x, ((0, Mp - M), (0, 0)))
        res = jnp.pad(res, ((0, Mp - M), (0, 0)))
    out = pl.pallas_call(
        _linear_res_ln_kernel,
        out_shape=jax.ShapeDtypeStruct((Mp, N), jnp.bfloat16),
        grid=(Mp // bm, K // bk),
        in_specs=[
            pl.BlockSpec((bm, bk), lambda i, k: (i, k)),
            pl.BlockSpec((bk, N), lambda i, k: (k, 0)),
            pl.BlockSpec((1, N), lambda i, k: (0, 0)),
            pl.BlockSpec((bm, N), lambda i, k: (i, 0)),
            pl.BlockSpec((1, N), lambda i, k: (0, 0)),
            pl.BlockSpec((1, N), lambda i, k: (0, 0)),
        ],
        out_specs=pl.BlockSpec((bm, N), lambda i, k: (i, 0)),
        scratch_shapes=[pltpu.VMEM((bm, N), jnp.float32)],
        compiler_params=_params(("parallel", "arbitrary")),
    )(x, w, b, res, gamma, beta)
    return out[:M] if Mp != M else out


# ----------------------- fused FFN (F-tiled) + residual + LayerNorm -----------------------

def _ffn_res_ln_kernel(x_ref, w1_ref, b1_ref, w2_ref, b2_ref, g_ref, bb_ref,
                       o_ref, acc_ref):
    # LayerNorm(x + relu(x @ W1 + b1) @ W2 + b2), reduced over d_ff tiles.
    f = pl.program_id(1)

    @pl.when(f == 0)
    def _():
        acc_ref[...] = jnp.zeros_like(acc_ref)

    x = x_ref[...]
    h = jnp.dot(x.astype(jnp.bfloat16), w1_ref[...],
                preferred_element_type=jnp.float32) + b1_ref[...]
    h = jnp.maximum(h, 0.0)
    acc_ref[...] += jnp.dot(h.astype(jnp.bfloat16), w2_ref[...],
                            preferred_element_type=jnp.float32)

    @pl.when(f == pl.num_programs(1) - 1)
    def _():
        z = acc_ref[...] + b2_ref[...] + x.astype(jnp.float32)
        mean = jnp.mean(z, axis=-1, keepdims=True)
        var = jnp.mean((z - mean) ** 2, axis=-1, keepdims=True)
        o_ref[...] = ((z - mean) * jax.lax.rsqrt(var + 1e-5) * g_ref[...]
                      + bb_ref[...]).astype(o_ref.dtype)


def ffn_res_ln(x, w1, b1, w2, b2, gamma, beta):
    # TODO(synk): also K-tile the first matmul (contraction over D) once
    # d_model exceeds a few thousand; here D fits a single block.
    M, D = x.shape
    F = w1.shape[1]
    bm, Mp = _row_tile_and_pad(M)
    bf = _pick_tile(F, 1024, 128)   # stream W1 column / W2 row tiles
    if Mp != M:
        x = jnp.pad(x, ((0, Mp - M), (0, 0)))
    out = pl.pallas_call(
        _ffn_res_ln_kernel,
        out_shape=jax.ShapeDtypeStruct((Mp, D), jnp.bfloat16),
        grid=(Mp // bm, F // bf),
        in_specs=[
            pl.BlockSpec((bm, D), lambda i, f: (i, 0)),
            pl.BlockSpec((D, bf), lambda i, f: (0, f)),
            pl.BlockSpec((1, bf), lambda i, f: (0, f)),
            pl.BlockSpec((bf, D), lambda i, f: (f, 0)),
            pl.BlockSpec((1, D), lambda i, f: (0, 0)),
            pl.BlockSpec((1, D), lambda i, f: (0, 0)),
            pl.BlockSpec((1, D), lambda i, f: (0, 0)),
        ],
        out_specs=pl.BlockSpec((bm, D), lambda i, f: (i, 0)),
        scratch_shapes=[pltpu.VMEM((bm, D), jnp.float32)],
        compiler_params=_params(("parallel", "arbitrary")),
    )(x, w1, b1, w2, b2, gamma, beta)
    return out[:M] if Mp != M else out


# ----------------------------- flash-style attention -----------------------------

def _attn_kernel(q_ref, kT_ref, v_ref, keep_ref, o_ref, m_ref, l_ref, acc_ref,
                 *, causal, kv_tile):
    kv = pl.program_id(2)

    @pl.when(kv == 0)
    def _():
        m_ref[...] = jnp.full_like(m_ref, -jnp.inf)
        l_ref[...] = jnp.zeros_like(l_ref)
        acc_ref[...] = jnp.zeros_like(acc_ref)

    q = q_ref[0, 0]            # (Sq, dk)  bf16; 1/sqrt(dk) folded into W_q
    kT = kT_ref[0, 0]          # (dk, bk)  bf16; K pre-transposed in HBM layout
    v = v_ref[0, 0]            # (bk, dk)  bf16
    s = jnp.dot(q, kT, preferred_element_type=jnp.float32)     # (Sq, bk) f32

    # key-padding (+ optional causal) combined into ONE additive bias
    keep = keep_ref[0] > 0.0                                    # (1, bk) bool
    if causal:
        qi = jax.lax.broadcasted_iota(jnp.int32, s.shape, 0)
        ki = jax.lax.broadcasted_iota(jnp.int32, s.shape, 1) + kv * kv_tile
        keep = jnp.logical_and(keep, ki <= qi)
    s = s + jnp.where(keep, 0.0, -1e9)

    # online softmax (f32 statistics)
    m_prev = m_ref[...]
    m_new = jnp.maximum(m_prev, jnp.max(s, axis=-1, keepdims=True))
    alpha = jnp.exp(m_prev - m_new)
    p = jnp.exp(s - m_new)
    l_ref[...] = alpha * l_ref[...] + jnp.sum(p, axis=-1, keepdims=True)
    acc_ref[...] = alpha * acc_ref[...] + jnp.dot(
        p.astype(jnp.bfloat16), v, preferred_element_type=jnp.float32)
    m_ref[...] = m_new

    @pl.when(kv == pl.num_programs(2) - 1)
    def _():
        # single lane-dense store per (batch, head) block; exact divide
        o_ref[0, 0] = (acc_ref[...] / l_ref[...]).astype(o_ref.dtype)


def multi_head_attention(q, k, v, keep, num_heads, causal):
    """q: (B,Sq,D) bf16, k/v: (B,Sk,D) bf16, keep: (B,1,Sk) f32 (1=keep)."""
    B, Sq, D = q.shape
    Sk = k.shape[1]
    dk = D // num_heads
    # one XLA transpose in the wrapper -> clean (8,128)-friendly per-head blocks
    qh = q.reshape(B, Sq, num_heads, dk).transpose(0, 2, 1, 3)   # (B,H,Sq,dk)
    kT = k.reshape(B, Sk, num_heads, dk).transpose(0, 2, 3, 1)   # (B,H,dk,Sk)
    vh = v.reshape(B, Sk, num_heads, dk).transpose(0, 2, 1, 3)   # (B,H,Sk,dk)
    bk = _pick_tile(Sk, 512, 128)
    # TODO(synk): add a Q-tile grid axis for very long Sq (bounds the (Sq,bk)
    # score tile and gives v7x more parallel axes); whole-Sq is fine here.
    kern = functools.partial(_attn_kernel, causal=causal, kv_tile=bk)
    out = pl.pallas_call(
        kern,
        out_shape=jax.ShapeDtypeStruct((B, num_heads, Sq, dk), jnp.bfloat16),
        grid=(B, num_heads, Sk // bk),
        in_specs=[
            pl.BlockSpec((1, 1, Sq, dk), lambda b, h, kv: (b, h, 0, 0)),
            pl.BlockSpec((1, 1, dk, bk), lambda b, h, kv: (b, h, 0, kv)),
            pl.BlockSpec((1, 1, bk, dk), lambda b, h, kv: (b, h, kv, 0)),
            pl.BlockSpec((1, 1, bk), lambda b, h, kv: (b, 0, kv)),
        ],
        out_specs=pl.BlockSpec((1, 1, Sq, dk), lambda b, h, kv: (b, h, 0, 0)),
        scratch_shapes=[
            pltpu.VMEM((Sq, 1), jnp.float32),   # m
            pltpu.VMEM((Sq, 1), jnp.float32),   # l
            pltpu.VMEM((Sq, dk), jnp.float32),  # acc
        ],
        compiler_params=_params(("parallel", "parallel", "arbitrary")),
    )(qh, kT, vh, keep)
    return out.transpose(0, 2, 1, 3).reshape(B, Sq, D)


# ----------------------------- Model (JAX glue) -----------------------------

def positional_encoding_table(max_len, d_model):
    pos = jnp.arange(max_len, dtype=jnp.float32)[:, None]
    div = jnp.exp(
        jnp.arange(0, d_model, 2, dtype=jnp.float32) * (-math.log(10000.0) / d_model)
    )
    pe = jnp.zeros((max_len, d_model), dtype=jnp.float32)
    pe = pe.at[:, 0::2].set(jnp.sin(pos * div))
    pe = pe.at[:, 1::2].set(jnp.cos(pos * div))
    return pe


def encoder_layer(p, x, src_keep, num_heads):
    B, S, D = x.shape
    x2 = x.reshape(B * S, D)
    a = p["attn"]
    qkv = linear(x2, a["wqkv"], a["bqkv"]).reshape(B, S, 3 * D)     # fused Q|K|V
    q, k, v = qkv[..., :D], qkv[..., D:2 * D], qkv[..., 2 * D:]
    ctx = multi_head_attention(q, k, v, src_keep, num_heads, causal=False)
    x2 = linear_res_ln(ctx.reshape(B * S, D), a["wo"], a["bo"], x2,
                       p["ln1_g"], p["ln1_b"])
    x2 = ffn_res_ln(x2, p["w1"], p["b1"], p["w2"], p["b2"], p["ln2_g"], p["ln2_b"])
    return x2.reshape(B, S, D)


def decoder_layer(p, x, enc_out, src_keep, tgt_keep, num_heads):
    B, S, D = x.shape
    Sk = enc_out.shape[1]
    x2 = x.reshape(B * S, D)
    # masked self-attention (causal + key padding)
    sa = p["self_attn"]
    qkv = linear(x2, sa["wqkv"], sa["bqkv"]).reshape(B, S, 3 * D)
    q, k, v = qkv[..., :D], qkv[..., D:2 * D], qkv[..., 2 * D:]
    ctx = multi_head_attention(q, k, v, tgt_keep, num_heads, causal=True)
    x2 = linear_res_ln(ctx.reshape(B * S, D), sa["wo"], sa["bo"], x2,
                       p["ln1_g"], p["ln1_b"])
    # cross-attention (fused K|V projection of encoder output)
    ca = p["cross_attn"]
    q = linear(x2, ca["wq"], ca["bq"]).reshape(B, S, D)
    kv = linear(enc_out.reshape(B * Sk, D), ca["wkv"], ca["bkv"]).reshape(B, Sk, 2 * D)
    ctx = multi_head_attention(q, kv[..., :D], kv[..., D:], src_keep, num_heads,
                               causal=False)
    x2 = linear_res_ln(ctx.reshape(B * S, D), ca["wo"], ca["bo"], x2,
                       p["ln2_g"], p["ln2_b"])
    # position-wise feed-forward + residual + LN (fused)
    x2 = ffn_res_ln(x2, p["w1"], p["b1"], p["w2"], p["b2"], p["ln3_g"], p["ln3_b"])
    return x2.reshape(B, S, D)


def transformer_forward(params, src, tgt, num_heads):
    B, S_src = src.shape
    S_tgt = tgt.shape[1]
    vocab = params["enc_emb"].shape[0]

    # key-padding keep vectors (1=keep, 0=masked); causal part built in-kernel
    src_keep = (src != 0).astype(jnp.float32).reshape(B, 1, S_src)
    tgt_keep = (tgt != 0).astype(jnp.float32).reshape(B, 1, S_tgt)

    # TODO(synk): embedding gather + positional add + (identity) dropout stay in
    # XLA; a Pallas DMA-gather adds nothing at these sizes.
    pe = params["pe"]
    src_emb = (params["enc_emb"][src] + pe[:S_src][None]).astype(jnp.bfloat16)
    tgt_emb = (params["dec_emb"][tgt] + pe[:S_tgt][None]).astype(jnp.bfloat16)

    enc_out = src_emb
    for lp in params["enc_layers"]:
        enc_out = encoder_layer(lp, enc_out, src_keep, num_heads)

    dec_out = tgt_emb
    for lp in params["dec_layers"]:
        dec_out = decoder_layer(lp, dec_out, enc_out, src_keep, tgt_keep, num_heads)

    # final projection (vocab padded to a 128-lane multiple; padded cols are 0)
    logits_p = linear(dec_out.reshape(B * S_tgt, -1), params["fc_w"],
                      params["fc_b"], out_dtype=jnp.float32)
    return logits_p[:, :vocab].reshape(B, S_tgt, vocab)


# ----------------------------- Parameter init -----------------------------

def init_params(key, vocab_size, d_model, num_heads, num_layers, d_ff, max_seq_length):
    keys = iter(jax.random.split(key, 8 + num_layers * 16))
    q_scale = 1.0 / math.sqrt(d_model // num_heads)

    def lin(din, dout, pad_to=None, q_cols=0):
        w = 0.02 * jax.random.normal(next(keys), (din, dout), jnp.float32)
        b = jnp.zeros((1, dout), jnp.float32)
        if q_cols:  # fold 1/sqrt(dk) attention scale into the Q projection
            w = w.at[:, :q_cols].multiply(q_scale)
            b = b.at[:, :q_cols].multiply(q_scale)
        if pad_to is not None and dout < pad_to:
            w = jnp.pad(w, ((0, 0), (0, pad_to - dout)))
            b = jnp.pad(b, ((0, 0), (0, pad_to - dout)))
        return w.astype(jnp.bfloat16), b   # MXU weights bf16, bias f32

    def self_mha():
        wqkv, bqkv = lin(d_model, 3 * d_model, q_cols=d_model)
        wo, bo = lin(d_model, d_model)
        return dict(wqkv=wqkv, bqkv=bqkv, wo=wo, bo=bo)

    def cross_mha():
        wq, bq = lin(d_model, d_model, q_cols=d_model)
        wkv, bkv = lin(d_model, 2 * d_model)
        wo, bo = lin(d_model, d_model)
        return dict(wq=wq, bq=bq, wkv=wkv, bkv=bkv, wo=wo, bo=bo)

    def ln():
        return jnp.ones((1, d_model), jnp.float32), jnp.zeros((1, d_model), jnp.float32)

    def enc_layer_params():
        w1, b1 = lin(d_model, d_ff)
        w2, b2 = lin(d_ff, d_model)
        g1, bb1 = ln()
        g2, bb2 = ln()
        return dict(attn=self_mha(), w1=w1, b1=b1, w2=w2, b2=b2,
                    ln1_g=g1, ln1_b=bb1, ln2_g=g2, ln2_b=bb2)

    def dec_layer_params():
        w1, b1 = lin(d_model, d_ff)
        w2, b2 = lin(d_ff, d_model)
        g1, bb1 = ln()
        g2, bb2 = ln()
        g3, bb3 = ln()
        return dict(self_attn=self_mha(), cross_attn=cross_mha(),
                    w1=w1, b1=b1, w2=w2, b2=b2,
                    ln1_g=g1, ln1_b=bb1, ln2_g=g2, ln2_b=bb2, ln3_g=g3, ln3_b=bb3)

    vocab_pad = _round_up(vocab_size, 128)
    fc_w, fc_b = lin(d_model, vocab_size, pad_to=vocab_pad)
    return dict(
        enc_emb=0.02 * jax.random.normal(next(keys), (vocab_size, d_model), jnp.float32),
        dec_emb=0.02 * jax.random.normal(next(keys), (vocab_size, d_model), jnp.float32),
        pe=positional_encoding_table(max_seq_length, d_model),
        enc_layers=[enc_layer_params() for _ in range(num_layers)],
        dec_layers=[dec_layer_params() for _ in range(num_layers)],
        fc_w=fc_w,
        fc_b=fc_b,
    )


# ----------------------------- Main -----------------------------

if __name__ == "__main__":
    vocab_size = 64
    d_model = 32
    num_heads = 4
    num_layers = 2
    d_ff = 64
    max_seq_length = 16
    batch = 2
    seq = 8

    key = jax.random.PRNGKey(0)
    k_params, k_src, k_tgt = jax.random.split(key, 3)
    params = init_params(k_params, vocab_size, d_model, num_heads, num_layers,
                         d_ff, max_seq_length)

    src = jax.random.randint(k_src, (batch, seq), 0, vocab_size, dtype=jnp.int32)
    tgt = jax.random.randint(k_tgt, (batch, seq), 0, vocab_size, dtype=jnp.int32)

    fwd = jax.jit(functools.partial(transformer_forward, num_heads=num_heads))
    out = fwd(params, src, tgt)
    jax.block_until_ready(out)
    assert out.shape == (batch, seq, vocab_size)
    assert bool(jnp.all(jnp.isfinite(out)))
    print("KERNEL_OK")
</pallas_src>

<mosaic_0001>
module attributes {stable_mosaic.version = 11 : i64} {
  func.func @_linear_kernel(%arg0: i32, %arg1: i32, %arg2: i32, %arg3: memref<16x32xbf16, #tpu.memory_space<vmem>>, %arg4: memref<32x96xbf16, #tpu.memory_space<vmem>>, %arg5: memref<1x96xf32, #tpu.memory_space<vmem>>, %arg6: memref<16x96xbf16, #tpu.memory_space<vmem>>, %arg7: memref<16x96xf32, #tpu.memory_space<vmem>>) attributes {dimension_semantics = [#tpu.dimension_semantics<parallel>, #tpu.dimension_semantics<parallel>, #tpu.dimension_semantics<arbitrary>], iteration_bounds = array<i64: 1, 1, 1>, scalar_prefetch = 0 : i64, scratch_operands = 1 : i64, tpu.core_type = #tpu.core_type<tc>, window_params = [{transform_indices = @transform_0, window_bounds = array<i64: 16, 32>}, {transform_indices = @transform_1, window_bounds = array<i64: 32, 96>}, {transform_indices = @transform_2, window_bounds = array<i64: 1, 96>}, {transform_indices = @transform_3, window_bounds = array<i64: 16, 96>}]} {
    %c0_i32 = arith.constant 0 : i32
    %0 = arith.cmpi eq, %arg2, %c0_i32 : i32
    %1 = arith.extui %0 : i1 to i32
    %c0_i32_0 = arith.constant 0 : i32
    %2 = arith.cmpi ne, %1, %c0_i32_0 : i32
    scf.if %2 {
      %cst_10 = arith.constant 0.000000e+00 : f32
      %12 = vector.broadcast %cst_10 : f32 to vector<16x96xf32>
      %c0_11 = arith.constant 0 : index
      %c0_12 = arith.constant 0 : index
      %13 = vector.load %arg7[%c0_11, %c0_12] : memref<16x96xf32, #tpu.memory_space<vmem>>, vector<16x96xf32>
      tpu.vector_store %arg7[%c0_11, %c0_12], %12 {strides = array<i32>} : memref<16x96xf32, #tpu.memory_space<vmem>>, vector<16x96xf32>,
    } else {
    }
    %c0 = arith.constant 0 : index
    %c0_1 = arith.constant 0 : index
    %3 = vector.load %arg7[%c0, %c0_1] : memref<16x96xf32, #tpu.memory_space<vmem>>, vector<16x96xf32>
    %c0_2 = arith.constant 0 : index
    %c0_3 = arith.constant 0 : index
    %4 = vector.load %arg3[%c0_2, %c0_3] : memref<16x32xbf16, #tpu.memory_space<vmem>>, vector<16x32xbf16>
    %c0_4 = arith.constant 0 : index
    %c0_5 = arith.constant 0 : index
    %5 = vector.load %arg4[%c0_4, %c0_5] : memref<32x96xbf16, #tpu.memory_space<vmem>>, vector<32x96xbf16>
    %cst = arith.constant dense<0.000000e+00> : vector<16x96xf32>
    %6 = tpu.matmul %4, %5, %cst {dimension_numbers = #tpu.dot_dimension_numbers<[1], [0], [0], [1], [0, 0, 1, 1], [], []>} : vector<16x32xbf16>, vector<32x96xbf16>, vector<16x96xf32> -> vector<16x96xf32>
    %7 = arith.addf %3, %6 : vector<16x96xf32>
    %c0_6 = arith.constant 0 : index
    %c0_7 = arith.constant 0 : index
    %8 = vector.load %arg7[%c0_6, %c0_7] : memref<16x96xf32, #tpu.memory_space<vmem>>, vector<16x96xf32>
    tpu.vector_store %arg7[%c0_6, %c0_7], %7 {strides = array<i32>} : memref<16x96xf32, #tpu.memory_space<vmem>>, vector<16x96xf32>,
    %c0_i32_8 = arith.constant 0 : i32
    %9 = arith.cmpi eq, %arg2, %c0_i32_8 : i32
    %10 = arith.extui %9 : i1 to i32
    %c0_i32_9 = arith.constant 0 : i32
    %11 = arith.cmpi ne, %10, %c0_i32_9 : i32
    scf.if %11 {
      %c0_10 = arith.constant 0 : index
      %c0_11 = arith.constant 0 : index
      %12 = vector.load %arg7[%c0_10, %c0_11] : memref<16x96xf32, #tpu.memory_space<vmem>>, vector<16x96xf32>
      %c0_12 = arith.constant 0 : index
      %c0_13 = arith.constant 0 : index
      %13 = vector.load %arg5[%c0_12, %c0_13] : memref<1x96xf32, #tpu.memory_space<vmem>>, vector<1x96xf32>
      %14 = vector.broadcast %13 : vector<1x96xf32> to vector<16x96xf32>
      %15 = arith.addf %12, %14 : vector<16x96xf32>
      %16 = arith.truncf %15 : vector<16x96xf32> to vector<16x96xbf16>
      %c0_14 = arith.constant 0 : index
      %c0_15 = arith.constant 0 : index
      %17 = vector.load %arg6[%c0_14, %c0_15] : memref<16x96xbf16, #tpu.memory_space<vmem>>, vector<16x96xbf16>
      tpu.vector_store %arg6[%c0_14, %c0_15], %16 {strides = array<i32>} : memref<16x96xbf16, #tpu.memory_space<vmem>>, vector<16x96xbf16>,
    } else {
    }
    return
  }
  func.func @transform_0(%arg0: i32, %arg1: i32, %arg2: i32) -> (i32, i32) {
    %c0_i32 = arith.constant 0 : i32
    return %arg0, %arg2 : i32, i32
  }
  func.func @transform_1(%arg0: i32, %arg1: i32, %arg2: i32) -> (i32, i32) {
    %c0_i32 = arith.constant 0 : i32
    return %arg2, %arg1 : i32, i32
  }
  func.func @transform_2(%arg0: i32, %arg1: i32, %arg2: i32) -> (i32, i32) {
    %c0_i32 = arith.constant 0 : i32
    %c0_i32_0 = arith.constant 0 : i32
    return %c0_i32, %arg1 : i32, i32
  }
  func.func @transform_3(%arg0: i32, %arg1: i32, %arg2: i32) -> (i32, i32) {
    %c0_i32 = arith.constant 0 : i32
    return %arg0, %arg1 : i32, i32
  }
}

module attributes {stable_mosaic.version = 11 : i64} {
  func.func @_attn_kernel(%arg0: i32, %arg1: i32, %arg2: i32, %arg3: memref<1x1x8x8xbf16, #tpu.memory_space<vmem>>, %arg4: memref<1x1x8x8xbf16, #tpu.memory_space<vmem>>, %arg5: memref<1x1x8x8xbf16, #tpu.memory_space<vmem>>, %arg6: memref<1x1x8xf32, #tpu.memory_space<vmem>>, %arg7: memref<1x1x8x8xbf16, #tpu.memory_space<vmem>>, %arg8: memref<8x1xf32, #tpu.memory_space<vmem>>, %arg9: memref<8x1xf32, #tpu.memory_space<vmem>>, %arg10: memref<8x8xf32, #tpu.memory_space<vmem>>) attributes {dimension_semantics = [#tpu.dimension_semantics<parallel>, #tpu.dimension_semantics<parallel>, #tpu.dimension_semantics<arbitrary>], iteration_bounds = array<i64: 2, 4, 1>, scalar_prefetch = 0 : i64, scratch_operands = 3 : i64, tpu.core_type = #tpu.core_type<tc>, window_params = [{transform_indices = @transform_0, window_bounds = array<i64: 1, 1, 8, 8>}, {transform_indices = @transform_1, window_bounds = array<i64: 1, 1, 8, 8>}, {transform_indices = @transform_2, window_bounds = array<i64: 1, 1, 8, 8>}, {transform_indices = @transform_3, window_bounds = array<i64: 1, 1, 8>}, {transform_indices = @transform_4, window_bounds = array<i64: 1, 1, 8, 8>}]} {
    %c0_i32 = arith.constant 0 : i32
    %0 = arith.cmpi eq, %arg2, %c0_i32 : i32
    %1 = arith.extui %0 : i1 to i32
    %c0_i32_0 = arith.constant 0 : i32
    %2 = arith.cmpi ne, %1, %c0_i32_0 : i32
    scf.if %2 {
      %cst_35 = arith.constant 0xFF800000 : f32
      %52 = vector.broadcast %cst_35 : f32 to vector<8x1xf32>
      %c0_36 = arith.constant 0 : index
      %c0_37 = arith.constant 0 : index
      %53 = vector.load %arg8[%c0_36, %c0_37] : memref<8x1xf32, #tpu.memory_space<vmem>>, vector<8x1xf32>
      tpu.vector_store %arg8[%c0_36, %c0_37], %52 {strides = array<i32>} : memref<8x1xf32, #tpu.memory_space<vmem>>, vector<8x1xf32>,
      %cst_38 = arith.constant 0.000000e+00 : f32
      %54 = vector.broadcast %cst_38 : f32 to vector<8x1xf32>
      %c0_39 = arith.constant 0 : index
      %c0_40 = arith.constant 0 : index
      %55 = vector.load %arg9[%c0_39, %c0_40] : memref<8x1xf32, #tpu.memory_space<vmem>>, vector<8x1xf32>
      tpu.vector_store %arg9[%c0_39, %c0_40], %54 {strides = array<i32>} : memref<8x1xf32, #tpu.memory_space<vmem>>, vector<8x1xf32>,
      %cst_41 = arith.constant 0.000000e+00 : f32
      %56 = vector.broadcast %cst_41 : f32 to vector<8x8xf32>
      %c0_42 = arith.constant 0 : index
      %c0_43 = arith.constant 0 : index
      %57 = vector.load %arg10[%c0_42, %c0_43] : memref<8x8xf32, #tpu.memory_space<vmem>>, vector<8x8xf32>
      tpu.vector_store %arg10[%c0_42, %c0_43], %56 {strides = array<i32>} : memref<8x8xf32, #tpu.memory_space<vmem>>, vector<8x8xf32>,
    } else {
    }
    %c0 = arith.constant 0 : index
    %c0_1 = arith.constant 0 : index
    %c0_2 = arith.constant 0 : index
    %c0_3 = arith.constant 0 : index
    %3 = vector.load %arg3[%c0, %c0_1, %c0_2, %c0_3] : memref<1x1x8x8xbf16, #tpu.memory_space<vmem>>, vector<1x1x8x8xbf16>
    %4 = vector.shape_cast %3 : vector<1x1x8x8xbf16> to vector<8x8xbf16>
    %c0_4 = arith.constant 0 : index
    %c0_5 = arith.constant 0 : index
    %c0_6 = arith.constant 0 : index
    %c0_7 = arith.constant 0 : index
    %5 = vector.load %arg4[%c0_4, %c0_5, %c0_6, %c0_7] : memref<1x1x8x8xbf16, #tpu.memory_space<vmem>>, vector<1x1x8x8xbf16>
    %6 = vector.shape_cast %5 : vector<1x1x8x8xbf16> to vector<8x8xbf16>
    %c0_8 = arith.constant 0 : index
    %c0_9 = arith.constant 0 : index
    %c0_10 = arith.constant 0 : index
    %c0_11 = arith.constant 0 : index
    %7 = vector.load %arg5[%c0_8, %c0_9, %c0_10, %c0_11] : memref<1x1x8x8xbf16, #tpu.memory_space<vmem>>, vector<1x1x8x8xbf16>
    %8 = vector.shape_cast %7 : vector<1x1x8x8xbf16> to vector<8x8xbf16>
    %cst = arith.constant dense<0.000000e+00> : vector<8x8xf32>
    %9 = tpu.matmul %4, %6, %cst {dimension_numbers = #tpu.dot_dimension_numbers<[1], [0], [0], [1], [0, 0, 1, 1], [], []>} : vector<8x8xbf16>, vector<8x8xbf16>, vector<8x8xf32> -> vector<8x8xf32>
    %c0_12 = arith.constant 0 : index
    %c0_13 = arith.constant 0 : index
    %c0_14 = arith.constant 0 : index
    %10 = vector.load %arg6[%c0_12, %c0_13, %c0_14] : memref<1x1x8xf32, #tpu.memory_space<vmem>>, vector<1x1x8xf32>
    %11 = vector.shape_cast %10 : vector<1x1x8xf32> to vector<1x8xf32>
    %cst_15 = arith.constant 0.000000e+00 : f32
    %12 = vector.broadcast %cst_15 : f32 to vector<1x8xf32>
    %13 = arith.cmpf ogt, %11, %12 : vector<1x8xf32>
    %14 = tpu.iota {dimensions = array<i32: 0>} : vector<8x8xi32>
    %15 = tpu.iota {dimensions = array<i32: 1>} : vector<8x8xi32>
    %c8_i32 = arith.constant 8 : i32
    %16 = arith.muli %arg2, %c8_i32 : i32
    %17 = vector.broadcast %16 : i32 to vector<8x8xi32>
    %18 = arith.addi %15, %17 : vector<8x8xi32>
    %19 = arith.cmpi sle, %18, %14 : vector<8x8xi32>
    %20 = vector.broadcast %13 : vector<1x8xi1> to vector<8x8xi1>
    %21 = arith.andi %20, %19 : vector<8x8xi1>
    %cst_16 = arith.constant 0.000000e+00 : f32
    %cst_17 = arith.constant -1.000000e+09 : f32
    %22 = vector.broadcast %cst_16 : f32 to vector<8x8xf32>
    %23 = vector.broadcast %cst_17 : f32 to vector<8x8xf32>
    %24 = arith.select %21, %22, %23 : vector<8x8xi1>, vector<8x8xf32>
    %25 = arith.addf %9, %24 : vector<8x8xf32>
    %c0_18 = arith.constant 0 : index
    %c0_19 = arith.constant 0 : index
    %26 = vector.load %arg8[%c0_18, %c0_19] : memref<8x1xf32, #tpu.memory_space<vmem>>, vector<8x1xf32>
    %cst_20 = arith.constant dense<0xFF800000> : vector<8xf32>
    %27 = vector.multi_reduction <maximumf>, %25, %cst_20 [1] : vector<8x8xf32> to vector<8xf32>
    %28 = vector.shape_cast %27 : vector<8xf32> to vector<8x1xf32>
    %29 = arith.maximumf %26, %28 : vector<8x1xf32>
    %30 = arith.subf %26, %29 : vector<8x1xf32>
    %31 = math.exp %30 : vector<8x1xf32>
    %32 = vector.broadcast %29 : vector<8x1xf32> to vector<8x8xf32>
    %33 = arith.subf %25, %32 : vector<8x8xf32>
    %34 = math.exp %33 : vector<8x8xf32>
    %c0_21 = arith.constant 0 : index
    %c0_22 = arith.constant 0 : index
    %35 = vector.load %arg9[%c0_21, %c0_22] : memref<8x1xf32, #tpu.memory_space<vmem>>, vector<8x1xf32>
    %36 = arith.mulf %31, %35 : vector<8x1xf32>
    %cst_23 = arith.constant dense<0.000000e+00> : vector<8xf32>
    %37 = vector.multi_reduction <add>, %34, %cst_23 [1] : vector<8x8xf32> to vector<8xf32>
    %38 = vector.shape_cast %37 : vector<8xf32> to vector<8x1xf32>
    %39 = arith.addf %36, %38 : vector<8x1xf32>
    %c0_24 = arith.constant 0 : index
    %c0_25 = arith.constant 0 : index
    %40 = vector.load %arg9[%c0_24, %c0_25] : memref<8x1xf32, #tpu.memory_space<vmem>>, vector<8x1xf32>
    tpu.vector_store %arg9[%c0_24, %c0_25], %39 {strides = array<i32>} : memref<8x1xf32, #tpu.memory_space<vmem>>, vector<8x1xf32>,
    %c0_26 = arith.constant 0 : index
    %c0_27 = arith.constant 0 : index
    %41 = vector.load %arg10[%c0_26, %c0_27] : memref<8x8xf32, #tpu.memory_space<vmem>>, vector<8x8xf32>
    %42 = vector.broadcast %31 : vector<8x1xf32> to vector<8x8xf32>
    %43 = arith.mulf %42, %41 : vector<8x8xf32>
    %44 = arith.truncf %34 : vector<8x8xf32> to vector<8x8xbf16>
    %cst_28 = arith.constant dense<0.000000e+00> : vector<8x8xf32>
    %45 = tpu.matmul %44, %8, %cst_28 {dimension_numbers = #tpu.dot_dimension_numbers<[1], [0], [0], [1], [0, 0, 1, 1], [], []>} : vector<8x8xbf16>, vector<8x8xbf16>, vector<8x8xf32> -> vector<8x8xf32>
    %46 = arith.addf %43, %45 : vector<8x8xf32>
    %c0_29 = arith.constant 0 : index
    %c0_30 = arith.constant 0 : index
    %47 = vector.load %arg10[%c0_29, %c0_30] : memref<8x8xf32, #tpu.memory_space<vmem>>, vector<8x8xf32>
    tpu.vector_store %arg10[%c0_29, %c0_30], %46 {strides = array<i32>} : memref<8x8xf32, #tpu.memory_space<vmem>>, vector<8x8xf32>,
    %c0_31 = arith.constant 0 : index
    %c0_32 = arith.constant 0 : index
    %48 = vector.load %arg8[%c0_31, %c0_32] : memref<8x1xf32, #tpu.memory_space<vmem>>, vector<8x1xf32>
    tpu.vector_store %arg8[%c0_31, %c0_32], %29 {strides = array<i32>} : memref<8x1xf32, #tpu.memory_space<vmem>>, vector<8x1xf32>,
    %c0_i32_33 = arith.constant 0 : i32
    %49 = arith.cmpi eq, %arg2, %c0_i32_33 : i32
    %50 = arith.extui %49 : i1 to i32
    %c0_i32_34 = arith.constant 0 : i32
    %51 = arith.cmpi ne, %50, %c0_i32_34 : i32
    scf.if %51 {
      %c0_35 = arith.constant 0 : index
      %c0_36 = arith.constant 0 : index
      %52 = vector.load %arg10[%c0_35, %c0_36] : memref<8x8xf32, #tpu.memory_space<vmem>>, vector<8x8xf32>
      %c0_37 = arith.constant 0 : index
      %c0_38 = arith.constant 0 : index
      %53 = vector.load %arg9[%c0_37, %c0_38] : memref<8x1xf32, #tpu.memory_space<vmem>>, vector<8x1xf32>
      %54 = vector.broadcast %53 : vector<8x1xf32> to vector<8x8xf32>
      %55 = arith.divf %52, %54 : vector<8x8xf32>
      %56 = arith.truncf %55 : vector<8x8xf32> to vector<8x8xbf16>
      %c0_39 = arith.constant 0 : index
      %c0_40 = arith.constant 0 : index
      %c0_41 = arith.constant 0 : index
      %c0_42 = arith.constant 0 : index
      %57 = vector.load %arg7[%c0_39, %c0_40, %c0_41, %c0_42] : memref<1x1x8x8xbf16, #tpu.memory_space<vmem>>, vector<1x1x8x8xbf16>
      %58 = vector.shape_cast %57 : vector<1x1x8x8xbf16> to vector<8x8xbf16>
      %59 = vector.shape_cast %56 : vector<8x8xbf16> to vector<1x1x8x8xbf16>
      tpu.vector_store %arg7[%c0_39, %c0_40, %c0_41, %c0_42], %59 {strides = array<i32>} : memref<1x1x8x8xbf16, #tpu.memory_space<vmem>>, vector<1x1x8x8xbf16>,
    } else {
    }
    return
  }
  func.func @transform_0(%arg0: i32, %arg1: i32, %arg2: i32) -> (i32, i32, i32, i32) {
    %c0_i32 = arith.constant 0 : i32
    %c0_i32_0 = arith.constant 0 : i32
    %c0_i32_1 = arith.constant 0 : i32
    return %arg0, %arg1, %c0_i32, %c0_i32_0 : i32, i32, i32, i32
  }
  func.func @transform_1(%arg0: i32, %arg1: i32, %arg2: i32) -> (i32, i32, i32, i32) {
    %c0_i32 = arith.constant 0 : i32
    %c0_i32_0 = arith.constant 0 : i32
    return %arg0, %arg1, %c0_i32, %arg2 : i32, i32, i32, i32
  }
  func.func @transform_2(%arg0: i32, %arg1: i32, %arg2: i32) -> (i32, i32, i32, i32) {
    %c0_i32 = arith.constant 0 : i32
    %c0_i32_0 = arith.constant 0 : i32
    return %arg0, %arg1, %arg2, %c0_i32 : i32, i32, i32, i32
  }
  func.func @transform_3(%arg0: i32, %arg1: i32, %arg2: i32) -> (i32, i32, i32) {
    %c0_i32 = arith.constant 0 : i32
    %c0_i32_0 = arith.constant 0 : i32
    return %arg0, %c0_i32, %arg2 : i32, i32, i32
  }
  func.func @transform_4(%arg0: i32, %arg1: i32, %arg2: i32) -> (i32, i32, i32, i32) {
    %c0_i32 = arith.constant 0 : i32
    %c0_i32_0 = arith.constant 0 : i32
    %c0_i32_1 = arith.constant 0 : i32
    return %arg0, %arg1, %c0_i32, %c0_i32_0 : i32, i32, i32, i32
  }
}

module attributes {stable_mosaic.version = 11 : i64} {
  func.func @_linear_res_ln_kernel(%arg0: i32, %arg1: i32, %arg2: memref<16x32xbf16, #tpu.memory_space<vmem>>, %arg3: memref<32x32xbf16, #tpu.memory_space<vmem>>, %arg4: memref<1x32xf32, #tpu.memory_space<vmem>>, %arg5: memref<16x32xbf16, #tpu.memory_space<vmem>>, %arg6: memref<1x32xf32, #tpu.memory_space<vmem>>, %arg7: memref<1x32xf32, #tpu.memory_space<vmem>>, %arg8: memref<16x32xbf16, #tpu.memory_space<vmem>>, %arg9: memref<16x32xf32, #tpu.memory_space<vmem>>) attributes {dimension_semantics = [#tpu.dimension_semantics<parallel>, #tpu.dimension_semantics<arbitrary>], iteration_bounds = array<i64: 1, 1>, scalar_prefetch = 0 : i64, scratch_operands = 1 : i64, tpu.core_type = #tpu.core_type<tc>, window_params = [{transform_indices = @transform_0, window_bounds = array<i64: 16, 32>}, {transform_indices = @transform_1, window_bounds = array<i64: 32, 32>}, {pipeline_mode = #tpu.pipeline_mode<synchronous>, transform_indices = @transform_2, window_bounds = array<i64: 1, 32>}, {transform_indices = @transform_3, window_bounds = array<i64: 16, 32>}, {pipeline_mode = #tpu.pipeline_mode<synchronous>, transform_indices = @transform_4, window_bounds = array<i64: 1, 32>}, {pipeline_mode = #tpu.pipeline_mode<synchronous>, transform_indices = @transform_5, window_bounds = array<i64: 1, 32>}, {transform_indices = @transform_6, window_bounds = array<i64: 16, 32>}]} {
    %c0_i32 = arith.constant 0 : i32
    %0 = arith.cmpi eq, %arg1, %c0_i32 : i32
    %1 = arith.extui %0 : i1 to i32
    %c0_i32_0 = arith.constant 0 : i32
    %2 = arith.cmpi ne, %1, %c0_i32_0 : i32
    scf.if %2 {
      %cst_10 = arith.constant 0.000000e+00 : f32
      %12 = vector.broadcast %cst_10 : f32 to vector<16x32xf32>
      %c0_11 = arith.constant 0 : index
      %c0_12 = arith.constant 0 : index
      %13 = vector.load %arg9[%c0_11, %c0_12] : memref<16x32xf32, #tpu.memory_space<vmem>>, vector<16x32xf32>
      tpu.vector_store %arg9[%c0_11, %c0_12], %12 {strides = array<i32>} : memref<16x32xf32, #tpu.memory_space<vmem>>, vector<16x32xf32>,
    } else {
    }
    %c0 = arith.constant 0 : index
    %c0_1 = arith.constant 0 : index
    %3 = vector.load %arg9[%c0, %c0_1] : memref<16x32xf32, #tpu.memory_space<vmem>>, vector<16x32xf32>
    %c0_2 = arith.constant 0 : index
    %c0_3 = arith.constant 0 : index
    %4 = vector.load %arg2[%c0_2, %c0_3] : memref<16x32xbf16, #tpu.memory_space<vmem>>, vector<16x32xbf16>
    %c0_4 = arith.constant 0 : index
    %c0_5 = arith.constant 0 : index
    %5 = vector.load %arg3[%c0_4, %c0_5] : memref<32x32xbf16, #tpu.memory_space<vmem>>, vector<32x32xbf16>
    %cst = arith.constant dense<0.000000e+00> : vector<16x32xf32>
    %6 = tpu.matmul %4, %5, %cst {dimension_numbers = #tpu.dot_dimension_numbers<[1], [0], [0], [1], [0, 0, 1, 1], [], []>} : vector<16x32xbf16>, vector<32x32xbf16>, vector<16x32xf32> -> vector<16x32xf32>
    %7 = arith.addf %3, %6 : vector<16x32xf32>
    %c0_6 = arith.constant 0 : index
    %c0_7 = arith.constant 0 : index
    %8 = vector.load %arg9[%c0_6, %c0_7] : memref<16x32xf32, #tpu.memory_space<vmem>>, vector<16x32xf32>
    tpu.vector_store %arg9[%c0_6, %c0_7], %7 {strides = array<i32>} : memref<16x32xf32, #tpu.memory_space<vmem>>, vector<16x32xf32>,
    %c0_i32_8 = arith.constant 0 : i32
    %9 = arith.cmpi eq, %arg1, %c0_i32_8 : i32
    %10 = arith.extui %9 : i1 to i32
    %c0_i32_9 = arith.constant 0 : i32
    %11 = arith.cmpi ne, %10, %c0_i32_9 : i32
    scf.if %11 {
      %c0_10 = arith.constant 0 : index
      %c0_11 = arith.constant 0 : index
      %12 = vector.load %arg9[%c0_10, %c0_11] : memref<16x32xf32, #tpu.memory_space<vmem>>, vector<16x32xf32>
      %c0_12 = arith.constant 0 : index
      %c0_13 = arith.constant 0 : index
      %13 = vector.load %arg4[%c0_12, %c0_13] : memref<1x32xf32, #tpu.memory_space<vmem>>, vector<1x32xf32>
      %14 = vector.broadcast %13 : vector<1x32xf32> to vector<16x32xf32>
      %15 = arith.addf %12, %14 : vector<16x32xf32>
      %c0_14 = arith.constant 0 : index
      %c0_15 = arith.constant 0 : index
      %16 = vector.load %arg5[%c0_14, %c0_15] : memref<16x32xbf16, #tpu.memory_space<vmem>>, vector<16x32xbf16>
      %17 = arith.extf %16 : vector<16x32xbf16> to vector<16x32xf32>
      %18 = arith.addf %15, %17 : vector<16x32xf32>
      %cst_16 = arith.constant dense<0.000000e+00> : vector<16xf32>
      %19 = vector.multi_reduction <add>, %18, %cst_16 [1] : vector<16x32xf32> to vector<16xf32>
      %20 = vector.shape_cast %19 : vector<16xf32> to vector<16x1xf32>
      %cst_17 = arith.constant 3.200000e+01 : f32
      %21 = vector.broadcast %cst_17 : f32 to vector<16x1xf32>
      %22 = arith.divf %20, %21 : vector<16x1xf32>
      %23 = vector.broadcast %22 : vector<16x1xf32> to vector<16x32xf32>
      %24 = arith.subf %18, %23 : vector<16x32xf32>
      %25 = arith.mulf %24, %24 : vector<16x32xf32>
      %cst_18 = arith.constant dense<0.000000e+00> : vector<16xf32>
      %26 = vector.multi_reduction <add>, %25, %cst_18 [1] : vector<16x32xf32> to vector<16xf32>
      %27 = vector.shape_cast %26 : vector<16xf32> to vector<16x1xf32>
      %cst_19 = arith.constant 3.200000e+01 : f32
      %28 = vector.broadcast %cst_19 : f32 to vector<16x1xf32>
      %29 = arith.divf %27, %28 : vector<16x1xf32>
      %30 = vector.broadcast %22 : vector<16x1xf32> to vector<16x32xf32>
      %31 = arith.subf %18, %30 : vector<16x32xf32>
      %cst_20 = arith.constant 9.99999974E-6 : f32
      %32 = vector.broadcast %cst_20 : f32 to vector<16x1xf32>
      %33 = arith.addf %29, %32 : vector<16x1xf32>
      %34 = math.rsqrt %33 : vector<16x1xf32>
      %35 = vector.broadcast %34 : vector<16x1xf32> to vector<16x32xf32>
      %36 = arith.mulf %31, %35 : vector<16x32xf32>
      %c0_21 = arith.constant 0 : index
      %c0_22 = arith.constant 0 : index
      %37 = vector.load %arg6[%c0_21, %c0_22] : memref<1x32xf32, #tpu.memory_space<vmem>>, vector<1x32xf32>
      %38 = vector.broadcast %37 : vector<1x32xf32> to vector<16x32xf32>
      %39 = arith.mulf %36, %38 : vector<16x32xf32>
      %c0_23 = arith.constant 0 : index
      %c0_24 = arith.constant 0 : index
      %40 = vector.load %arg7[%c0_23, %c0_24] : memref<1x32xf32, #tpu.memory_space<vmem>>, vector<1x32xf32>
      %41 = vector.broadcast %40 : vector<1x32xf32> to vector<16x32xf32>
      %42 = arith.addf %39, %41 : vector<16x32xf32>
      %43 = arith.truncf %42 : vector<16x32xf32> to vector<16x32xbf16>
      %c0_25 = arith.constant 0 : index
      %c0_26 = arith.constant 0 : index
      %44 = vector.load %arg8[%c0_25, %c0_26] : memref<16x32xbf16, #tpu.memory_space<vmem>>, vector<16x32xbf16>
      tpu.vector_store %arg8[%c0_25, %c0_26], %43 {strides = array<i32>} : memref<16x32xbf16, #tpu.memory_space<vmem>>, vector<16x32xbf16>,
    } else {
    }
    return
  }
  func.func @transform_0(%arg0: i32, %arg1: i32) -> (i32, i32) {
    %c0_i32 = arith.constant 0 : i32
    return %arg0, %arg1 : i32, i32
  }
  func.func @transform_1(%arg0: i32, %arg1: i32) -> (i32, i32) {
    %c0_i32 = arith.constant 0 : i32
    %c0_i32_0 = arith.constant 0 : i32
    return %arg1, %c0_i32 : i32, i32
  }
  func.func @transform_2(%arg0: i32, %arg1: i32) -> (i32, i32) {
    %c0_i32 = arith.constant 0 : i32
    %c0_i32_0 = arith.constant 0 : i32
    %c0_i32_1 = arith.constant 0 : i32
    return %c0_i32, %c0_i32_0 : i32, i32
  }
  func.func @transform_3(%arg0: i32, %arg1: i32) -> (i32, i32) {
    %c0_i32 = arith.constant 0 : i32
    %c0_i32_0 = arith.constant 0 : i32
    return %arg0, %c0_i32 : i32, i32
  }
  func.func @transform_4(%arg0: i32, %arg1: i32) -> (i32, i32) {
    %c0_i32 = arith.constant 0 : i32
    %c0_i32_0 = arith.constant 0 : i32
    %c0_i32_1 = arith.constant 0 : i32
    return %c0_i32, %c0_i32_0 : i32, i32
  }
  func.func @transform_5(%arg0: i32, %arg1: i32) -> (i32, i32) {
    %c0_i32 = arith.constant 0 : i32
    %c0_i32_0 = arith.constant 0 : i32
    %c0_i32_1 = arith.constant 0 : i32
    return %c0_i32, %c0_i32_0 : i32, i32
  }
  func.func @transform_6(%arg0: i32, %arg1: i32) -> (i32, i32) {
    %c0_i32 = arith.constant 0 : i32
    %c0_i32_0 = arith.constant 0 : i32
    return %arg0, %c0_i32 : i32, i32
  }
}

module attributes {stable_mosaic.version = 11 : i64} {
  func.func @_linear_kernel(%arg0: i32, %arg1: i32, %arg2: i32, %arg3: memref<16x32xbf16, #tpu.memory_space<vmem>>, %arg4: memref<32x32xbf16, #tpu.memory_space<vmem>>, %arg5: memref<1x32xf32, #tpu.memory_space<vmem>>, %arg6: memref<16x32xbf16, #tpu.memory_space<vmem>>, %arg7: memref<16x32xf32, #tpu.memory_space<vmem>>) attributes {dimension_semantics = [#tpu.dimension_semantics<parallel>, #tpu.dimension_semantics<parallel>, #tpu.dimension_semantics<arbitrary>], iteration_bounds = array<i64: 1, 1, 1>, scalar_prefetch = 0 : i64, scratch_operands = 1 : i64, tpu.core_type = #tpu.core_type<tc>, window_params = [{transform_indices = @transform_0, window_bounds = array<i64: 16, 32>}, {transform_indices = @transform_1, window_bounds = array<i64: 32, 32>}, {transform_indices = @transform_2, window_bounds = array<i64: 1, 32>}, {transform_indices = @transform_3, window_bounds = array<i64: 16, 32>}]} {
    %c0_i32 = arith.constant 0 : i32
    %0 = arith.cmpi eq, %arg2, %c0_i32 : i32
    %1 = arith.extui %0 : i1 to i32
    %c0_i32_0 = arith.constant 0 : i32
    %2 = arith.cmpi ne, %1, %c0_i32_0 : i32
    scf.if %2 {
      %cst_10 = arith.constant 0.000000e+00 : f32
      %12 = vector.broadcast %cst_10 : f32 to vector<16x32xf32>
      %c0_11 = arith.constant 0 : index
      %c0_12 = arith.constant 0 : index
      %13 = vector.load %arg7[%c0_11, %c0_12] : memref<16x32xf32, #tpu.memory_space<vmem>>, vector<16x32xf32>
      tpu.vector_store %arg7[%c0_11, %c0_12], %12 {strides = array<i32>} : memref<16x32xf32, #tpu.memory_space<vmem>>, vector<16x32xf32>,
    } else {
    }
    %c0 = arith.constant 0 : index
    %c0_1 = arith.constant 0 : index
    %3 = vector.load %arg7[%c0, %c0_1] : memref<16x32xf32, #tpu.memory_space<vmem>>, vector<16x32xf32>
    %c0_2 = arith.constant 0 : index
    %c0_3 = arith.constant 0 : index
    %4 = vector.load %arg3[%c0_2, %c0_3] : memref<16x32xbf16, #tpu.memory_space<vmem>>, vector<16x32xbf16>
    %c0_4 = arith.constant 0 : index
    %c0_5 = arith.constant 0 : index
    %5 = vector.load %arg4[%c0_4, %c0_5] : memref<32x32xbf16, #tpu.memory_space<vmem>>, vector<32x32xbf16>
    %cst = arith.constant dense<0.000000e+00> : vector<16x32xf32>
    %6 = tpu.matmul %4, %5, %cst {dimension_numbers = #tpu.dot_dimension_numbers<[1], [0], [0], [1], [0, 0, 1, 1], [], []>} : vector<16x32xbf16>, vector<32x32xbf16>, vector<16x32xf32> -> vector<16x32xf32>
    %7 = arith.addf %3, %6 : vector<16x32xf32>
    %c0_6 = arith.constant 0 : index
    %c0_7 = arith.constant 0 : index
    %8 = vector.load %arg7[%c0_6, %c0_7] : memref<16x32xf32, #tpu.memory_space<vmem>>, vector<16x32xf32>
    tpu.vector_store %arg7[%c0_6, %c0_7], %7 {strides = array<i32>} : memref<16x32xf32, #tpu.memory_space<vmem>>, vector<16x32xf32>,
    %c0_i32_8 = arith.constant 0 : i32
    %9 = arith.cmpi eq, %arg2, %c0_i32_8 : i32
    %10 = arith.extui %9 : i1 to i32
    %c0_i32_9 = arith.constant 0 : i32
    %11 = arith.cmpi ne, %10, %c0_i32_9 : i32
    scf.if %11 {
      %c0_10 = arith.constant 0 : index
      %c0_11 = arith.constant 0 : index
      %12 = vector.load %arg7[%c0_10, %c0_11] : memref<16x32xf32, #tpu.memory_space<vmem>>, vector<16x32xf32>
      %c0_12 = arith.constant 0 : index
      %c0_13 = arith.constant 0 : index
      %13 = vector.load %arg5[%c0_12, %c0_13] : memref<1x32xf32, #tpu.memory_space<vmem>>, vector<1x32xf32>
      %14 = vector.broadcast %13 : vector<1x32xf32> to vector<16x32xf32>
      %15 = arith.addf %12, %14 : vector<16x32xf32>
      %16 = arith.truncf %15 : vector<16x32xf32> to vector<16x32xbf16>
      %c0_14 = arith.constant 0 : index
      %c0_15 = arith.constant 0 : index
      %17 = vector.load %arg6[%c0_14, %c0_15] : memref<16x32xbf16, #tpu.memory_space<vmem>>, vector<16x32xbf16>
      tpu.vector_store %arg6[%c0_14, %c0_15], %16 {strides = array<i32>} : memref<16x32xbf16, #tpu.memory_space<vmem>>, vector<16x32xbf16>,
    } else {
    }
    return
  }
  func.func @transform_0(%arg0: i32, %arg1: i32, %arg2: i32) -> (i32, i32) {
    %c0_i32 = arith.constant 0 : i32
    return %arg0, %arg2 : i32, i32
  }
  func.func @transform_1(%arg0: i32, %arg1: i32, %arg2: i32) -> (i32, i32) {
    %c0_i32 = arith.constant 0 : i32
    return %arg2, %arg1 : i32, i32
  }
  func.func @transform_2(%arg0: i32, %arg1: i32, %arg2: i32) -> (i32, i32) {
    %c0_i32 = arith.constant 0 : i32
    %c0_i32_0 = arith.constant 0 : i32
    return %c0_i32, %arg1 : i32, i32
  }
  func.func @transform_3(%arg0: i32, %arg1: i32, %arg2: i32) -> (i32, i32) {
    %c0_i32 = arith.constant 0 : i32
    return %arg0, %arg1 : i32, i32
  }
}

module attributes {stable_mosaic.version = 11 : i64} {
  func.func @_attn_kernel(%arg0: i32, %arg1: i32, %arg2: i32, %arg3: memref<1x1x8x8xbf16, #tpu.memory_space<vmem>>, %arg4: memref<1x1x8x8xbf16, #tpu.memory_space<vmem>>, %arg5: memref<1x1x8x8xbf16, #tpu.memory_space<vmem>>, %arg6: memref<1x1x8xf32, #tpu.memory_space<vmem>>, %arg7: memref<1x1x8x8xbf16, #tpu.memory_space<vmem>>, %arg8: memref<8x1xf32, #tpu.memory_space<vmem>>, %arg9: memref<8x1xf32, #tpu.memory_space<vmem>>, %arg10: memref<8x8xf32, #tpu.memory_space<vmem>>) attributes {dimension_semantics = [#tpu.dimension_semantics<parallel>, #tpu.dimension_semantics<parallel>, #tpu.dimension_semantics<arbitrary>], iteration_bounds = array<i64: 2, 4, 1>, scalar_prefetch = 0 : i64, scratch_operands = 3 : i64, tpu.core_type = #tpu.core_type<tc>, window_params = [{transform_indices = @transform_0, window_bounds = array<i64: 1, 1, 8, 8>}, {transform_indices = @transform_1, window_bounds = array<i64: 1, 1, 8, 8>}, {transform_indices = @transform_2, window_bounds = array<i64: 1, 1, 8, 8>}, {transform_indices = @transform_3, window_bounds = array<i64: 1, 1, 8>}, {transform_indices = @transform_4, window_bounds = array<i64: 1, 1, 8, 8>}]} {
    %c0_i32 = arith.constant 0 : i32
    %0 = arith.cmpi eq, %arg2, %c0_i32 : i32
    %1 = arith.extui %0 : i1 to i32
    %c0_i32_0 = arith.constant 0 : i32
    %2 = arith.cmpi ne, %1, %c0_i32_0 : i32
    scf.if %2 {
      %cst_35 = arith.constant 0xFF800000 : f32
      %45 = vector.broadcast %cst_35 : f32 to vector<8x1xf32>
      %c0_36 = arith.constant 0 : index
      %c0_37 = arith.constant 0 : index
      %46 = vector.load %arg8[%c0_36, %c0_37] : memref<8x1xf32, #tpu.memory_space<vmem>>, vector<8x1xf32>
      tpu.vector_store %arg8[%c0_36, %c0_37], %45 {strides = array<i32>} : memref<8x1xf32, #tpu.memory_space<vmem>>, vector<8x1xf32>,
      %cst_38 = arith.constant 0.000000e+00 : f32
      %47 = vector.broadcast %cst_38 : f32 to vector<8x1xf32>
      %c0_39 = arith.constant 0 : index
      %c0_40 = arith.constant 0 : index
      %48 = vector.load %arg9[%c0_39, %c0_40] : memref<8x1xf32, #tpu.memory_space<vmem>>, vector<8x1xf32>
      tpu.vector_store %arg9[%c0_39, %c0_40], %47 {strides = array<i32>} : memref<8x1xf32, #tpu.memory_space<vmem>>, vector<8x1xf32>,
      %cst_41 = arith.constant 0.000000e+00 : f32
      %49 = vector.broadcast %cst_41 : f32 to vector<8x8xf32>
      %c0_42 = arith.constant 0 : index
      %c0_43 = arith.constant 0 : index
      %50 = vector.load %arg10[%c0_42, %c0_43] : memref<8x8xf32, #tpu.memory_space<vmem>>, vector<8x8xf32>
      tpu.vector_store %arg10[%c0_42, %c0_43], %49 {strides = array<i32>} : memref<8x8xf32, #tpu.memory_space<vmem>>, vector<8x8xf32>,
    } else {
    }
    %c0 = arith.constant 0 : index
    %c0_1 = arith.constant 0 : index
    %c0_2 = arith.constant 0 : index
    %c0_3 = arith.constant 0 : index
    %3 = vector.load %arg3[%c0, %c0_1, %c0_2, %c0_3] : memref<1x1x8x8xbf16, #tpu.memory_space<vmem>>, vector<1x1x8x8xbf16>
    %4 = vector.shape_cast %3 : vector<1x1x8x8xbf16> to vector<8x8xbf16>
    %c0_4 = arith.constant 0 : index
    %c0_5 = arith.constant 0 : index
    %c0_6 = arith.constant 0 : index
    %c0_7 = arith.constant 0 : index
    %5 = vector.load %arg4[%c0_4, %c0_5, %c0_6, %c0_7] : memref<1x1x8x8xbf16, #tpu.memory_space<vmem>>, vector<1x1x8x8xbf16>
    %6 = vector.shape_cast %5 : vector<1x1x8x8xbf16> to vector<8x8xbf16>
    %c0_8 = arith.constant 0 : index
    %c0_9 = arith.constant 0 : index
    %c0_10 = arith.constant 0 : index
    %c0_11 = arith.constant 0 : index
    %7 = vector.load %arg5[%c0_8, %c0_9, %c0_10, %c0_11] : memref<1x1x8x8xbf16, #tpu.memory_space<vmem>>, vector<1x1x8x8xbf16>
    %8 = vector.shape_cast %7 : vector<1x1x8x8xbf16> to vector<8x8xbf16>
    %cst = arith.constant dense<0.000000e+00> : vector<8x8xf32>
    %9 = tpu.matmul %4, %6, %cst {dimension_numbers = #tpu.dot_dimension_numbers<[1], [0], [0], [1], [0, 0, 1, 1], [], []>} : vector<8x8xbf16>, vector<8x8xbf16>, vector<8x8xf32> -> vector<8x8xf32>
    %c0_12 = arith.constant 0 : index
    %c0_13 = arith.constant 0 : index
    %c0_14 = arith.constant 0 : index
    %10 = vector.load %arg6[%c0_12, %c0_13, %c0_14] : memref<1x1x8xf32, #tpu.memory_space<vmem>>, vector<1x1x8xf32>
    %11 = vector.shape_cast %10 : vector<1x1x8xf32> to vector<1x8xf32>
    %cst_15 = arith.constant 0.000000e+00 : f32
    %12 = vector.broadcast %cst_15 : f32 to vector<1x8xf32>
    %13 = arith.cmpf ogt, %11, %12 : vector<1x8xf32>
    %cst_16 = arith.constant 0.000000e+00 : f32
    %cst_17 = arith.constant -1.000000e+09 : f32
    %14 = vector.broadcast %cst_16 : f32 to vector<1x8xf32>
    %15 = vector.broadcast %cst_17 : f32 to vector<1x8xf32>
    %16 = arith.select %13, %14, %15 : vector<1x8xi1>, vector<1x8xf32>
    %17 = vector.broadcast %16 : vector<1x8xf32> to vector<8x8xf32>
    %18 = arith.addf %9, %17 : vector<8x8xf32>
    %c0_18 = arith.constant 0 : index
    %c0_19 = arith.constant 0 : index
    %19 = vector.load %arg8[%c0_18, %c0_19] : memref<8x1xf32, #tpu.memory_space<vmem>>, vector<8x1xf32>
    %cst_20 = arith.constant dense<0xFF800000> : vector<8xf32>
    %20 = vector.multi_reduction <maximumf>, %18, %cst_20 [1] : vector<8x8xf32> to vector<8xf32>
    %21 = vector.shape_cast %20 : vector<8xf32> to vector<8x1xf32>
    %22 = arith.maximumf %19, %21 : vector<8x1xf32>
    %23 = arith.subf %19, %22 : vector<8x1xf32>
    %24 = math.exp %23 : vector<8x1xf32>
    %25 = vector.broadcast %22 : vector<8x1xf32> to vector<8x8xf32>
    %26 = arith.subf %18, %25 : vector<8x8xf32>
    %27 = math.exp %26 : vector<8x8xf32>
    %c0_21 = arith.constant 0 : index
    %c0_22 = arith.constant 0 : index
    %28 = vector.load %arg9[%c0_21, %c0_22] : memref<8x1xf32, #tpu.memory_space<vmem>>, vector<8x1xf32>
    %29 = arith.mulf %24, %28 : vector<8x1xf32>
    %cst_23 = arith.constant dense<0.000000e+00> : vector<8xf32>
    %30 = vector.multi_reduction <add>, %27, %cst_23 [1] : vector<8x8xf32> to vector<8xf32>
    %31 = vector.shape_cast %30 : vector<8xf32> to vector<8x1xf32>
    %32 = arith.addf %29, %31 : vector<8x1xf32>
    %c0_24 = arith.constant 0 : index
    %c0_25 = arith.constant 0 : index
    %33 = vector.load %arg9[%c0_24, %c0_25] : memref<8x1xf32, #tpu.memory_space<vmem>>, vector<8x1xf32>
    tpu.vector_store %arg9[%c0_24, %c0_25], %32 {strides = array<i32>} : memref<8x1xf32, #tpu.memory_space<vmem>>, vector<8x1xf32>,
    %c0_26 = arith.constant 0 : index
    %c0_27 = arith.constant 0 : index
    %34 = vector.load %arg10[%c0_26, %c0_27] : memref<8x8xf32, #tpu.memory_space<vmem>>, vector<8x8xf32>
    %35 = vector.broadcast %24 : vector<8x1xf32> to vector<8x8xf32>
    %36 = arith.mulf %35, %34 : vector<8x8xf32>
    %37 = arith.truncf %27 : vector<8x8xf32> to vector<8x8xbf16>
    %cst_28 = arith.constant dense<0.000000e+00> : vector<8x8xf32>
    %38 = tpu.matmul %37, %8, %cst_28 {dimension_numbers = #tpu.dot_dimension_numbers<[1], [0], [0], [1], [0, 0, 1, 1], [], []>} : vector<8x8xbf16>, vector<8x8xbf16>, vector<8x8xf32> -> vector<8x8xf32>
    %39 = arith.addf %36, %38 : vector<8x8xf32>
    %c0_29 = arith.constant 0 : index
    %c0_30 = arith.constant 0 : index
    %40 = vector.load %arg10[%c0_29, %c0_30] : memref<8x8xf32, #tpu.memory_space<vmem>>, vector<8x8xf32>
    tpu.vector_store %arg10[%c0_29, %c0_30], %39 {strides = array<i32>} : memref<8x8xf32, #tpu.memory_space<vmem>>, vector<8x8xf32>,
    %c0_31 = arith.constant 0 : index
    %c0_32 = arith.constant 0 : index
    %41 = vector.load %arg8[%c0_31, %c0_32] : memref<8x1xf32, #tpu.memory_space<vmem>>, vector<8x1xf32>
    tpu.vector_store %arg8[%c0_31, %c0_32], %22 {strides = array<i32>} : memref<8x1xf32, #tpu.memory_space<vmem>>, vector<8x1xf32>,
    %c0_i32_33 = arith.constant 0 : i32
    %42 = arith.cmpi eq, %arg2, %c0_i32_33 : i32
    %43 = arith.extui %42 : i1 to i32
    %c0_i32_34 = arith.constant 0 : i32
    %44 = arith.cmpi ne, %43, %c0_i32_34 : i32
    scf.if %44 {
      %c0_35 = arith.constant 0 : index
      %c0_36 = arith.constant 0 : index
      %45 = vector.load %arg10[%c0_35, %c0_36] : memref<8x8xf32, #tpu.memory_space<vmem>>, vector<8x8xf32>
      %c0_37 = arith.constant 0 : index
      %c0_38 = arith.constant 0 : index
      %46 = vector.load %arg9[%c0_37, %c0_38] : memref<8x1xf32, #tpu.memory_space<vmem>>, vector<8x1xf32>
      %47 = vector.broadcast %46 : vector<8x1xf32> to vector<8x8xf32>
      %48 = arith.divf %45, %47 : vector<8x8xf32>
      %49 = arith.truncf %48 : vector<8x8xf32> to vector<8x8xbf16>
      %c0_39 = arith.constant 0 : index
      %c0_40 = arith.constant 0 : index
      %c0_41 = arith.constant 0 : index
      %c0_42 = arith.constant 0 : index
      %50 = vector.load %arg7[%c0_39, %c0_40, %c0_41, %c0_42] : memref<1x1x8x8xbf16, #tpu.memory_space<vmem>>, vector<1x1x8x8xbf16>
      %51 = vector.shape_cast %50 : vector<1x1x8x8xbf16> to vector<8x8xbf16>
      %52 = vector.shape_cast %49 : vector<8x8xbf16> to vector<1x1x8x8xbf16>
      tpu.vector_store %arg7[%c0_39, %c0_40, %c0_41, %c0_42], %52 {strides = array<i32>} : memref<1x1x8x8xbf16, #tpu.memory_space<vmem>>, vector<1x1x8x8xbf16>,
    } else {
    }
    return
  }
  func.func @transform_0(%arg0: i32, %arg1: i32, %arg2: i32) -> (i32, i32, i32, i32) {
    %c0_i32 = arith.constant 0 : i32
    %c0_i32_0 = arith.constant 0 : i32
    %c0_i32_1 = arith.constant 0 : i32
    return %arg0, %arg1, %c0_i32, %c0_i32_0 : i32, i32, i32, i32
  }
  func.func @transform_1(%arg0: i32, %arg1: i32, %arg2: i32) -> (i32, i32, i32, i32) {
    %c0_i32 = arith.constant 0 : i32
    %c0_i32_0 = arith.constant 0 : i32
    return %arg0, %arg1, %c0_i32, %arg2 : i32, i32, i32, i32
  }
  func.func @transform_2(%arg0: i32, %arg1: i32, %arg2: i32) -> (i32, i32, i32, i32) {
    %c0_i32 = arith.constant 0 : i32
    %c0_i32_0 = arith.constant 0 : i32
    return %arg0, %arg1, %arg2, %c0_i32 : i32, i32, i32, i32
  }
  func.func @transform_3(%arg0: i32, %arg1: i32, %arg2: i32) -> (i32, i32, i32) {
    %c0_i32 = arith.constant 0 : i32
    %c0_i32_0 = arith.constant 0 : i32
    return %arg0, %c0_i32, %arg2 : i32, i32, i32
  }
  func.func @transform_4(%arg0: i32, %arg1: i32, %arg2: i32) -> (i32, i32, i32, i32) {
    %c0_i32 = arith.constant 0 : i32
    %c0_i32_0 = arith.constant 0 : i32
    %c0_i32_1 = arith.constant 0 : i32
    return %arg0, %arg1, %c0_i32, %c0_i32_0 : i32, i32, i32, i32
  }
}

module attributes {stable_mosaic.version = 11 : i64} {
  func.func @_linear_kernel(%arg0: i32, %arg1: i32, %arg2: i32, %arg3: memref<16x32xbf16, #tpu.memory_space<vmem>>, %arg4: memref<32x64xbf16, #tpu.memory_space<vmem>>, %arg5: memref<1x64xf32, #tpu.memory_space<vmem>>, %arg6: memref<16x64xbf16, #tpu.memory_space<vmem>>, %arg7: memref<16x64xf32, #tpu.memory_space<vmem>>) attributes {dimension_semantics = [#tpu.dimension_semantics<parallel>, #tpu.dimension_semantics<parallel>, #tpu.dimension_semantics<arbitrary>], iteration_bounds = array<i64: 1, 1, 1>, scalar_prefetch = 0 : i64, scratch_operands = 1 : i64, tpu.core_type = #tpu.core_type<tc>, window_params = [{transform_indices = @transform_0, window_bounds = array<i64: 16, 32>}, {transform_indices = @transform_1, window_bounds = array<i64: 32, 64>}, {transform_indices = @transform_2, window_bounds = array<i64: 1, 64>}, {transform_indices = @transform_3, window_bounds = array<i64: 16, 64>}]} {
    %c0_i32 = arith.constant 0 : i32
    %0 = arith.cmpi eq, %arg2, %c0_i32 : i32
    %1 = arith.extui %0 : i1 to i32
    %c0_i32_0 = arith.constant 0 : i32
    %2 = arith.cmpi ne, %1, %c0_i32_0 : i32
    scf.if %2 {
      %cst_10 = arith.constant 0.000000e+00 : f32
      %12 = vector.broadcast %cst_10 : f32 to vector<16x64xf32>
      %c0_11 = arith.constant 0 : index
      %c0_12 = arith.constant 0 : index
      %13 = vector.load %arg7[%c0_11, %c0_12] : memref<16x64xf32, #tpu.memory_space<vmem>>, vector<16x64xf32>
      tpu.vector_store %arg7[%c0_11, %c0_12], %12 {strides = array<i32>} : memref<16x64xf32, #tpu.memory_space<vmem>>, vector<16x64xf32>,
    } else {
    }
    %c0 = arith.constant 0 : index
    %c0_1 = arith.constant 0 : index
    %3 = vector.load %arg7[%c0, %c0_1] : memref<16x64xf32, #tpu.memory_space<vmem>>, vector<16x64xf32>
    %c0_2 = arith.constant 0 : index
    %c0_3 = arith.constant 0 : index
    %4 = vector.load %arg3[%c0_2, %c0_3] : memref<16x32xbf16, #tpu.memory_space<vmem>>, vector<16x32xbf16>
    %c0_4 = arith.constant 0 : index
    %c0_5 = arith.constant 0 : index
    %5 = vector.load %arg4[%c0_4, %c0_5] : memref<32x64xbf16, #tpu.memory_space<vmem>>, vector<32x64xbf16>
    %cst = arith.constant dense<0.000000e+00> : vector<16x64xf32>
    %6 = tpu.matmul %4, %5, %cst {dimension_numbers = #tpu.dot_dimension_numbers<[1], [0], [0], [1], [0, 0, 1, 1], [], []>} : vector<16x32xbf16>, vector<32x64xbf16>, vector<16x64xf32> -> vector<16x64xf32>
    %7 = arith.addf %3, %6 : vector<16x64xf32>
    %c0_6 = arith.constant 0 : index
    %c0_7 = arith.constant 0 : index
    %8 = vector.load %arg7[%c0_6, %c0_7] : memref<16x64xf32, #tpu.memory_space<vmem>>, vector<16x64xf32>
    tpu.vector_store %arg7[%c0_6, %c0_7], %7 {strides = array<i32>} : memref<16x64xf32, #tpu.memory_space<vmem>>, vector<16x64xf32>,
    %c0_i32_8 = arith.constant 0 : i32
    %9 = arith.cmpi eq, %arg2, %c0_i32_8 : i32
    %10 = arith.extui %9 : i1 to i32
    %c0_i32_9 = arith.constant 0 : i32
    %11 = arith.cmpi ne, %10, %c0_i32_9 : i32
    scf.if %11 {
      %c0_10 = arith.constant 0 : index
      %c0_11 = arith.constant 0 : index
      %12 = vector.load %arg7[%c0_10, %c0_11] : memref<16x64xf32, #tpu.memory_space<vmem>>, vector<16x64xf32>
      %c0_12 = arith.constant 0 : index
      %c0_13 = arith.constant 0 : index
      %13 = vector.load %arg5[%c0_12, %c0_13] : memref<1x64xf32, #tpu.memory_space<vmem>>, vector<1x64xf32>
      %14 = vector.broadcast %13 : vector<1x64xf32> to vector<16x64xf32>
      %15 = arith.addf %12, %14 : vector<16x64xf32>
      %16 = arith.truncf %15 : vector<16x64xf32> to vector<16x64xbf16>
      %c0_14 = arith.constant 0 : index
      %c0_15 = arith.constant 0 : index
      %17 = vector.load %arg6[%c0_14, %c0_15] : memref<16x64xbf16, #tpu.memory_space<vmem>>, vector<16x64xbf16>
      tpu.vector_store %arg6[%c0_14, %c0_15], %16 {strides = array<i32>} : memref<16x64xbf16, #tpu.memory_space<vmem>>, vector<16x64xbf16>,
    } else {
    }
    return
  }
  func.func @transform_0(%arg0: i32, %arg1: i32, %arg2: i32) -> (i32, i32) {
    %c0_i32 = arith.constant 0 : i32
    return %arg0, %arg2 : i32, i32
  }
  func.func @transform_1(%arg0: i32, %arg1: i32, %arg2: i32) -> (i32, i32) {
    %c0_i32 = arith.constant 0 : i32
    return %arg2, %arg1 : i32, i32
  }
  func.func @transform_2(%arg0: i32, %arg1: i32, %arg2: i32) -> (i32, i32) {
    %c0_i32 = arith.constant 0 : i32
    %c0_i32_0 = arith.constant 0 : i32
    return %c0_i32, %arg1 : i32, i32
  }
  func.func @transform_3(%arg0: i32, %arg1: i32, %arg2: i32) -> (i32, i32) {
    %c0_i32 = arith.constant 0 : i32
    return %arg0, %arg1 : i32, i32
  }
}

module attributes {stable_mosaic.version = 11 : i64} {
  func.func @_ffn_res_ln_kernel(%arg0: i32, %arg1: i32, %arg2: memref<16x32xbf16, #tpu.memory_space<vmem>>, %arg3: memref<32x64xbf16, #tpu.memory_space<vmem>>, %arg4: memref<1x64xf32, #tpu.memory_space<vmem>>, %arg5: memref<64x32xbf16, #tpu.memory_space<vmem>>, %arg6: memref<1x32xf32, #tpu.memory_space<vmem>>, %arg7: memref<1x32xf32, #tpu.memory_space<vmem>>, %arg8: memref<1x32xf32, #tpu.memory_space<vmem>>, %arg9: memref<16x32xbf16, #tpu.memory_space<vmem>>, %arg10: memref<16x32xf32, #tpu.memory_space<vmem>>) attributes {dimension_semantics = [#tpu.dimension_semantics<parallel>, #tpu.dimension_semantics<arbitrary>], iteration_bounds = array<i64: 1, 1>, scalar_prefetch = 0 : i64, scratch_operands = 1 : i64, tpu.core_type = #tpu.core_type<tc>, window_params = [{transform_indices = @transform_0, window_bounds = array<i64: 16, 32>}, {transform_indices = @transform_1, window_bounds = array<i64: 32, 64>}, {transform_indices = @transform_2, window_bounds = array<i64: 1, 64>}, {transform_indices = @transform_3, window_bounds = array<i64: 64, 32>}, {pipeline_mode = #tpu.pipeline_mode<synchronous>, transform_indices = @transform_4, window_bounds = array<i64: 1, 32>}, {pipeline_mode = #tpu.pipeline_mode<synchronous>, transform_indices = @transform_5, window_bounds = array<i64: 1, 32>}, {pipeline_mode = #tpu.pipeline_mode<synchronous>, transform_indices = @transform_6, window_bounds = array<i64: 1, 32>}, {transform_indices = @transform_7, window_bounds = array<i64: 16, 32>}]} {
    %c0_i32 = arith.constant 0 : i32
    %0 = arith.cmpi eq, %arg1, %c0_i32 : i32
    %1 = arith.extui %0 : i1 to i32
    %c0_i32_0 = arith.constant 0 : i32
    %2 = arith.cmpi ne, %1, %c0_i32_0 : i32
    scf.if %2 {
      %cst_16 = arith.constant 0.000000e+00 : f32
      %20 = vector.broadcast %cst_16 : f32 to vector<16x32xf32>
      %c0_17 = arith.constant 0 : index
      %c0_18 = arith.constant 0 : index
      %21 = vector.load %arg10[%c0_17, %c0_18] : memref<16x32xf32, #tpu.memory_space<vmem>>, vector<16x32xf32>
      tpu.vector_store %arg10[%c0_17, %c0_18], %20 {strides = array<i32>} : memref<16x32xf32, #tpu.memory_space<vmem>>, vector<16x32xf32>,
    } else {
    }
    %c0 = arith.constant 0 : index
    %c0_1 = arith.constant 0 : index
    %3 = vector.load %arg2[%c0, %c0_1] : memref<16x32xbf16, #tpu.memory_space<vmem>>, vector<16x32xbf16>
    %c0_2 = arith.constant 0 : index
    %c0_3 = arith.constant 0 : index
    %4 = vector.load %arg3[%c0_2, %c0_3] : memref<32x64xbf16, #tpu.memory_space<vmem>>, vector<32x64xbf16>
    %cst = arith.constant dense<0.000000e+00> : vector<16x64xf32>
    %5 = tpu.matmul %3, %4, %cst {dimension_numbers = #tpu.dot_dimension_numbers<[1], [0], [0], [1], [0, 0, 1, 1], [], []>} : vector<16x32xbf16>, vector<32x64xbf16>, vector<16x64xf32> -> vector<16x64xf32>
    %c0_4 = arith.constant 0 : index
    %c0_5 = arith.constant 0 : index
    %6 = vector.load %arg4[%c0_4, %c0_5] : memref<1x64xf32, #tpu.memory_space<vmem>>, vector<1x64xf32>
    %7 = vector.broadcast %6 : vector<1x64xf32> to vector<16x64xf32>
    %8 = arith.addf %5, %7 : vector<16x64xf32>
    %cst_6 = arith.constant 0.000000e+00 : f32
    %9 = vector.broadcast %cst_6 : f32 to vector<16x64xf32>
    %10 = arith.maximumf %8, %9 : vector<16x64xf32>
    %c0_7 = arith.constant 0 : index
    %c0_8 = arith.constant 0 : index
    %11 = vector.load %arg10[%c0_7, %c0_8] : memref<16x32xf32, #tpu.memory_space<vmem>>, vector<16x32xf32>
    %12 = arith.truncf %10 : vector<16x64xf32> to vector<16x64xbf16>
    %c0_9 = arith.constant 0 : index
    %c0_10 = arith.constant 0 : index
    %13 = vector.load %arg5[%c0_9, %c0_10] : memref<64x32xbf16, #tpu.memory_space<vmem>>, vector<64x32xbf16>
    %cst_11 = arith.constant dense<0.000000e+00> : vector<16x32xf32>
    %14 = tpu.matmul %12, %13, %cst_11 {dimension_numbers = #tpu.dot_dimension_numbers<[1], [0], [0], [1], [0, 0, 1, 1], [], []>} : vector<16x64xbf16>, vector<64x32xbf16>, vector<16x32xf32> -> vector<16x32xf32>
    %15 = arith.addf %11, %14 : vector<16x32xf32>
    %c0_12 = arith.constant 0 : index
    %c0_13 = arith.constant 0 : index
    %16 = vector.load %arg10[%c0_12, %c0_13] : memref<16x32xf32, #tpu.memory_space<vmem>>, vector<16x32xf32>
    tpu.vector_store %arg10[%c0_12, %c0_13], %15 {strides = array<i32>} : memref<16x32xf32, #tpu.memory_space<vmem>>, vector<16x32xf32>,
    %c0_i32_14 = arith.constant 0 : i32
    %17 = arith.cmpi eq, %arg1, %c0_i32_14 : i32
    %18 = arith.extui %17 : i1 to i32
    %c0_i32_15 = arith.constant 0 : i32
    %19 = arith.cmpi ne, %18, %c0_i32_15 : i32
    scf.if %19 {
      %c0_16 = arith.constant 0 : index
      %c0_17 = arith.constant 0 : index
      %20 = vector.load %arg10[%c0_16, %c0_17] : memref<16x32xf32, #tpu.memory_space<vmem>>, vector<16x32xf32>
      %c0_18 = arith.constant 0 : index
      %c0_19 = arith.constant 0 : index
      %21 = vector.load %arg6[%c0_18, %c0_19] : memref<1x32xf32, #tpu.memory_space<vmem>>, vector<1x32xf32>
      %22 = vector.broadcast %21 : vector<1x32xf32> to vector<16x32xf32>
      %23 = arith.addf %20, %22 : vector<16x32xf32>
      %24 = arith.extf %3 : vector<16x32xbf16> to vector<16x32xf32>
      %25 = arith.addf %23, %24 : vector<16x32xf32>
      %cst_20 = arith.constant dense<0.000000e+00> : vector<16xf32>
      %26 = vector.multi_reduction <add>, %25, %cst_20 [1] : vector<16x32xf32> to vector<16xf32>
      %27 = vector.shape_cast %26 : vector<16xf32> to vector<16x1xf32>
      %cst_21 = arith.constant 3.200000e+01 : f32
      %28 = vector.broadcast %cst_21 : f32 to vector<16x1xf32>
      %29 = arith.divf %27, %28 : vector<16x1xf32>
      %30 = vector.broadcast %29 : vector<16x1xf32> to vector<16x32xf32>
      %31 = arith.subf %25, %30 : vector<16x32xf32>
      %32 = arith.mulf %31, %31 : vector<16x32xf32>
      %cst_22 = arith.constant dense<0.000000e+00> : vector<16xf32>
      %33 = vector.multi_reduction <add>, %32, %cst_22 [1] : vector<16x32xf32> to vector<16xf32>
      %34 = vector.shape_cast %33 : vector<16xf32> to vector<16x1xf32>
      %cst_23 = arith.constant 3.200000e+01 : f32
      %35 = vector.broadcast %cst_23 : f32 to vector<16x1xf32>
      %36 = arith.divf %34, %35 : vector<16x1xf32>
      %37 = vector.broadcast %29 : vector<16x1xf32> to vector<16x32xf32>
      %38 = arith.subf %25, %37 : vector<16x32xf32>
      %cst_24 = arith.constant 9.99999974E-6 : f32
      %39 = vector.broadcast %cst_24 : f32 to vector<16x1xf32>
      %40 = arith.addf %36, %39 : vector<16x1xf32>
      %41 = math.rsqrt %40 : vector<16x1xf32>
      %42 = vector.broadcast %41 : vector<16x1xf32> to vector<16x32xf32>
      %43 = arith.mulf %38, %42 : vector<16x32xf32>
      %c0_25 = arith.constant 0 : index
      %c0_26 = arith.constant 0 : index
      %44 = vector.load %arg7[%c0_25, %c0_26] : memref<1x32xf32, #tpu.memory_space<vmem>>, vector<1x32xf32>
      %45 = vector.broadcast %44 : vector<1x32xf32> to vector<16x32xf32>
      %46 = arith.mulf %43, %45 : vector<16x32xf32>
      %c0_27 = arith.constant 0 : index
      %c0_28 = arith.constant 0 : index
      %47 = vector.load %arg8[%c0_27, %c0_28] : memref<1x32xf32, #tpu.memory_space<vmem>>, vector<1x32xf32>
      %48 = vector.broadcast %47 : vector<1x32xf32> to vector<16x32xf32>
      %49 = arith.addf %46, %48 : vector<16x32xf32>
      %50 = arith.truncf %49 : vector<16x32xf32> to vector<16x32xbf16>
      %c0_29 = arith.constant 0 : index
      %c0_30 = arith.constant 0 : index
      %51 = vector.load %arg9[%c0_29, %c0_30] : memref<16x32xbf16, #tpu.memory_space<vmem>>, vector<16x32xbf16>
      tpu.vector_store %arg9[%c0_29, %c0_30], %50 {strides = array<i32>} : memref<16x32xbf16, #tpu.memory_space<vmem>>, vector<16x32xbf16>,
    } else {
    }
    return
  }
  func.func @transform_0(%arg0: i32, %arg1: i32) -> (i32, i32) {
    %c0_i32 = arith.constant 0 : i32
    %c0_i32_0 = arith.constant 0 : i32
    return %arg0, %c0_i32 : i32, i32
  }
  func.func @transform_1(%arg0: i32, %arg1: i32) -> (i32, i32) {
    %c0_i32 = arith.constant 0 : i32
    %c0_i32_0 = arith.constant 0 : i32
    return %c0_i32, %arg1 : i32, i32
  }
  func.func @transform_2(%arg0: i32, %arg1: i32) -> (i32, i32) {
    %c0_i32 = arith.constant 0 : i32
    %c0_i32_0 = arith.constant 0 : i32
    return %c0_i32, %arg1 : i32, i32
  }
  func.func @transform_3(%arg0: i32, %arg1: i32) -> (i32, i32) {
    %c0_i32 = arith.constant 0 : i32
    %c0_i32_0 = arith.constant 0 : i32
    return %arg1, %c0_i32 : i32, i32
  }
  func.func @transform_4(%arg0: i32, %arg1: i32) -> (i32, i32) {
    %c0_i32 = arith.constant 0 : i32
    %c0_i32_0 = arith.constant 0 : i32
    %c0_i32_1 = arith.constant 0 : i32
    return %c0_i32, %c0_i32_0 : i32, i32
  }
  func.func @transform_5(%arg0: i32, %arg1: i32) -> (i32, i32) {
    %c0_i32 = arith.constant 0 : i32
    %c0_i32_0 = arith.constant 0 : i32
    %c0_i32_1 = arith.constant 0 : i32
    return %c0_i32, %c0_i32_0 : i32, i32
  }
  func.func @transform_6(%arg0: i32, %arg1: i32) -> (i32, i32) {
    %c0_i32 = arith.constant 0 : i32
    %c0_i32_0 = arith.constant 0 : i32
    %c0_i32_1 = arith.constant 0 : i32
    return %c0_i32, %c0_i32_0 : i32, i32
  }
  func.func @transform_7(%arg0: i32, %arg1: i32) -> (i32, i32) {
    %c0_i32 = arith.constant 0 : i32
    %c0_i32_0 = arith.constant 0 : i32
    return %arg0, %c0_i32 : i32, i32
  }
}

module attributes {stable_mosaic.version = 11 : i64} {
  func.func @_linear_kernel(%arg0: i32, %arg1: i32, %arg2: i32, %arg3: memref<16x32xbf16, #tpu.memory_space<vmem>>, %arg4: memref<32x128xbf16, #tpu.memory_space<vmem>>, %arg5: memref<1x128xf32, #tpu.memory_space<vmem>>, %arg6: memref<16x128xf32, #tpu.memory_space<vmem>>, %arg7: memref<16x128xf32, #tpu.memory_space<vmem>>) attributes {dimension_semantics = [#tpu.dimension_semantics<parallel>, #tpu.dimension_semantics<parallel>, #tpu.dimension_semantics<arbitrary>], iteration_bounds = array<i64: 1, 1, 1>, scalar_prefetch = 0 : i64, scratch_operands = 1 : i64, tpu.core_type = #tpu.core_type<tc>, window_params = [{transform_indices = @transform_0, window_bounds = array<i64: 16, 32>}, {transform_indices = @transform_1, window_bounds = array<i64: 32, 128>}, {transform_indices = @transform_2, window_bounds = array<i64: 1, 128>}, {transform_indices = @transform_3, window_bounds = array<i64: 16, 128>}]} {
    %c0_i32 = arith.constant 0 : i32
    %0 = arith.cmpi eq, %arg2, %c0_i32 : i32
    %1 = arith.extui %0 : i1 to i32
    %c0_i32_0 = arith.constant 0 : i32
    %2 = arith.cmpi ne, %1, %c0_i32_0 : i32
    scf.if %2 {
      %cst_10 = arith.constant 0.000000e+00 : f32
      %12 = vector.broadcast %cst_10 : f32 to vector<16x128xf32>
      %c0_11 = arith.constant 0 : index
      %c0_12 = arith.constant 0 : index
      %13 = vector.load %arg7[%c0_11, %c0_12] : memref<16x128xf32, #tpu.memory_space<vmem>>, vector<16x128xf32>
      tpu.vector_store %arg7[%c0_11, %c0_12], %12 {strides = array<i32>} : memref<16x128xf32, #tpu.memory_space<vmem>>, vector<16x128xf32>,
    } else {
    }
    %c0 = arith.constant 0 : index
    %c0_1 = arith.constant 0 : index
    %3 = vector.load %arg7[%c0, %c0_1] : memref<16x128xf32, #tpu.memory_space<vmem>>, vector<16x128xf32>
    %c0_2 = arith.constant 0 : index
    %c0_3 = arith.constant 0 : index
    %4 = vector.load %arg3[%c0_2, %c0_3] : memref<16x32xbf16, #tpu.memory_space<vmem>>, vector<16x32xbf16>
    %c0_4 = arith.constant 0 : index
    %c0_5 = arith.constant 0 : index
    %5 = vector.load %arg4[%c0_4, %c0_5] : memref<32x128xbf16, #tpu.memory_space<vmem>>, vector<32x128xbf16>
    %cst = arith.constant dense<0.000000e+00> : vector<16x128xf32>
    %6 = tpu.matmul %4, %5, %cst {dimension_numbers = #tpu.dot_dimension_numbers<[1], [0], [0], [1], [0, 0, 1, 1], [], []>} : vector<16x32xbf16>, vector<32x128xbf16>, vector<16x128xf32> -> vector<16x128xf32>
    %7 = arith.addf %3, %6 : vector<16x128xf32>
    %c0_6 = arith.constant 0 : index
    %c0_7 = arith.constant 0 : index
    %8 = vector.load %arg7[%c0_6, %c0_7] : memref<16x128xf32, #tpu.memory_space<vmem>>, vector<16x128xf32>
    tpu.vector_store %arg7[%c0_6, %c0_7], %7 {strides = array<i32>} : memref<16x128xf32, #tpu.memory_space<vmem>>, vector<16x128xf32>,
    %c0_i32_8 = arith.constant 0 : i32
    %9 = arith.cmpi eq, %arg2, %c0_i32_8 : i32
    %10 = arith.extui %9 : i1 to i32
    %c0_i32_9 = arith.constant 0 : i32
    %11 = arith.cmpi ne, %10, %c0_i32_9 : i32
    scf.if %11 {
      %c0_10 = arith.constant 0 : index
      %c0_11 = arith.constant 0 : index
      %12 = vector.load %arg7[%c0_10, %c0_11] : memref<16x128xf32, #tpu.memory_space<vmem>>, vector<16x128xf32>
      %c0_12 = arith.constant 0 : index
      %c0_13 = arith.constant 0 : index
      %13 = vector.load %arg5[%c0_12, %c0_13] : memref<1x128xf32, #tpu.memory_space<vmem>>, vector<1x128xf32>
      %14 = vector.broadcast %13 : vector<1x128xf32> to vector<16x128xf32>
      %15 = arith.addf %12, %14 : vector<16x128xf32>
      %c0_14 = arith.constant 0 : index
      %c0_15 = arith.constant 0 : index
      %16 = vector.load %arg6[%c0_14, %c0_15] : memref<16x128xf32, #tpu.memory_space<vmem>>, vector<16x128xf32>
      tpu.vector_store %arg6[%c0_14, %c0_15], %15 {strides = array<i32>} : memref<16x128xf32, #tpu.memory_space<vmem>>, vector<16x128xf32>,
    } else {
    }
    return
  }
  func.func @transform_0(%arg0: i32, %arg1: i32, %arg2: i32) -> (i32, i32) {
    %c0_i32 = arith.constant 0 : i32
    return %arg0, %arg2 : i32, i32
  }
  func.func @transform_1(%arg0: i32, %arg1: i32, %arg2: i32) -> (i32, i32) {
    %c0_i32 = arith.constant 0 : i32
    return %arg2, %arg1 : i32, i32
  }
  func.func @transform_2(%arg0: i32, %arg1: i32, %arg2: i32) -> (i32, i32) {
    %c0_i32 = arith.constant 0 : i32
    %c0_i32_0 = arith.constant 0 : i32
    return %c0_i32, %arg1 : i32, i32
  }
  func.func @transform_3(%arg0: i32, %arg1: i32, %arg2: i32) -> (i32, i32) {
    %c0_i32 = arith.constant 0 : i32
    return %arg0, %arg1 : i32, i32
  }
}

</mosaic_0001>

<llo_original>
// kernel: transformer_forward.36
$region0: #{transformer_forward.36}
  #allocation0 [shape = 'u32[]', space=smem, size = 0x4, offset = 0x4, fixed_abs, tag = 'smem constant byte address 0x4 - core index']
  #allocation1 [shape = 'u32[72,128]{1,0:T(1,128)}', space=vmem, size = 0x9000, scoped, tag = 'internal scratch']
  #allocation2 [shape = 'f32[16,32]{1,0:T(8,128)}', space=vmem, size = 0x2000, scoped, tag = 'scratch operand']
  %s0 = inlined_call_operand.vmem [shape: bf16[16,32], index: 0, kind: input, shape index: {}]
  %s1 = inlined_call_operand.vmem [shape: bf16[32,32], index: 1, kind: input, shape index: {}]
  %s2 = inlined_call_operand.vmem [shape: f32[1,32], index: 2, kind: input, shape index: {}]
  %s3 = inlined_call_operand.vmem [shape: bf16[16,32], index: 3, kind: output, shape index: {}]
  %s4 = sld [smem:[#allocation0]]
  $region30: #{transformer_forward.36} parent=0
    _
  %s6 = ssub.s32 1, %s4
  %s7 = scalar_select 0, %s6, %s4
  // Predicated region
  $region2: #{transformer_forward.36} parent=0 // pred_check
    _
  $region3: #{transformer_forward.36} parent=0 // pred_check_branch
    %9 = sbr.rel (0) target = $region5
  $region4: #{transformer_forward.36} parent=0 // pred_region
    _
  $region5: #{transformer_forward.36} parent=0 // pred_fallthru
    _
  // Predicated region
  $region6: #{transformer_forward.36} parent=0 // pred_check
    _
  $region7: #{transformer_forward.36} parent=0 // pred_check_branch
    %11 = sbr.rel (0) target = $region9
  $region8: #{transformer_forward.36} parent=0 // pred_region
    _
  $region9: #{transformer_forward.36} parent=0 // pred_fallthru
    _
  // Predicated region
  $region10: #{transformer_forward.36} parent=0 // pred_check
    _
  $region11: #{transformer_forward.36} parent=0 // pred_check_branch
    %13 = sbr.rel (0) target = $region13
  $region12: #{transformer_forward.36} parent=0 // pred_region
    _
  $region13: #{transformer_forward.36} parent=0 // pred_fallthru
    _
  %p15 = scmp.eq.s32.totalorder 0, 0
  // Predicated region
  $region14: #{transformer_forward.36} parent=0 // pred_check
    %p16 = pneg %p15
  $region15: #{transformer_forward.36} parent=0 // pred_check_branch
    %18 = sbr.rel (%p16) target = $region17
  $region16: #{transformer_forward.36} parent=0 // pred_region
    %vm19 = vcmask 261120
    %20 = vst.msk [vmem:[#allocation2] sm:$0xff] %vm19, 0.0
    %21 = vst.msk [vmem:[#allocation2 + $0x8] sm:$0xff] %vm19, 0.0
  $region17: #{transformer_forward.36} parent=0 // pred_fallthru
    _
  %v22 = vld [vmem:[#allocation2] sm:$0xff]
  %v23 = vld [vmem:[#allocation2 + $0x8] sm:$0xff]
  %v24 = vld [vmem:[%s0] sm:$0xf]
  %v25 = vld [vmem:[%s0 + $0x4] sm:$0xf]
  %v26 = vld [vmem:[%s1] sm:$0xf]
  %v27 = vld [vmem:[%s1 + $0x4] sm:$0xf]
  %v28 = vld [vmem:[%s1 + $0x8] sm:$0xf]
  %v29 = vld [vmem:[%s1 + $0xc] sm:$0xf]
  %v32 = vunpack.c.l.b16 %v24
  %v33 = vunpack.c.l.b16 %v25
  %v34 = vpack.c.b16 %v33, %v32
  %v39 = vunpack.c.l.b16 %v26
  %v40 = vunpack.c.l.b16 %v27
  %v41 = vunpack.c.l.b16 %v28
  %v42 = vunpack.c.l.b16 %v29
  %v43 = vpack.c.b16 %v40, %v39
  %v44 = vpack.c.b16 %v42, %v41
  %vm47 = vcmask 261120
  %v49 = vsel %vm47, %v34, 0
  %51 = vmatpush.bf16.msra.mxu0 0
  %52 = vmatpush.bf16.msra.mxu0 0
  %53 = vmatpush.bf16.msra.mxu0 0
  %54 = vmatpush.bf16.msra.mxu0 0
  %55 = vmatpush.bf16.msra.mxu0 0
  %56 = vmatpush.bf16.msra.mxu0 0
  %57 = vmatpush.bf16.msra.mxu0 %v44
  %58 = vmatpush.bf16.msra.mxu0 %v43
  %59 = vmatmul.bf16.gmra.mxu0 %v49
  %v60 = vpop.f32.mrf.mxu0
  %v61 = vadd.f32 0.0, %v60
  %v62 = vpop.f32.mrf.mxu0
  %v63 = vadd.f32 0.0, %v62
  %64 = vdwg.mxu0
  %v65 = vadd.f32 %v22, %v61
  %v66 = vadd.f32 %v23, %v63
  %67 = vst.msk [vmem:[#allocation2] sm:$0xff] %vm47, %v65
  %68 = vst.msk [vmem:[#allocation2 + $0x8] sm:$0xff] %vm47, %v66
  // Predicated region
  $region18: #{transformer_forward.36} parent=0 // pred_check
    %p69 = pneg %p15
  $region19: #{transformer_forward.36} parent=0 // pred_check_branch
    %71 = sbr.rel (%p69) target = $region21
  $region20: #{transformer_forward.36} parent=0 // pred_region
    %v72 = vld [vmem:[#allocation2] sm:$0xff]
    %v73 = vld [vmem:[#allocation2 + $0x8] sm:$0xff]
    %v74 = vld [vmem:[%s2] sm:$0x1]
    %v76 = vperm.slane %v74, 0
    %v78 = vadd.f32 %v72, %v76
    %v79 = vadd.f32 %v73, %v76
    %v80 = vpack.c.bf16 %v78, %v78
    %v81 = vpack.c.bf16 %v79, %v79
    %vm82 = vcmask 257024
    %83 = vst.msk [vmem:[%s3] sm:$0xf] %vm82, %v80
    %84 = vst.msk [vmem:[%s3 + $0x4] sm:$0xf] %vm82, %v81
  $region21: #{transformer_forward.36} parent=0 // pred_fallthru
    _
  // Predicated region
  $region22: #{transformer_forward.36} parent=0 // pred_check
    _
  $region23: #{transformer_forward.36} parent=0 // pred_check_branch
    %86 = sbr.rel (0) target = $region25
  $region24: #{transformer_forward.36} parent=0 // pred_region
    _
  $region25: #{transformer_forward.36} parent=0 // pred_fallthru
    _
  // Predicated region
  $region26: #{transformer_forward.36} parent=0 // pred_check
    _
  $region27: #{transformer_forward.36} parent=0 // pred_check_branch
    %88 = sbr.rel (0) target = $region29
  $region28: #{transformer_forward.36} parent=0 // pred_region
    _
  $region29: #{transformer_forward.36} parent=0 // pred_fallthru
    _

// kernel: transformer_forward.33
$region0: #{transformer_forward.33}
  #allocation0 [shape = 'u32[]', space=smem, size = 0x4, offset = 0x4, fixed_abs, tag = 'smem constant byte address 0x4 - core index']
  #allocation1 [shape = 'u32[72,128]{1,0:T(1,128)}', space=vmem, size = 0x9000, scoped, tag = 'internal scratch']
  #allocation2 [shape = 'f32[16,96]{1,0:T(8,128)}', space=vmem, size = 0x2000, scoped, tag = 'scratch operand']
  %s0 = inlined_call_operand.vmem [shape: bf16[16,32], index: 0, kind: input, shape index: {}]
  %s1 = inlined_call_operand.vmem [shape: bf16[32,96], index: 1, kind: input, shape index: {}]
  %s2 = inlined_call_operand.vmem [shape: f32[1,96], index: 2, kind: input, shape index: {}]
  %s3 = inlined_call_operand.vmem [shape: bf16[16,96], index: 3, kind: output, shape index: {}]
  %s4 = sld [smem:[#allocation0]]
  $region30: #{transformer_forward.33} parent=0
    _
  %s6 = ssub.s32 1, %s4
  %s7 = scalar_select 0, %s6, %s4
  // Predicated region
  $region2: #{transformer_forward.33} parent=0 // pred_check
    _
  $region3: #{transformer_forward.33} parent=0 // pred_check_branch
    %9 = sbr.rel (0) target = $region5
  $region4: #{transformer_forward.33} parent=0 // pred_region
    _
  $region5: #{transformer_forward.33} parent=0 // pred_fallthru
    _
  // Predicated region
  $region6: #{transformer_forward.33} parent=0 // pred_check
    _
  $region7: #{transformer_forward.33} parent=0 // pred_check_branch
    %11 = sbr.rel (0) target = $region9
  $region8: #{transformer_forward.33} parent=0 // pred_region
    _
  $region9: #{transformer_forward.33} parent=0 // pred_fallthru
    _
  // Predicated region
  $region10: #{transformer_forward.33} parent=0 // pred_check
    _
  $region11: #{transformer_forward.33} parent=0 // pred_check_branch
    %13 = sbr.rel (0) target = $region13
  $region12: #{transformer_forward.33} parent=0 // pred_region
    _
  $region13: #{transformer_forward.33} parent=0 // pred_fallthru
    _
  %p15 = scmp.eq.s32.totalorder 0, 0
  // Predicated region
  $region14: #{transformer_forward.33} parent=0 // pred_check
    %p16 = pneg %p15
  $region15: #{transformer_forward.33} parent=0 // pred_check_branch
    %18 = sbr.rel (%p16) target = $region17
  $region16: #{transformer_forward.33} parent=0 // pred_region
    %vm19 = vcmask 785408
    %20 = vst.msk [vmem:[#allocation2] sm:$0xff] %vm19, 0.0
    %21 = vst.msk [vmem:[#allocation2 + $0x8] sm:$0xff] %vm19, 0.0
  $region17: #{transformer_forward.33} parent=0 // pred_fallthru
    _
  %v22 = vld [vmem:[#allocation2] sm:$0xff]
  %v23 = vld [vmem:[#allocation2 + $0x8] sm:$0xff]
  %v24 = vld [vmem:[%s0] sm:$0xf]
  %v25 = vld [vmem:[%s0 + $0x4] sm:$0xf]
  %v26 = vld [vmem:[%s1] sm:$0xf]
  %v27 = vld [vmem:[%s1 + $0x4] sm:$0xf]
  %v28 = vld [vmem:[%s1 + $0x8] sm:$0xf]
  %v29 = vld [vmem:[%s1 + $0xc] sm:$0xf]
  %v32 = vunpack.c.l.b16 %v24
  %v33 = vunpack.c.l.b16 %v25
  %v34 = vpack.c.b16 %v33, %v32
  %v39 = vunpack.c.l.b16 %v26
  %v40 = vunpack.c.l.b16 %v27
  %v41 = vunpack.c.l.b16 %v28
  %v42 = vunpack.c.l.b16 %v29
  %v43 = vpack.c.b16 %v40, %v39
  %v44 = vpack.c.b16 %v42, %v41
  %vm47 = vcmask 261120
  %v49 = vsel %vm47, %v34, 0
  %51 = vmatpush.bf16.msra.mxu0 0
  %52 = vmatpush.bf16.msra.mxu0 0
  %53 = vmatpush.bf16.msra.mxu0 0
  %54 = vmatpush.bf16.msra.mxu0 0
  %55 = vmatpush.bf16.msra.mxu0 0
  %56 = vmatpush.bf16.msra.mxu0 0
  %57 = vmatpush.bf16.msra.mxu0 %v44
  %58 = vmatpush.bf16.msra.mxu0 %v43
  %59 = vmatmul.bf16.gmra.mxu0 %v49
  %v60 = vpop.f32.mrf.mxu0
  %v61 = vadd.f32 0.0, %v60
  %v62 = vpop.f32.mrf.mxu0
  %v63 = vadd.f32 0.0, %v62
  %64 = vdwg.mxu0
  %v65 = vadd.f32 %v22, %v61
  %v66 = vadd.f32 %v23, %v63
  %vm67 = vcmask 785408
  %68 = vst.msk [vmem:[#allocation2] sm:$0xff] %vm67, %v65
  %69 = vst.msk [vmem:[#allocation2 + $0x8] sm:$0xff] %vm67, %v66
  // Predicated region
  $region18: #{transformer_forward.33} parent=0 // pred_check
    %p70 = pneg %p15
  $region19: #{transformer_forward.33} parent=0 // pred_check_branch
    %72 = sbr.rel (%p70) target = $region21
  $region20: #{transformer_forward.33} parent=0 // pred_region
    %v73 = vld [vmem:[#allocation2] sm:$0xff]
    %v74 = vld [vmem:[#allocation2 + $0x8] sm:$0xff]
    %v75 = vld [vmem:[%s2] sm:$0x1]
    %v77 = vperm.slane %v75, 0
    %v79 = vadd.f32 %v73, %v77
    %v80 = vadd.f32 %v74, %v77
    %v81 = vpack.c.bf16 %v79, %v79
    %v82 = vpack.c.bf16 %v80, %v80
    %vm83 = vcmask 781312
    %84 = vst.msk [vmem:[%s3] sm:$0xf] %vm83, %v81
    %85 = vst.msk [vmem:[%s3 + $0x4] sm:$0xf] %vm83, %v82
  $region21: #{transformer_forward.33} parent=0 // pred_fallthru
    _
  // Predicated region
  $region22: #{transformer_forward.33} parent=0 // pred_check
    _
  $region23: #{transformer_forward.33} parent=0 // pred_check_branch
    %87 = sbr.rel (0) target = $region25
  $region24: #{transformer_forward.33} parent=0 // pred_region
    _
  $region25: #{transformer_forward.33} parent=0 // pred_fallthru
    _
  // Predicated region
  $region26: #{transformer_forward.33} parent=0 // pred_check
    _
  $region27: #{transformer_forward.33} parent=0 // pred_check_branch
    %89 = sbr.rel (0) target = $region29
  $region28: #{transformer_forward.33} parent=0 // pred_region
    _
  $region29: #{transformer_forward.33} parent=0 // pred_fallthru
    _

// kernel: transformer_forward.34
$region0: #{transformer_forward.34}
  #allocation0 [shape = 'u32[]', space=smem, size = 0x4, offset = 0x4, fixed_abs, tag = 'smem constant byte address 0x4 - core index']
  #allocation1 [shape = 'u32[72,128]{1,0:T(1,128)}', space=vmem, size = 0x9000, scoped, tag = 'internal scratch']
  #allocation2 [shape = 'f32[8,1]{1,0:T(8,128)}', space=vmem, size = 0x1000, scoped, tag = 'scratch operand']
  #allocation3 [shape = 'f32[8,1]{1,0:T(8,128)}', space=vmem, size = 0x1000, scoped, tag = 'scratch operand']
  #allocation4 [shape = 'f32[8,8]{1,0:T(8,128)}', space=vmem, size = 0x1000, scoped, tag = 'scratch operand']
  %s0 = inlined_call_operand.vmem [shape: bf16[2,4,8,8], index: 0, kind: input, shape index: {}]
  %s1 = inlined_call_operand.vmem [shape: bf16[2,4,8,8], index: 1, kind: input, shape index: {}]
  %s2 = inlined_call_operand.vmem [shape: bf16[2,4,8,8], index: 2, kind: input, shape index: {}]
  %s3 = inlined_call_operand.vmem [shape: f32[2,1,8], index: 3, kind: input, shape index: {}]
  %s4 = inlined_call_operand.vmem [shape: bf16[2,4,8,8], index: 4, kind: output, shape index: {}]
  %s5 = sld [smem:[#allocation0]]
  $region57: #{transformer_forward.34} parent=0
    _
  %s7 = ssub.s32 1, %s5
  %s8 = scalar_select 0, %s7, %s5
  loop: start=0, step=1, limit=10
  $region2: #{transformer_forward.34} parent=0 // loop_pre_header
    _
  $region3: #{transformer_forward.34} parent=0 // loop_header
    %s10 = sphi 0, %s14
    %p11 = scmp.ge.s32.totalorder %s10, 10
    %s17 = sphi 0, %s36
    %s18 = sphi 0, %s32
    %s19 = sphi 0, %s28
    %s20 = sphi 0, %s17
    %s21 = sphi 0, %s18
    %s22 = sphi 0, %s19
    %s23 = sphi 0, %s20
    %s24 = sphi 0, %s21
    %s25 = sphi 0, %s22
    %s41 = sphi 0, %s43
    %s44 = sphi 0, %s41
    %s45 = sphi 0, %s44
    %s61 = sphi 0, %s45
    %s71 = sphi 0, %s73
    %s74 = sphi 0, %s71
    %s75 = sphi 0, %s74
    %s91 = sphi 0, %s75
    %s101 = sphi 0, %s103
    %s104 = sphi 0, %s101
    %s105 = sphi 0, %s104
    %s121 = sphi 0, %s105
    %s129 = sphi 0, %s131
    %s132 = sphi 0, %s129
    %s133 = sphi 0, %s132
    %s149 = sphi 0, %s133
    %s157 = sphi 0, %s159
    %s160 = sphi 0, %s157
    %s161 = sphi 0, %s160
    %s177 = sphi 0, %s161
  $region4: #{transformer_forward.34} parent=0 // loop_header_branch
    %13 = sbr.rel (%p11) target = $region8
  $region5: #{transformer_forward.34} parent=0 // loop_body
    %s15 = ssub.s32 %s10, 1
    %s16 = ssub.s32 %s10, 2
    %s26 = sadd.s32 1, %s19
    %p27 = scmp.ge.s32.totalorder %s26, 1
    %s28 = scalar_select %p27, 0, %s26
    %s29 = sadd.s32 1, %s18
    %s30 = scalar_select %p27, %s29, %s18
    %p31 = scmp.ge.s32.totalorder %s30, 4
    %s32 = scalar_select %p31, 0, %s30
    %s33 = sadd.s32 1, %s17
    %s34 = scalar_select %p31, %s33, %s17
    %p35 = scmp.ge.s32.totalorder %s34, 2
    %s36 = scalar_select %p35, 0, %s34
    %s37 = ssub.s32 %s17, %s36
    %s38 = ssub.s32 %s18, %s32
    %s39 = sor.u32 %s37, %s38
    %p40 = scmp.eq.s32.totalorder %s39, 0
    %s42 = sadd.s32 %s41, 1
    %s43 = scalar_select %p40, %s41, %s42
    %p46 = pneg %p40
    %p47 = scmp.eq.s32.totalorder %s10, 7
    %p48 = por %p46, %p47
    %p49 = scmp.ne.s32.totalorder %s41, %s44
    %p50 = scmp.eq.s32.totalorder %s10, 0
    %p51 = por %p49, %p50
    %p52 = scmp.ne.s32.totalorder %s41, %s44
    %p53 = scmp.eq.s32.totalorder %s15, 7
    %p54 = por %p52, %p53
    %p55 = scmp.ne.s32.totalorder %s44, %s45
    %p56 = scmp.eq.s32.totalorder %s15, 0
    %p57 = por %p55, %p56
    %p58 = scmp.ne.s32.totalorder %s44, %s45
    %p59 = scmp.eq.s32.totalorder %s16, 7
    %p60 = por %p58, %p59
    %p62 = scmp.ne.s32.totalorder %s45, %s61
    %p63 = scmp.eq.s32.totalorder %s16, 0
    %p64 = por %p62, %p63
    %s65 = ssub.s32 %s17, %s36
    %s66 = ssub.s32 %s18, %s32
    %s67 = sor.u32 %s65, %s66
    %s68 = ssub.s32 %s19, %s28
    %s69 = sor.u32 %s67, %s68
    %p70 = scmp.eq.s32.totalorder %s69, 0
    %s72 = sadd.s32 %s71, 1
    %s73 = scalar_select %p70, %s71, %s72
    %p76 = pneg %p70
    %p77 = scmp.eq.s32.totalorder %s10, 7
    %p78 = por %p76, %p77
    %p79 = scmp.ne.s32.totalorder %s71, %s74
    %p80 = scmp.eq.s32.totalorder %s10, 0
    %p81 = por %p79, %p80
    %p82 = scmp.ne.s32.totalorder %s71, %s74
    %p83 = scmp.eq.s32.totalorder %s15, 7
    %p84 = por %p82, %p83
    %p85 = scmp.ne.s32.totalorder %s74, %s75
    %p86 = scmp.eq.s32.totalorder %s15, 0
    %p87 = por %p85, %p86
    %p88 = scmp.ne.s32.totalorder %s74, %s75
    %p89 = scmp.eq.s32.totalorder %s16, 7
    %p90 = por %p88, %p89
    %p92 = scmp.ne.s32.totalorder %s75, %s91
    %p93 = scmp.eq.s32.totalorder %s16, 0
    %p94 = por %p92, %p93
    %s95 = ssub.s32 %s17, %s36
    %s96 = ssub.s32 %s18, %s32
    %s97 = sor.u32 %s95, %s96
    %s98 = ssub.s32 %s19, %s28
    %s99 = sor.u32 %s97, %s98
    %p100 = scmp.eq.s32.totalorder %s99, 0
    %s102 = sadd.s32 %s101, 1
    %s103 = scalar_select %p100, %s101, %s102
    %p106 = pneg %p100
    %p107 = scmp.eq.s32.totalorder %s10, 7
    %p108 = por %p106, %p107
    %p109 = scmp.ne.s32.totalorder %s101, %s104
    %p110 = scmp.eq.s32.totalorder %s10, 0
    %p111 = por %p109, %p110
    %p112 = scmp.ne.s32.totalorder %s101, %s104
    %p113 = scmp.eq.s32.totalorder %s15, 7
    %p114 = por %p112, %p113
    %p115 = scmp.ne.s32.totalorder %s104, %s105
    %p116 = scmp.eq.s32.totalorder %s15, 0
    %p117 = por %p115, %p116
    %p118 = scmp.ne.s32.totalorder %s104, %s105
    %p119 = scmp.eq.s32.totalorder %s16, 7
    %p120 = por %p118, %p119
    %p122 = scmp.ne.s32.totalorder %s105, %s121
    %p123 = scmp.eq.s32.totalorder %s16, 0
    %p124 = por %p122, %p123
    %s125 = ssub.s32 %s17, %s36
    %s126 = ssub.s32 %s19, %s28
    %s127 = sor.u32 %s125, %s126
    %p128 = scmp.eq.s32.totalorder %s127, 0
    %s130 = sadd.s32 %s129, 1
    %s131 = scalar_select %p128, %s129, %s130
    %p134 = pneg %p128
    %p135 = scmp.eq.s32.totalorder %s10, 7
    %p136 = por %p134, %p135
    %p137 = scmp.ne.s32.totalorder %s129, %s132
    %p138 = scmp.eq.s32.totalorder %s10, 0
    %p139 = por %p137, %p138
    %p140 = scmp.ne.s32.totalorder %s129, %s132
    %p141 = scmp.eq.s32.totalorder %s15, 7
    %p142 = por %p140, %p141
    %p143 = scmp.ne.s32.totalorder %s132, %s133
    %p144 = scmp.eq.s32.totalorder %s15, 0
    %p145 = por %p143, %p144
    %p146 = scmp.ne.s32.totalorder %s132, %s133
    %p147 = scmp.eq.s32.totalorder %s16, 7
    %p148 = por %p146, %p147
    %p150 = scmp.ne.s32.totalorder %s133, %s149
    %p151 = scmp.eq.s32.totalorder %s16, 0
    %p152 = por %p150, %p151
    %s153 = ssub.s32 %s17, %s36
    %s154 = ssub.s32 %s18, %s32
    %s155 = sor.u32 %s153, %s154
    %p156 = scmp.eq.s32.totalorder %s155, 0
    %s158 = sadd.s32 %s157, 1
    %s159 = scalar_select %p156, %s157, %s158
    %p162 = pneg %p156
    %p163 = scmp.eq.s32.totalorder %s10, 7
    %p164 = por %p162, %p163
    %p165 = scmp.ne.s32.totalorder %s157, %s160
    %p166 = scmp.eq.s32.totalorder %s10, 0
    %p167 = por %p165, %p166
    %p168 = scmp.ne.s32.totalorder %s157, %s160
    %p169 = scmp.eq.s32.totalorder %s15, 7
    %p170 = por %p168, %p169
    %p171 = scmp.ne.s32.totalorder %s160, %s161
    %p172 = scmp.eq.s32.totalorder %s15, 0
    %p173 = por %p171, %p172
    %p174 = scmp.ne.s32.totalorder %s160, %s161
    %p175 = scmp.eq.s32.totalorder %s16, 7
    %p176 = por %p174, %p175
    %p178 = scmp.ne.s32.totalorder %s161, %s177
    %p179 = scmp.eq.s32.totalorder %s16, 0
    %p180 = por %p178, %p179
    %p181 = scmp.le.s32.totalorder 1, %s10
    %p182 = scmp.lt.s32.totalorder %s10, 9
    %p183 = pnand %p181, %p182
    %p184 = pneg %p183
    // Predicated region
    $region9: #{transformer_forward.34} parent=5 // pred_check
      _
    $region10: #{transformer_forward.34} parent=5 // pred_check_branch
      %186 = sbr.rel (%p183) target = $region12
    $region11: #{transformer_forward.34} parent=5 // pred_region
      %s187 = ssub.s32 %s10, 1
    $region12: #{transformer_forward.34} parent=5 // pred_fallthru
      _
    %p188 = scmp.lt.s32.totalorder %s10, 8
    // Predicated region
    $region13: #{transformer_forward.34} parent=5 // pred_check
      %p189 = pneg %p188
    $region14: #{transformer_forward.34} parent=5 // pred_check_branch
      %191 = sbr.rel (%p189) target = $region16
    $region15: #{transformer_forward.34} parent=5 // pred_region
      // Predicated region
      $region17: #{transformer_forward.34} parent=15 // pred_check
        %p192 = pneg %p51
      $region18: #{transformer_forward.34} parent=15 // pred_check_branch
        %194 = sbr.rel (%p192) target = $region20
      $region19: #{transformer_forward.34} parent=15 // pred_region
        %p195 = scmp.lt.s32.totalorder %s17, 1
        %s196 = scalar_select %p195, %s17, 1
        %p197 = scmp.lt.s32.totalorder %s18, 3
        %s198 = scalar_select %p197, %s18, 3
        %s199 = smul.addr %s196, 4
        %s200 = sadd.s32 %s198, %s199
        %s201 = smul.addr %s200, 4
        %s202 = scalar_lea.vmem %s0, %s201
      $region20: #{transformer_forward.34} parent=15 // pred_fallthru
        _
      // Predicated region
      $region21: #{transformer_forward.34} parent=15 // pred_check
        %p203 = pneg %p81
      $region22: #{transformer_forward.34} parent=15 // pred_check_branch
        %205 = sbr.rel (%p203) target = $region24
      $region23: #{transformer_forward.34} parent=15 // pred_region
        %p206 = scmp.lt.s32.totalorder %s17, 1
        %s207 = scalar_select %p206, %s17, 1
        %p208 = scmp.lt.s32.totalorder %s18, 3
        %s209 = scalar_select %p208, %s18, 3
        %p210 = scmp.lt.s32.totalorder %s19, 0
        %s211 = scalar_select %p210, %s19, 0
        %s212 = sadd.s32 %s211, %s209
        %s213 = smul.addr %s207, 4
        %s214 = sadd.s32 %s212, %s213
        %s215 = smul.addr %s214, 4
        %s216 = scalar_lea.vmem %s1, %s215
      $region24: #{transformer_forward.34} parent=15 // pred_fallthru
        _
      // Predicated region
      $region25: #{transformer_forward.34} parent=15 // pred_check
        %p217 = pneg %p111
      $region26: #{transformer_forward.34} parent=15 // pred_check_branch
        %219 = sbr.rel (%p217) target = $region28
      $region27: #{transformer_forward.34} parent=15 // pred_region
        %p220 = scmp.lt.s32.totalorder %s17, 1
        %s221 = scalar_select %p220, %s17, 1
        %p222 = scmp.lt.s32.totalorder %s18, 3
        %s223 = scalar_select %p222, %s18, 3
        %p224 = scmp.lt.s32.totalorder %s19, 0
        %s225 = scalar_select %p224, %s19, 0
        %s226 = sadd.s32 %s225, %s223
        %s227 = smul.addr %s221, 4
        %s228 = sadd.s32 %s226, %s227
        %s229 = smul.addr %s228, 4
        %s230 = scalar_lea.vmem %s2, %s229
      $region28: #{transformer_forward.34} parent=15 // pred_fallthru
        _
      // Predicated region
      $region29: #{transformer_forward.34} parent=15 // pred_check
        %p231 = pneg %p139
      $region30: #{transformer_forward.34} parent=15 // pred_check_branch
        %233 = sbr.rel (%p231) target = $region32
      $region31: #{transformer_forward.34} parent=15 // pred_region
        %p234 = scmp.lt.s32.totalorder %s17, 1
        %s235 = scalar_select %p234, %s17, 1
        %p236 = scmp.lt.s32.totalorder %s19, 0
        %s237 = scalar_select %p236, %s19, 0
        %s238 = sadd.s32 %s237, %s235
        %s239 = scalar_lea.vmem %s3, %s238
      $region32: #{transformer_forward.34} parent=15 // pred_fallthru
        _
    $region16: #{transformer_forward.34} parent=5 // pred_fallthru
      _
    %p240 = scmp.le.s32.totalorder 1, %s10
    %p241 = scmp.lt.s32.totalorder %s10, 9
    %p242 = pnand %p240, %p241
    %p243 = pneg %p242
    // Predicated region
    $region33: #{transformer_forward.34} parent=5 // pred_check
      _
    $region34: #{transformer_forward.34} parent=5 // pred_check_branch
      %245 = sbr.rel (%p242) target = $region36
    $region35: #{transformer_forward.34} parent=5 // pred_region
      %s246 = ssub.s32 %s10, 1
      %p247 = scmp.lt.s32.totalorder %s20, 1
      %s248 = scalar_select %p247, %s20, 1
      %p249 = scmp.lt.s32.totalorder %s21, 3
      %s250 = scalar_select %p249, %s21, 3
      %s251 = smul.addr %s248, 4
      %s252 = sadd.s32 %s250, %s251
      %s253 = smul.addr %s252, 4
      %s254 = scalar_lea.vmem %s0, %s253
      %p255 = pneg %p57
      %p256 = pneg %p54
      %p257 = scmp.lt.s32.totalorder %s20, 1
      %s258 = scalar_select %p257, %s20, 1
      %p259 = scmp.lt.s32.totalorder %s21, 3
      %s260 = scalar_select %p259, %s21, 3
      %p261 = scmp.lt.s32.totalorder %s22, 0
      %s262 = scalar_select %p261, %s22, 0
      %s263 = sadd.s32 %s262, %s260
      %s264 = smul.addr %s258, 4
      %s265 = sadd.s32 %s263, %s264
      %s266 = smul.addr %s265, 4
      %s267 = scalar_lea.vmem %s1, %s266
      %p268 = pneg %p87
      %p269 = pneg %p84
      %p270 = scmp.lt.s32.totalorder %s20, 1
      %s271 = scalar_select %p270, %s20, 1
      %p272 = scmp.lt.s32.totalorder %s21, 3
      %s273 = scalar_select %p272, %s21, 3
      %p274 = scmp.lt.s32.totalorder %s22, 0
      %s275 = scalar_select %p274, %s22, 0
      %s276 = sadd.s32 %s275, %s273
      %s277 = smul.addr %s271, 4
      %s278 = sadd.s32 %s276, %s277
      %s279 = smul.addr %s278, 4
      %s280 = scalar_lea.vmem %s2, %s279
      %p281 = pneg %p117
      %p282 = pneg %p114
      %p283 = scmp.lt.s32.totalorder %s20, 1
      %s284 = scalar_select %p283, %s20, 1
      %p285 = scmp.lt.s32.totalorder %s22, 0
      %s286 = scalar_select %p285, %s22, 0
      %s287 = sadd.s32 %s286, %s284
      %s288 = scalar_lea.vmem %s3, %s287
      %p289 = pneg %p145
      %p290 = pneg %p142
      %p291 = pneg %p173
      %p292 = pneg %p170
      %p293 = scmp.lt.s32.totalorder %s20, 1
      %s294 = scalar_select %p293, %s20, 1
      %p295 = scmp.lt.s32.totalorder %s21, 3
      %s296 = scalar_select %p295, %s21, 3
      %s297 = smul.addr %s294, 4
      %s298 = sadd.s32 %s296, %s297
      %s299 = smul.addr %s298, 4
      %s300 = scalar_lea.vmem %s4, %s299
      %p301 = scmp.lt.s32.totalorder %s20, 1
      %s302 = scalar_select %p301, %s20, 1
      %p303 = scmp.lt.s32.totalorder %s21, 3
      %s304 = scalar_select %p303, %s21, 3
      %s305 = smul.addr %s302, 4
      %s306 = sadd.s32 %s304, %s305
      %s307 = smul.addr %s306, 4
      %s308 = scalar_lea.vmem %s0, %s307
      %p309 = scmp.lt.s32.totalorder %s20, 1
      %s310 = scalar_select %p309, %s20, 1
      %p311 = scmp.lt.s32.totalorder %s21, 3
      %s312 = scalar_select %p311, %s21, 3
      %p313 = scmp.lt.s32.totalorder %s22, 0
      %s314 = scalar_select %p313, %s22, 0
      %s315 = sadd.s32 %s314, %s312
      %s316 = smul.addr %s310, 4
      %s317 = sadd.s32 %s315, %s316
      %s318 = smul.addr %s317, 4
      %s319 = scalar_lea.vmem %s1, %s318
      %p320 = scmp.lt.s32.totalorder %s20, 1
      %s321 = scalar_select %p320, %s20, 1
      %p322 = scmp.lt.s32.totalorder %s21, 3
      %s323 = scalar_select %p322, %s21, 3
      %p324 = scmp.lt.s32.totalorder %s22, 0
      %s325 = scalar_select %p324, %s22, 0
      %s326 = sadd.s32 %s325, %s323
      %s327 = smul.addr %s321, 4
      %s328 = sadd.s32 %s326, %s327
      %s329 = smul.addr %s328, 4
      %s330 = scalar_lea.vmem %s2, %s329
      %p331 = scmp.lt.s32.totalorder %s20, 1
      %s332 = scalar_select %p331, %s20, 1
      %p333 = scmp.lt.s32.totalorder %s22, 0
      %s334 = scalar_select %p333, %s22, 0
      %s335 = sadd.s32 %s334, %s332
      %s336 = scalar_lea.vmem %s3, %s335
      %p337 = scmp.lt.s32.totalorder %s20, 1
      %s338 = scalar_select %p337, %s20, 1
      %p339 = scmp.lt.s32.totalorder %s21, 3
      %s340 = scalar_select %p339, %s21, 3
      %s341 = smul.addr %s338, 4
      %s342 = sadd.s32 %s340, %s341
      %s343 = smul.addr %s342, 4
      %s344 = scalar_lea.vmem %s4, %s343
      %p346 = scmp.eq.s32.totalorder %s22, 0
      // Predicated region
      $region37: #{transformer_forward.34} parent=35 // pred_check
        %p347 = pneg %p346
      $region38: #{transformer_forward.34} parent=35 // pred_check_branch
        %349 = sbr.rel (%p347) target = $region40
      $region39: #{transformer_forward.34} parent=35 // pred_region
        %vm350 = vcmask 7168
        %351 = vst.msk [vmem:[#allocation2] sm:$0xff] %vm350, -inf
        %352 = vst.msk [vmem:[#allocation3] sm:$0xff] %vm350, 0.0
        %vm353 = vcmask 64512
        %354 = vst.msk [vmem:[#allocation4] sm:$0xff] %vm353, 0.0
      $region40: #{transformer_forward.34} parent=35 // pred_fallthru
        _
      %v355 = vld [vmem:[%s308] sm:$0xf]
      %v356 = vld [vmem:[%s319] sm:$0xf]
      %v357 = vld [vmem:[%s330] sm:$0xf]
      %v358 = vld [vmem:[%s336] sm:$0x1]
      %vm359 = vcmp.gt.f32.partialorder %v358, 0.0
      %v360 = vlaneseq
      %v361 = vshrl.u32 %v360, 7
      %v362 = vlaneseq
      %v363 = vand.u32 %v362, 127
      %s364 = smul.u32 %s22, 8
      %v365 = vstv %s364
      %v366 = vadd.s32 %v363, %v365
      %vm367 = vcmp.le.s32.totalorder %v366, %v361
      %v368 = vsel %vm359, 1, 0
      %v369 = vperm.slane %v368, 0
      %vm370 = vcmp.eq.s32.totalorder %v369, 1
      %vm371 = vmand %vm370, %vm367
      %v372 = vsel %vm371, 0.0, -1e+09
      %vm373 = vcmask 64512
      %v375 = vsel %vm373, %v355, 0
      %vm377 = vcmask 1043456
      %v379 = vsel %vm377, %v356, 0
      %381 = vmatpush.bf16.msra.mxu0 0
      %382 = vmatpush.bf16.msra.mxu0 0
      %383 = vmatpush.bf16.msra.mxu0 0
      %384 = vmatpush.bf16.msra.mxu0 0
      %385 = vmatpush.bf16.msra.mxu0 0
      %386 = vmatpush.bf16.msra.mxu0 0
      %387 = vmatpush.bf16.msra.mxu0 0
      %388 = vmatpush.bf16.msra.mxu0 %v379
      %389 = vmatmul.bf16.gmra.mxu0 %v375
      %v390 = vpop.f32.mrf.mxu0
      %v391 = vadd.f32 %v372, %v390
      %v392 = vpop.f32.mrf.mxu0
      %393 = vdwg.mxu0
      %v394 = vld [vmem:[#allocation2] sm:$0xff]
      %v395 = vsel %vm373, %v391, -inf
      %396 = vmax.xlane.f32.xlu0 %v395
      %v397 = vpop.xlane.xlu0 %396
      %v398 = vmax.f32 %v394, %v397
      %v399 = vsub.f32 %v394, %v398
      %v400 = vmul.f32 %v399, 1.442695
      %v401 = vpow.pop %v400
      %403 = vset.pattern.permute.xlu0 0
      %404 = vperm.xlu0 %403, %v398
      %v405 = vpop.permute.xlu0 %404
      %v407 = vsub.f32 %v391, %v405
      %v408 = vmul.f32 %v407, 1.442695
      %v409 = vpow.pop %v408
      %v410 = vld [vmem:[#allocation3] sm:$0xff]
      %v411 = vmul.f32 %v401, %v410
      %v412 = vsel %vm373, %v409, 0.0
      %413 = vadd.xlane.f32.xlu0 %v412
      %v414 = vpop.xlane.xlu0 %413
      %v415 = vadd.f32 %v411, %v414
      %vm416 = vcmask 7168
      %417 = vst.msk [vmem:[#allocation3] sm:$0xff] %vm416, %v415
      %v418 = vld [vmem:[#allocation4] sm:$0xff]
      %420 = vset.pattern.permute.xlu0 0
      %421 = vperm.xlu0 %420, %v401
      %v422 = vpop.permute.xlu0 %421
      %v424 = vmul.f32 %v422, %v418
      %v425 = vpack.c.bf16 %v409, %v409
      %v427 = vsel %vm373, %v425, 0
      %v430 = vsel %vm377, %v357, 0
      %432 = vmatpush.bf16.msra.mxu0 0
      %433 = vmatpush.bf16.msra.mxu0 0
      %434 = vmatpush.bf16.msra.mxu0 0
      %435 = vmatpush.bf16.msra.mxu0 0
      %436 = vmatpush.bf16.msra.mxu0 0
      %437 = vmatpush.bf16.msra.mxu0 0
      %438 = vmatpush.bf16.msra.mxu0 0
      %439 = vmatpush.bf16.msra.mxu0 %v430
      %440 = vmatmul.bf16.gmra.mxu0 %v427
      %v441 = vpop.f32.mrf.mxu0
      %v442 = vadd.f32 0.0, %v441
      %v443 = vpop.f32.mrf.mxu0
      %444 = vdwg.mxu0
      %v445 = vadd.f32 %v424, %v442
      %446 = vst.msk [vmem:[#allocation4] sm:$0xff] %vm373, %v445
      %447 = vst.msk [vmem:[#allocation2] sm:$0xff] %vm416, %v398
      // Predicated region
      $region41: #{transformer_forward.34} parent=35 // pred_check
        %p448 = pneg %p346
      $region42: #{transformer_forward.34} parent=35 // pred_check_branch
        %450 = sbr.rel (%p448) target = $region44
      $region43: #{transformer_forward.34} parent=35 // pred_region
        %v451 = vld [vmem:[#allocation4] sm:$0xff]
        %v452 = vld [vmem:[#allocation3] sm:$0xff]
        %454 = vset.pattern.permute.xlu0 0
        %455 = vperm.xlu0 %454, %v452
        %v456 = vpop.permute.xlu0 %455
        %v458 = vrcp.pop %v456
        %v459 = vmul.f32 %v456, %v458
        %v460 = vsub.f32 1.0, %v459
        %v461 = vmul.f32 %v458, %v460
        %v462 = vadd.f32 %v458, %v461
        %vm463 = vweird.f32 %v456
        %vm464 = vweird.f32 %v458
        %vm465 = vmor %vm463, %vm464
        %v466 = vsel %vm465, %v458, %v462
        %v467 = vand.u32 2147483647, %v456
        %vm468 = vcmp.eq.f32.partialorder %v467, 8.507059e+37
        %v469 = vand.u32 %v456, 2147483648
        %v470 = vor.u32 1.1754944e-38, %v469
        %v471 = vsel %vm468, %v470, %v466
        %v472 = vmul.f32 %v451, %v471
        %v473 = vpack.c.bf16 %v472, %v472
        %vm474 = vcmask 60416
        %475 = vst.msk [vmem:[%s344] sm:$0xf] %vm474, %v473
      $region44: #{transformer_forward.34} parent=35 // pred_fallthru
        _
      %p476 = scmp.lt.s32.totalorder %s20, 1
      %s477 = scalar_select %p476, %s20, 1
      %p478 = scmp.lt.s32.totalorder %s21, 3
      %s479 = scalar_select %p478, %s21, 3
      %s480 = smul.addr %s477, 4
      %s481 = sadd.s32 %s479, %s480
      %s482 = smul.addr %s481, 4
      %s483 = scalar_lea.vmem %s4, %s482
      // Predicated region
      $region45: #{transformer_forward.34} parent=35 // pred_check
        %p484 = pneg %p170
      $region46: #{transformer_forward.34} parent=35 // pred_check_branch
        %486 = sbr.rel (%p484) target = $region48
      $region47: #{transformer_forward.34} parent=35 // pred_region
        _
      $region48: #{transformer_forward.34} parent=35 // pred_fallthru
        _
    $region36: #{transformer_forward.34} parent=5 // pred_fallthru
      _
    %p487 = scmp.le.s32.totalorder 2, %s10
    // Predicated region
    $region49: #{transformer_forward.34} parent=5 // pred_check
      %p488 = pneg %p487
    $region50: #{transformer_forward.34} parent=5 // pred_check_branch
      %490 = sbr.rel (%p488) target = $region52
    $region51: #{transformer_forward.34} parent=5 // pred_region
      %s491 = ssub.s32 %s10, 2
      // Predicated region
      $region53: #{transformer_forward.34} parent=51 // pred_check
        %p492 = pneg %p176
      $region54: #{transformer_forward.34} parent=51 // pred_check_branch
        %494 = sbr.rel (%p492) target = $region56
      $region55: #{transformer_forward.34} parent=51 // pred_region
        %p495 = scmp.lt.s32.totalorder %s23, 1
        %s496 = scalar_select %p495, %s23, 1
        %p497 = scmp.lt.s32.totalorder %s24, 3
        %s498 = scalar_select %p497, %s24, 3
        %s499 = smul.addr %s496, 4
        %s500 = sadd.s32 %s498, %s499
        %s501 = smul.addr %s500, 4
        %s502 = scalar_lea.vmem %s4, %s501
      $region56: #{transformer_forward.34} parent=51 // pred_fallthru
        _
    $region52: #{transformer_forward.34} parent=5 // pred_fallthru
      _
  $region6: #{transformer_forward.34} parent=0 // loop_footer
    %s14 = sadd.s32 1, %s10
  $region7: #{transformer_forward.34} parent=0 // loop_footer_branch
    %9 = sbr.rel target = $region3
  $region8: #{transformer_forward.34} parent=0 // loop_exit
    _

// kernel: transformer_forward.35
$region0: #{transformer_forward.35}
  #allocation0 [shape = 'u32[]', space=smem, size = 0x4, offset = 0x4, fixed_abs, tag = 'smem constant byte address 0x4 - core index']
  #allocation1 [shape = 'u32[72,128]{1,0:T(1,128)}', space=vmem, size = 0x9000, scoped, tag = 'internal scratch']
  #allocation2 [shape = 'f32[16,32]{1,0:T(8,128)}', space=vmem, size = 0x2000, scoped, tag = 'scratch operand']
  %s0 = inlined_call_operand.vmem [shape: bf16[16,32], index: 0, kind: input, shape index: {}]
  %s1 = inlined_call_operand.vmem [shape: bf16[32,32], index: 1, kind: input, shape index: {}]
  %s2 = inlined_call_operand.vmem [shape: f32[1,32], index: 2, kind: input, shape index: {}]
  %s3 = inlined_call_operand.vmem [shape: bf16[16,32], index: 3, kind: input, shape index: {}]
  %s4 = inlined_call_operand.vmem [shape: f32[1,32], index: 4, kind: input, shape index: {}]
  %s5 = inlined_call_operand.vmem [shape: f32[1,32], index: 5, kind: input, shape index: {}]
  %s6 = inlined_call_operand.vmem [shape: bf16[16,32], index: 6, kind: output, shape index: {}]
  %s7 = sld [smem:[#allocation0]]
  $region42: #{transformer_forward.35} parent=0
    _
  %s9 = ssub.s32 1, %s7
  %s10 = scalar_select 0, %s9, %s7
  // Predicated region
  $region2: #{transformer_forward.35} parent=0 // pred_check
    _
  $region3: #{transformer_forward.35} parent=0 // pred_check_branch
    %12 = sbr.rel (0) target = $region5
  $region4: #{transformer_forward.35} parent=0 // pred_region
    _
  $region5: #{transformer_forward.35} parent=0 // pred_fallthru
    _
  // Predicated region
  $region6: #{transformer_forward.35} parent=0 // pred_check
    _
  $region7: #{transformer_forward.35} parent=0 // pred_check_branch
    %14 = sbr.rel (0) target = $region9
  $region8: #{transformer_forward.35} parent=0 // pred_region
    _
  $region9: #{transformer_forward.35} parent=0 // pred_fallthru
    _
  // Predicated region
  $region10: #{transformer_forward.35} parent=0 // pred_check
    _
  $region11: #{transformer_forward.35} parent=0 // pred_check_branch
    %16 = sbr.rel (0) target = $region13
  $region12: #{transformer_forward.35} parent=0 // pred_region
    _
  $region13: #{transformer_forward.35} parent=0 // pred_fallthru
    _
  // Predicated region
  $region14: #{transformer_forward.35} parent=0 // pred_check
    _
  $region15: #{transformer_forward.35} parent=0 // pred_check_branch
    %18 = sbr.rel (0) target = $region17
  $region16: #{transformer_forward.35} parent=0 // pred_region
    _
  $region17: #{transformer_forward.35} parent=0 // pred_fallthru
    _
  // Predicated region
  $region18: #{transformer_forward.35} parent=0 // pred_check
    _
  $region19: #{transformer_forward.35} parent=0 // pred_check_branch
    %20 = sbr.rel (0) target = $region21
  $region20: #{transformer_forward.35} parent=0 // pred_region
    _
  $region21: #{transformer_forward.35} parent=0 // pred_fallthru
    _
  // Predicated region
  $region22: #{transformer_forward.35} parent=0 // pred_check
    _
  $region23: #{transformer_forward.35} parent=0 // pred_check_branch
    %22 = sbr.rel (0) target = $region25
  $region24: #{transformer_forward.35} parent=0 // pred_region
    _
  $region25: #{transformer_forward.35} parent=0 // pred_fallthru
    _
  %p24 = scmp.eq.s32.totalorder 0, 0
  // Predicated region
  $region26: #{transformer_forward.35} parent=0 // pred_check
    %p25 = pneg %p24
  $region27: #{transformer_forward.35} parent=0 // pred_check_branch
    %27 = sbr.rel (%p25) target = $region29
  $region28: #{transformer_forward.35} parent=0 // pred_region
    %vm28 = vcmask 261120
    %29 = vst.msk [vmem:[#allocation2] sm:$0xff] %vm28, 0.0
    %30 = vst.msk [vmem:[#allocation2 + $0x8] sm:$0xff] %vm28, 0.0
  $region29: #{transformer_forward.35} parent=0 // pred_fallthru
    _
  %v31 = vld [vmem:[#allocation2] sm:$0xff]
  %v32 = vld [vmem:[#allocation2 + $0x8] sm:$0xff]
  %v33 = vld [vmem:[%s0] sm:$0xf]
  %v34 = vld [vmem:[%s0 + $0x4] sm:$0xf]
  %v35 = vld [vmem:[%s1] sm:$0xf]
  %v36 = vld [vmem:[%s1 + $0x4] sm:$0xf]
  %v37 = vld [vmem:[%s1 + $0x8] sm:$0xf]
  %v38 = vld [vmem:[%s1 + $0xc] sm:$0xf]
  %v41 = vunpack.c.l.b16 %v33
  %v42 = vunpack.c.l.b16 %v34
  %v43 = vpack.c.b16 %v42, %v41
  %v48 = vunpack.c.l.b16 %v35
  %v49 = vunpack.c.l.b16 %v36
  %v50 = vunpack.c.l.b16 %v37
  %v51 = vunpack.c.l.b16 %v38
  %v52 = vpack.c.b16 %v49, %v48
  %v53 = vpack.c.b16 %v51, %v50
  %vm56 = vcmask 261120
  %v58 = vsel %vm56, %v43, 0
  %60 = vmatpush.bf16.msra.mxu0 0
  %61 = vmatpush.bf16.msra.mxu0 0
  %62 = vmatpush.bf16.msra.mxu0 0
  %63 = vmatpush.bf16.msra.mxu0 0
  %64 = vmatpush.bf16.msra.mxu0 0
  %65 = vmatpush.bf16.msra.mxu0 0
  %66 = vmatpush.bf16.msra.mxu0 %v53
  %67 = vmatpush.bf16.msra.mxu0 %v52
  %68 = vmatmul.bf16.gmra.mxu0 %v58
  %v69 = vpop.f32.mrf.mxu0
  %v70 = vadd.f32 0.0, %v69
  %v71 = vpop.f32.mrf.mxu0
  %v72 = vadd.f32 0.0, %v71
  %73 = vdwg.mxu0
  %v74 = vadd.f32 %v31, %v70
  %v75 = vadd.f32 %v32, %v72
  %76 = vst.msk [vmem:[#allocation2] sm:$0xff] %vm56, %v74
  %77 = vst.msk [vmem:[#allocation2 + $0x8] sm:$0xff] %vm56, %v75
  // Predicated region
  $region30: #{transformer_forward.35} parent=0 // pred_check
    %p78 = pneg %p24
  $region31: #{transformer_forward.35} parent=0 // pred_check_branch
    %80 = sbr.rel (%p78) target = $region33
  $region32: #{transformer_forward.35} parent=0 // pred_region
    %v81 = vld [vmem:[#allocation2] sm:$0xff]
    %v82 = vld [vmem:[#allocation2 + $0x8] sm:$0xff]
    %v83 = vld [vmem:[%s2] sm:$0x1]
    %v85 = vperm.slane %v83, 0
    %v87 = vadd.f32 %v81, %v85
    %v88 = vadd.f32 %v82, %v85
    %v89 = vld [vmem:[%s3] sm:$0xf]
    %v90 = vld [vmem:[%s3 + $0x4] sm:$0xf]
    %v91 = vunpack.c.l.bf16 %v89
    %v92 = vunpack.c.l.bf16 %v90
    %v93 = vadd.f32 %v87, %v91
    %v94 = vadd.f32 %v88, %v92
    %v95 = vsel %vm56, %v93, 0.0
    %96 = vadd.xlane.f32.xlu0 %v95
    %v97 = vpop.xlane.xlu0 %96
    %v98 = vsel %vm56, %v94, 0.0
    %99 = vadd.xlane.f32.xlu0 %v98
    %v100 = vpop.xlane.xlu0 %99
    %v101 = vrcp.pop 32.0
    %v102 = vmul.f32 32.0, %v101
    %v103 = vsub.f32 1.0, %v102
    %v104 = vmul.f32 %v101, %v103
    %v105 = vadd.f32 %v101, %v104
    %vm106 = vweird.f32 %v101
    %v107 = vsel %vm106, %v101, %v105
    %v108 = vmul.f32 %v97, %v107
    %v109 = vmul.f32 %v100, %v107
    %v110 = vsub.f32 %v93, %v108
    %v111 = vsub.f32 %v94, %v109
    %v112 = vmul.f32 %v110, %v110
    %v113 = vmul.f32 %v111, %v111
    %v114 = vsel %vm56, %v112, 0.0
    %115 = vadd.xlane.f32.xlu0 %v114
    %v116 = vpop.xlane.xlu0 %115
    %v117 = vsel %vm56, %v113, 0.0
    %118 = vadd.xlane.f32.xlu0 %v117
    %v119 = vpop.xlane.xlu0 %118
    %v120 = vmul.f32 %v116, %v107
    %v121 = vmul.f32 %v119, %v107
    %v122 = vadd.f32 %v120, 1e-05
    %v123 = vadd.f32 %v121, 1e-05
    %v124 = vrsqrt.pop %v122
    %v125 = vmul.f32 %v124, %v122
    %v126 = vmul.f32 %v125, %v124
    %v127 = vmul.f32 0.5, %v126
    %v128 = vsub.f32 1.5, %v127
    %v129 = vmul.f32 %v124, %v128
    %vm130 = vweird.f32 %v122
    %vm131 = vweird.f32 %v124
    %vm132 = vmor %vm130, %vm131
    %v133 = vsel %vm132, %v124, %v129
    %v134 = vrsqrt.pop %v123
    %v135 = vmul.f32 %v134, %v123
    %v136 = vmul.f32 %v135, %v134
    %v137 = vmul.f32 0.5, %v136
    %v138 = vsub.f32 1.5, %v137
    %v139 = vmul.f32 %v134, %v138
    %vm140 = vweird.f32 %v123
    %vm141 = vweird.f32 %v134
    %vm142 = vmor %vm140, %vm141
    %v143 = vsel %vm142, %v134, %v139
    %v144 = vmul.f32 %v110, %v133
    %v145 = vmul.f32 %v111, %v143
    %v146 = vld [vmem:[%s4] sm:$0x1]
    %v148 = vperm.slane %v146, 0
    %v150 = vmul.f32 %v144, %v148
    %v151 = vmul.f32 %v145, %v148
    %v152 = vld [vmem:[%s5] sm:$0x1]
    %v154 = vperm.slane %v152, 0
    %v156 = vadd.f32 %v150, %v154
    %v157 = vadd.f32 %v151, %v154
    %v158 = vpack.c.bf16 %v156, %v156
    %v159 = vpack.c.bf16 %v157, %v157
    %vm160 = vcmask 257024
    %161 = vst.msk [vmem:[%s6] sm:$0xf] %vm160, %v158
    %162 = vst.msk [vmem:[%s6 + $0x4] sm:$0xf] %vm160, %v159
  $region33: #{transformer_forward.35} parent=0 // pred_fallthru
    _
  // Predicated region
  $region34: #{transformer_forward.35} parent=0 // pred_check
    _
  $region35: #{transformer_forward.35} parent=0 // pred_check_branch
    %164 = sbr.rel (0) target = $region37
  $region36: #{transformer_forward.35} parent=0 // pred_region
    _
  $region37: #{transformer_forward.35} parent=0 // pred_fallthru
    _
  // Predicated region
  $region38: #{transformer_forward.35} parent=0 // pred_check
    _
  $region39: #{transformer_forward.35} parent=0 // pred_check_branch
    %166 = sbr.rel (0) target = $region41
  $region40: #{transformer_forward.35} parent=0 // pred_region
    _
  $region41: #{transformer_forward.35} parent=0 // pred_fallthru
    _

// kernel: transformer_forward.37
$region0: #{transformer_forward.37}
  #allocation0 [shape = 'u32[]', space=smem, size = 0x4, offset = 0x4, fixed_abs, tag = 'smem constant byte address 0x4 - core index']
  #allocation1 [shape = 'u32[72,128]{1,0:T(1,128)}', space=vmem, size = 0x9000, scoped, tag = 'internal scratch']
  #allocation2 [shape = 'f32[16,64]{1,0:T(8,128)}', space=vmem, size = 0x2000, scoped, tag = 'scratch operand']
  %s0 = inlined_call_operand.vmem [shape: bf16[16,32], index: 0, kind: input, shape index: {}]
  %s1 = inlined_call_operand.vmem [shape: bf16[32,64], index: 1, kind: input, shape index: {}]
  %s2 = inlined_call_operand.vmem [shape: f32[1,64], index: 2, kind: input, shape index: {}]
  %s3 = inlined_call_operand.vmem [shape: bf16[16,64], index: 3, kind: output, shape index: {}]
  %s4 = sld [smem:[#allocation0]]
  $region30: #{transformer_forward.37} parent=0
    _
  %s6 = ssub.s32 1, %s4
  %s7 = scalar_select 0, %s6, %s4
  // Predicated region
  $region2: #{transformer_forward.37} parent=0 // pred_check
    _
  $region3: #{transformer_forward.37} parent=0 // pred_check_branch
    %9 = sbr.rel (0) target = $region5
  $region4: #{transformer_forward.37} parent=0 // pred_region
    _
  $region5: #{transformer_forward.37} parent=0 // pred_fallthru
    _
  // Predicated region
  $region6: #{transformer_forward.37} parent=0 // pred_check
    _
  $region7: #{transformer_forward.37} parent=0 // pred_check_branch
    %11 = sbr.rel (0) target = $region9
  $region8: #{transformer_forward.37} parent=0 // pred_region
    _
  $region9: #{transformer_forward.37} parent=0 // pred_fallthru
    _
  // Predicated region
  $region10: #{transformer_forward.37} parent=0 // pred_check
    _
  $region11: #{transformer_forward.37} parent=0 // pred_check_branch
    %13 = sbr.rel (0) target = $region13
  $region12: #{transformer_forward.37} parent=0 // pred_region
    _
  $region13: #{transformer_forward.37} parent=0 // pred_fallthru
    _
  %p15 = scmp.eq.s32.totalorder 0, 0
  // Predicated region
  $region14: #{transformer_forward.37} parent=0 // pred_check
    %p16 = pneg %p15
  $region15: #{transformer_forward.37} parent=0 // pred_check_branch
    %18 = sbr.rel (%p16) target = $region17
  $region16: #{transformer_forward.37} parent=0 // pred_region
    %vm19 = vcmask 523264
    %20 = vst.msk [vmem:[#allocation2] sm:$0xff] %vm19, 0.0
    %21 = vst.msk [vmem:[#allocation2 + $0x8] sm:$0xff] %vm19, 0.0
  $region17: #{transformer_forward.37} parent=0 // pred_fallthru
    _
  %v22 = vld [vmem:[#allocation2] sm:$0xff]
  %v23 = vld [vmem:[#allocation2 + $0x8] sm:$0xff]
  %v24 = vld [vmem:[%s0] sm:$0xf]
  %v25 = vld [vmem:[%s0 + $0x4] sm:$0xf]
  %v26 = vld [vmem:[%s1] sm:$0xf]
  %v27 = vld [vmem:[%s1 + $0x4] sm:$0xf]
  %v28 = vld [vmem:[%s1 + $0x8] sm:$0xf]
  %v29 = vld [vmem:[%s1 + $0xc] sm:$0xf]
  %v32 = vunpack.c.l.b16 %v24
  %v33 = vunpack.c.l.b16 %v25
  %v34 = vpack.c.b16 %v33, %v32
  %v39 = vunpack.c.l.b16 %v26
  %v40 = vunpack.c.l.b16 %v27
  %v41 = vunpack.c.l.b16 %v28
  %v42 = vunpack.c.l.b16 %v29
  %v43 = vpack.c.b16 %v40, %v39
  %v44 = vpack.c.b16 %v42, %v41
  %vm47 = vcmask 261120
  %v49 = vsel %vm47, %v34, 0
  %51 = vmatpush.bf16.msra.mxu0 0
  %52 = vmatpush.bf16.msra.mxu0 0
  %53 = vmatpush.bf16.msra.mxu0 0
  %54 = vmatpush.bf16.msra.mxu0 0
  %55 = vmatpush.bf16.msra.mxu0 0
  %56 = vmatpush.bf16.msra.mxu0 0
  %57 = vmatpush.bf16.msra.mxu0 %v44
  %58 = vmatpush.bf16.msra.mxu0 %v43
  %59 = vmatmul.bf16.gmra.mxu0 %v49
  %v60 = vpop.f32.mrf.mxu0
  %v61 = vadd.f32 0.0, %v60
  %v62 = vpop.f32.mrf.mxu0
  %v63 = vadd.f32 0.0, %v62
  %64 = vdwg.mxu0
  %v65 = vadd.f32 %v22, %v61
  %v66 = vadd.f32 %v23, %v63
  %vm67 = vcmask 523264
  %68 = vst.msk [vmem:[#allocation2] sm:$0xff] %vm67, %v65
  %69 = vst.msk [vmem:[#allocation2 + $0x8] sm:$0xff] %vm67, %v66
  // Predicated region
  $region18: #{transformer_forward.37} parent=0 // pred_check
    %p70 = pneg %p15
  $region19: #{transformer_forward.37} parent=0 // pred_check_branch
    %72 = sbr.rel (%p70) target = $region21
  $region20: #{transformer_forward.37} parent=0 // pred_region
    %v73 = vld [vmem:[#allocation2] sm:$0xff]
    %v74 = vld [vmem:[#allocation2 + $0x8] sm:$0xff]
    %v75 = vld [vmem:[%s2] sm:$0x1]
    %v77 = vperm.slane %v75, 0
    %v79 = vadd.f32 %v73, %v77
    %v80 = vadd.f32 %v74, %v77
    %v81 = vpack.c.bf16 %v79, %v79
    %v82 = vpack.c.bf16 %v80, %v80
    %vm83 = vcmask 519168
    %84 = vst.msk [vmem:[%s3] sm:$0xf] %vm83, %v81
    %85 = vst.msk [vmem:[%s3 + $0x4] sm:$0xf] %vm83, %v82
  $region21: #{transformer_forward.37} parent=0 // pred_fallthru
    _
  // Predicated region
  $region22: #{transformer_forward.37} parent=0 // pred_check
    _
  $region23: #{transformer_forward.37} parent=0 // pred_check_branch
    %87 = sbr.rel (0) target = $region25
  $region24: #{transformer_forward.37} parent=0 // pred_region
    _
  $region25: #{transformer_forward.37} parent=0 // pred_fallthru
    _
  // Predicated region
  $region26: #{transformer_forward.37} parent=0 // pred_check
    _
  $region27: #{transformer_forward.37} parent=0 // pred_check_branch
    %89 = sbr.rel (0) target = $region29
  $region28: #{transformer_forward.37} parent=0 // pred_region
    _
  $region29: #{transformer_forward.37} parent=0 // pred_fallthru
    _

// kernel: transformer_forward.26
$region0: #{transformer_forward.26}
  #allocation0 [shape = 'u32[]', space=smem, size = 0x4, offset = 0x4, fixed_abs, tag = 'smem constant byte address 0x4 - core index']
  #allocation1 [shape = 'u32[72,128]{1,0:T(1,128)}', space=vmem, size = 0x9000, scoped, tag = 'internal scratch']
  #allocation2 [shape = 'f32[8,1]{1,0:T(8,128)}', space=vmem, size = 0x1000, scoped, tag = 'scratch operand']
  #allocation3 [shape = 'f32[8,1]{1,0:T(8,128)}', space=vmem, size = 0x1000, scoped, tag = 'scratch operand']
  #allocation4 [shape = 'f32[8,8]{1,0:T(8,128)}', space=vmem, size = 0x1000, scoped, tag = 'scratch operand']
  %s0 = inlined_call_operand.vmem [shape: bf16[2,4,8,8], index: 0, kind: input, shape index: {}]
  %s1 = inlined_call_operand.vmem [shape: bf16[2,4,8,8], index: 1, kind: input, shape index: {}]
  %s2 = inlined_call_operand.vmem [shape: bf16[2,4,8,8], index: 2, kind: input, shape index: {}]
  %s3 = inlined_call_operand.vmem [shape: f32[2,1,8], index: 3, kind: input, shape index: {}]
  %s4 = inlined_call_operand.vmem [shape: bf16[2,4,8,8], index: 4, kind: output, shape index: {}]
  %s5 = sld [smem:[#allocation0]]
  $region57: #{transformer_forward.26} parent=0
    _
  %s7 = ssub.s32 1, %s5
  %s8 = scalar_select 0, %s7, %s5
  loop: start=0, step=1, limit=10
  $region2: #{transformer_forward.26} parent=0 // loop_pre_header
    _
  $region3: #{transformer_forward.26} parent=0 // loop_header
    %s10 = sphi 0, %s14
    %p11 = scmp.ge.s32.totalorder %s10, 10
    %s17 = sphi 0, %s36
    %s18 = sphi 0, %s32
    %s19 = sphi 0, %s28
    %s20 = sphi 0, %s17
    %s21 = sphi 0, %s18
    %s22 = sphi 0, %s19
    %s23 = sphi 0, %s20
    %s24 = sphi 0, %s21
    %s25 = sphi 0, %s22
    %s41 = sphi 0, %s43
    %s44 = sphi 0, %s41
    %s45 = sphi 0, %s44
    %s61 = sphi 0, %s45
    %s71 = sphi 0, %s73
    %s74 = sphi 0, %s71
    %s75 = sphi 0, %s74
    %s91 = sphi 0, %s75
    %s101 = sphi 0, %s103
    %s104 = sphi 0, %s101
    %s105 = sphi 0, %s104
    %s121 = sphi 0, %s105
    %s129 = sphi 0, %s131
    %s132 = sphi 0, %s129
    %s133 = sphi 0, %s132
    %s149 = sphi 0, %s133
    %s157 = sphi 0, %s159
    %s160 = sphi 0, %s157
    %s161 = sphi 0, %s160
    %s177 = sphi 0, %s161
  $region4: #{transformer_forward.26} parent=0 // loop_header_branch
    %13 = sbr.rel (%p11) target = $region8
  $region5: #{transformer_forward.26} parent=0 // loop_body
    %s15 = ssub.s32 %s10, 1
    %s16 = ssub.s32 %s10, 2
    %s26 = sadd.s32 1, %s19
    %p27 = scmp.ge.s32.totalorder %s26, 1
    %s28 = scalar_select %p27, 0, %s26
    %s29 = sadd.s32 1, %s18
    %s30 = scalar_select %p27, %s29, %s18
    %p31 = scmp.ge.s32.totalorder %s30, 4
    %s32 = scalar_select %p31, 0, %s30
    %s33 = sadd.s32 1, %s17
    %s34 = scalar_select %p31, %s33, %s17
    %p35 = scmp.ge.s32.totalorder %s34, 2
    %s36 = scalar_select %p35, 0, %s34
    %s37 = ssub.s32 %s17, %s36
    %s38 = ssub.s32 %s18, %s32
    %s39 = sor.u32 %s37, %s38
    %p40 = scmp.eq.s32.totalorder %s39, 0
    %s42 = sadd.s32 %s41, 1
    %s43 = scalar_select %p40, %s41, %s42
    %p46 = pneg %p40
    %p47 = scmp.eq.s32.totalorder %s10, 7
    %p48 = por %p46, %p47
    %p49 = scmp.ne.s32.totalorder %s41, %s44
    %p50 = scmp.eq.s32.totalorder %s10, 0
    %p51 = por %p49, %p50
    %p52 = scmp.ne.s32.totalorder %s41, %s44
    %p53 = scmp.eq.s32.totalorder %s15, 7
    %p54 = por %p52, %p53
    %p55 = scmp.ne.s32.totalorder %s44, %s45
    %p56 = scmp.eq.s32.totalorder %s15, 0
    %p57 = por %p55, %p56
    %p58 = scmp.ne.s32.totalorder %s44, %s45
    %p59 = scmp.eq.s32.totalorder %s16, 7
    %p60 = por %p58, %p59
    %p62 = scmp.ne.s32.totalorder %s45, %s61
    %p63 = scmp.eq.s32.totalorder %s16, 0
    %p64 = por %p62, %p63
    %s65 = ssub.s32 %s17, %s36
    %s66 = ssub.s32 %s18, %s32
    %s67 = sor.u32 %s65, %s66
    %s68 = ssub.s32 %s19, %s28
    %s69 = sor.u32 %s67, %s68
    %p70 = scmp.eq.s32.totalorder %s69, 0
    %s72 = sadd.s32 %s71, 1
    %s73 = scalar_select %p70, %s71, %s72
    %p76 = pneg %p70
    %p77 = scmp.eq.s32.totalorder %s10, 7
    %p78 = por %p76, %p77
    %p79 = scmp.ne.s32.totalorder %s71, %s74
    %p80 = scmp.eq.s32.totalorder %s10, 0
    %p81 = por %p79, %p80
    %p82 = scmp.ne.s32.totalorder %s71, %s74
    %p83 = scmp.eq.s32.totalorder %s15, 7
    %p84 = por %p82, %p83
    %p85 = scmp.ne.s32.totalorder %s74, %s75
    %p86 = scmp.eq.s32.totalorder %s15, 0
    %p87 = por %p85, %p86
    %p88 = scmp.ne.s32.totalorder %s74, %s75
    %p89 = scmp.eq.s32.totalorder %s16, 7
    %p90 = por %p88, %p89
    %p92 = scmp.ne.s32.totalorder %s75, %s91
    %p93 = scmp.eq.s32.totalorder %s16, 0
    %p94 = por %p92, %p93
    %s95 = ssub.s32 %s17, %s36
    %s96 = ssub.s32 %s18, %s32
    %s97 = sor.u32 %s95, %s96
    %s98 = ssub.s32 %s19, %s28
    %s99 = sor.u32 %s97, %s98
    %p100 = scmp.eq.s32.totalorder %s99, 0
    %s102 = sadd.s32 %s101, 1
    %s103 = scalar_select %p100, %s101, %s102
    %p106 = pneg %p100
    %p107 = scmp.eq.s32.totalorder %s10, 7
    %p108 = por %p106, %p107
    %p109 = scmp.ne.s32.totalorder %s101, %s104
    %p110 = scmp.eq.s32.totalorder %s10, 0
    %p111 = por %p109, %p110
    %p112 = scmp.ne.s32.totalorder %s101, %s104
    %p113 = scmp.eq.s32.totalorder %s15, 7
    %p114 = por %p112, %p113
    %p115 = scmp.ne.s32.totalorder %s104, %s105
    %p116 = scmp.eq.s32.totalorder %s15, 0
    %p117 = por %p115, %p116
    %p118 = scmp.ne.s32.totalorder %s104, %s105
    %p119 = scmp.eq.s32.totalorder %s16, 7
    %p120 = por %p118, %p119
    %p122 = scmp.ne.s32.totalorder %s105, %s121
    %p123 = scmp.eq.s32.totalorder %s16, 0
    %p124 = por %p122, %p123
    %s125 = ssub.s32 %s17, %s36
    %s126 = ssub.s32 %s19, %s28
    %s127 = sor.u32 %s125, %s126
    %p128 = scmp.eq.s32.totalorder %s127, 0
    %s130 = sadd.s32 %s129, 1
    %s131 = scalar_select %p128, %s129, %s130
    %p134 = pneg %p128
    %p135 = scmp.eq.s32.totalorder %s10, 7
    %p136 = por %p134, %p135
    %p137 = scmp.ne.s32.totalorder %s129, %s132
    %p138 = scmp.eq.s32.totalorder %s10, 0
    %p139 = por %p137, %p138
    %p140 = scmp.ne.s32.totalorder %s129, %s132
    %p141 = scmp.eq.s32.totalorder %s15, 7
    %p142 = por %p140, %p141
    %p143 = scmp.ne.s32.totalorder %s132, %s133
    %p144 = scmp.eq.s32.totalorder %s15, 0
    %p145 = por %p143, %p144
    %p146 = scmp.ne.s32.totalorder %s132, %s133
    %p147 = scmp.eq.s32.totalorder %s16, 7
    %p148 = por %p146, %p147
    %p150 = scmp.ne.s32.totalorder %s133, %s149
    %p151 = scmp.eq.s32.totalorder %s16, 0
    %p152 = por %p150, %p151
    %s153 = ssub.s32 %s17, %s36
    %s154 = ssub.s32 %s18, %s32
    %s155 = sor.u32 %s153, %s154
    %p156 = scmp.eq.s32.totalorder %s155, 0
    %s158 = sadd.s32 %s157, 1
    %s159 = scalar_select %p156, %s157, %s158
    %p162 = pneg %p156
    %p163 = scmp.eq.s32.totalorder %s10, 7
    %p164 = por %p162, %p163
    %p165 = scmp.ne.s32.totalorder %s157, %s160
    %p166 = scmp.eq.s32.totalorder %s10, 0
    %p167 = por %p165, %p166
    %p168 = scmp.ne.s32.totalorder %s157, %s160
    %p169 = scmp.eq.s32.totalorder %s15, 7
    %p170 = por %p168, %p169
    %p171 = scmp.ne.s32.totalorder %s160, %s161
    %p172 = scmp.eq.s32.totalorder %s15, 0
    %p173 = por %p171, %p172
    %p174 = scmp.ne.s32.totalorder %s160, %s161
    %p175 = scmp.eq.s32.totalorder %s16, 7
    %p176 = por %p174, %p175
    %p178 = scmp.ne.s32.totalorder %s161, %s177
    %p179 = scmp.eq.s32.totalorder %s16, 0
    %p180 = por %p178, %p179
    %p181 = scmp.le.s32.totalorder 1, %s10
    %p182 = scmp.lt.s32.totalorder %s10, 9
    %p183 = pnand %p181, %p182
    %p184 = pneg %p183
    // Predicated region
    $region9: #{transformer_forward.26} parent=5 // pred_check
      _
    $region10: #{transformer_forward.26} parent=5 // pred_check_branch
      %186 = sbr.rel (%p183) target = $region12
    $region11: #{transformer_forward.26} parent=5 // pred_region
      %s187 = ssub.s32 %s10, 1
    $region12: #{transformer_forward.26} parent=5 // pred_fallthru
      _
    %p188 = scmp.lt.s32.totalorder %s10, 8
    // Predicated region
    $region13: #{transformer_forward.26} parent=5 // pred_check
      %p189 = pneg %p188
    $region14: #{transformer_forward.26} parent=5 // pred_check_branch
      %191 = sbr.rel (%p189) target = $region16
    $region15: #{transformer_forward.26} parent=5 // pred_region
      // Predicated region
      $region17: #{transformer_forward.26} parent=15 // pred_check
        %p192 = pneg %p51
      $region18: #{transformer_forward.26} parent=15 // pred_check_branch
        %194 = sbr.rel (%p192) target = $region20
      $region19: #{transformer_forward.26} parent=15 // pred_region
        %p195 = scmp.lt.s32.totalorder %s17, 1
        %s196 = scalar_select %p195, %s17, 1
        %p197 = scmp.lt.s32.totalorder %s18, 3
        %s198 = scalar_select %p197, %s18, 3
        %s199 = smul.addr %s196, 4
        %s200 = sadd.s32 %s198, %s199
        %s201 = smul.addr %s200, 4
        %s202 = scalar_lea.vmem %s0, %s201
      $region20: #{transformer_forward.26} parent=15 // pred_fallthru
        _
      // Predicated region
      $region21: #{transformer_forward.26} parent=15 // pred_check
        %p203 = pneg %p81
      $region22: #{transformer_forward.26} parent=15 // pred_check_branch
        %205 = sbr.rel (%p203) target = $region24
      $region23: #{transformer_forward.26} parent=15 // pred_region
        %p206 = scmp.lt.s32.totalorder %s17, 1
        %s207 = scalar_select %p206, %s17, 1
        %p208 = scmp.lt.s32.totalorder %s18, 3
        %s209 = scalar_select %p208, %s18, 3
        %p210 = scmp.lt.s32.totalorder %s19, 0
        %s211 = scalar_select %p210, %s19, 0
        %s212 = sadd.s32 %s211, %s209
        %s213 = smul.addr %s207, 4
        %s214 = sadd.s32 %s212, %s213
        %s215 = smul.addr %s214, 4
        %s216 = scalar_lea.vmem %s1, %s215
      $region24: #{transformer_forward.26} parent=15 // pred_fallthru
        _
      // Predicated region
      $region25: #{transformer_forward.26} parent=15 // pred_check
        %p217 = pneg %p111
      $region26: #{transformer_forward.26} parent=15 // pred_check_branch
        %219 = sbr.rel (%p217) target = $region28
      $region27: #{transformer_forward.26} parent=15 // pred_region
        %p220 = scmp.lt.s32.totalorder %s17, 1
        %s221 = scalar_select %p220, %s17, 1
        %p222 = scmp.lt.s32.totalorder %s18, 3
        %s223 = scalar_select %p222, %s18, 3
        %p224 = scmp.lt.s32.totalorder %s19, 0
        %s225 = scalar_select %p224, %s19, 0
        %s226 = sadd.s32 %s225, %s223
        %s227 = smul.addr %s221, 4
        %s228 = sadd.s32 %s226, %s227
        %s229 = smul.addr %s228, 4
        %s230 = scalar_lea.vmem %s2, %s229
      $region28: #{transformer_forward.26} parent=15 // pred_fallthru
        _
      // Predicated region
      $region29: #{transformer_forward.26} parent=15 // pred_check
        %p231 = pneg %p139
      $region30: #{transformer_forward.26} parent=15 // pred_check_branch
        %233 = sbr.rel (%p231) target = $region32
      $region31: #{transformer_forward.26} parent=15 // pred_region
        %p234 = scmp.lt.s32.totalorder %s17, 1
        %s235 = scalar_select %p234, %s17, 1
        %p236 = scmp.lt.s32.totalorder %s19, 0
        %s237 = scalar_select %p236, %s19, 0
        %s238 = sadd.s32 %s237, %s235
        %s239 = scalar_lea.vmem %s3, %s238
      $region32: #{transformer_forward.26} parent=15 // pred_fallthru
        _
    $region16: #{transformer_forward.26} parent=5 // pred_fallthru
      _
    %p240 = scmp.le.s32.totalorder 1, %s10
    %p241 = scmp.lt.s32.totalorder %s10, 9
    %p242 = pnand %p240, %p241
    %p243 = pneg %p242
    // Predicated region
    $region33: #{transformer_forward.26} parent=5 // pred_check
      _
    $region34: #{transformer_forward.26} parent=5 // pred_check_branch
      %245 = sbr.rel (%p242) target = $region36
    $region35: #{transformer_forward.26} parent=5 // pred_region
      %s246 = ssub.s32 %s10, 1
      %p247 = scmp.lt.s32.totalorder %s20, 1
      %s248 = scalar_select %p247, %s20, 1
      %p249 = scmp.lt.s32.totalorder %s21, 3
      %s250 = scalar_select %p249, %s21, 3
      %s251 = smul.addr %s248, 4
      %s252 = sadd.s32 %s250, %s251
      %s253 = smul.addr %s252, 4
      %s254 = scalar_lea.vmem %s0, %s253
      %p255 = pneg %p57
      %p256 = pneg %p54
      %p257 = scmp.lt.s32.totalorder %s20, 1
      %s258 = scalar_select %p257, %s20, 1
      %p259 = scmp.lt.s32.totalorder %s21, 3
      %s260 = scalar_select %p259, %s21, 3
      %p261 = scmp.lt.s32.totalorder %s22, 0
      %s262 = scalar_select %p261, %s22, 0
      %s263 = sadd.s32 %s262, %s260
      %s264 = smul.addr %s258, 4
      %s265 = sadd.s32 %s263, %s264
      %s266 = smul.addr %s265, 4
      %s267 = scalar_lea.vmem %s1, %s266
      %p268 = pneg %p87
      %p269 = pneg %p84
      %p270 = scmp.lt.s32.totalorder %s20, 1
      %s271 = scalar_select %p270, %s20, 1
      %p272 = scmp.lt.s32.totalorder %s21, 3
      %s273 = scalar_select %p272, %s21, 3
      %p274 = scmp.lt.s32.totalorder %s22, 0
      %s275 = scalar_select %p274, %s22, 0
      %s276 = sadd.s32 %s275, %s273
      %s277 = smul.addr %s271, 4
      %s278 = sadd.s32 %s276, %s277
      %s279 = smul.addr %s278, 4
      %s280 = scalar_lea.vmem %s2, %s279
      %p281 = pneg %p117
      %p282 = pneg %p114
      %p283 = scmp.lt.s32.totalorder %s20, 1
      %s284 = scalar_select %p283, %s20, 1
      %p285 = scmp.lt.s32.totalorder %s22, 0
      %s286 = scalar_select %p285, %s22, 0
      %s287 = sadd.s32 %s286, %s284
      %s288 = scalar_lea.vmem %s3, %s287
      %p289 = pneg %p145
      %p290 = pneg %p142
      %p291 = pneg %p173
      %p292 = pneg %p170
      %p293 = scmp.lt.s32.totalorder %s20, 1
      %s294 = scalar_select %p293, %s20, 1
      %p295 = scmp.lt.s32.totalorder %s21, 3
      %s296 = scalar_select %p295, %s21, 3
      %s297 = smul.addr %s294, 4
      %s298 = sadd.s32 %s296, %s297
      %s299 = smul.addr %s298, 4
      %s300 = scalar_lea.vmem %s4, %s299
      %p301 = scmp.lt.s32.totalorder %s20, 1
      %s302 = scalar_select %p301, %s20, 1
      %p303 = scmp.lt.s32.totalorder %s21, 3
      %s304 = scalar_select %p303, %s21, 3
      %s305 = smul.addr %s302, 4
      %s306 = sadd.s32 %s304, %s305
      %s307 = smul.addr %s306, 4
      %s308 = scalar_lea.vmem %s0, %s307
      %p309 = scmp.lt.s32.totalorder %s20, 1
      %s310 = scalar_select %p309, %s20, 1
      %p311 = scmp.lt.s32.totalorder %s21, 3
      %s312 = scalar_select %p311, %s21, 3
      %p313 = scmp.lt.s32.totalorder %s22, 0
      %s314 = scalar_select %p313, %s22, 0
      %s315 = sadd.s32 %s314, %s312
      %s316 = smul.addr %s310, 4
      %s317 = sadd.s32 %s315, %s316
      %s318 = smul.addr %s317, 4
      %s319 = scalar_lea.vmem %s1, %s318
      %p320 = scmp.lt.s32.totalorder %s20, 1
      %s321 = scalar_select %p320, %s20, 1
      %p322 = scmp.lt.s32.totalorder %s21, 3
      %s323 = scalar_select %p322, %s21, 3
      %p324 = scmp.lt.s32.totalorder %s22, 0
      %s325 = scalar_select %p324, %s22, 0
      %s326 = sadd.s32 %s325, %s323
      %s327 = smul.addr %s321, 4
      %s328 = sadd.s32 %s326, %s327
      %s329 = smul.addr %s328, 4
      %s330 = scalar_lea.vmem %s2, %s329
      %p331 = scmp.lt.s32.totalorder %s20, 1
      %s332 = scalar_select %p331, %s20, 1
      %p333 = scmp.lt.s32.totalorder %s22, 0
      %s334 = scalar_select %p333, %s22, 0
      %s335 = sadd.s32 %s334, %s332
      %s336 = scalar_lea.vmem %s3, %s335
      %p337 = scmp.lt.s32.totalorder %s20, 1
      %s338 = scalar_select %p337, %s20, 1
      %p339 = scmp.lt.s32.totalorder %s21, 3
      %s340 = scalar_select %p339, %s21, 3
      %s341 = smul.addr %s338, 4
      %s342 = sadd.s32 %s340, %s341
      %s343 = smul.addr %s342, 4
      %s344 = scalar_lea.vmem %s4, %s343
      %p346 = scmp.eq.s32.totalorder %s22, 0
      // Predicated region
      $region37: #{transformer_forward.26} parent=35 // pred_check
        %p347 = pneg %p346
      $region38: #{transformer_forward.26} parent=35 // pred_check_branch
        %349 = sbr.rel (%p347) target = $region40
      $region39: #{transformer_forward.26} parent=35 // pred_region
        %vm350 = vcmask 7168
        %351 = vst.msk [vmem:[#allocation2] sm:$0xff] %vm350, -inf
        %352 = vst.msk [vmem:[#allocation3] sm:$0xff] %vm350, 0.0
        %vm353 = vcmask 64512
        %354 = vst.msk [vmem:[#allocation4] sm:$0xff] %vm353, 0.0
      $region40: #{transformer_forward.26} parent=35 // pred_fallthru
        _
      %v355 = vld [vmem:[%s308] sm:$0xf]
      %v356 = vld [vmem:[%s319] sm:$0xf]
      %v357 = vld [vmem:[%s330] sm:$0xf]
      %v358 = vld [vmem:[%s336] sm:$0x1]
      %vm359 = vcmp.gt.f32.partialorder %v358, 0.0
      %v360 = vsel %vm359, 0.0, -1e+09
      %v362 = vperm.slane %v360, 0
      %vm364 = vcmask 64512
      %v366 = vsel %vm364, %v355, 0
      %vm368 = vcmask 1043456
      %v370 = vsel %vm368, %v356, 0
      %372 = vmatpush.bf16.msra.mxu0 0
      %373 = vmatpush.bf16.msra.mxu0 0
      %374 = vmatpush.bf16.msra.mxu0 0
      %375 = vmatpush.bf16.msra.mxu0 0
      %376 = vmatpush.bf16.msra.mxu0 0
      %377 = vmatpush.bf16.msra.mxu0 0
      %378 = vmatpush.bf16.msra.mxu0 0
      %379 = vmatpush.bf16.msra.mxu0 %v370
      %380 = vmatmul.bf16.gmra.mxu0 %v366
      %v381 = vpop.f32.mrf.mxu0
      %v382 = vadd.f32 %v362, %v381
      %v383 = vpop.f32.mrf.mxu0
      %384 = vdwg.mxu0
      %v385 = vld [vmem:[#allocation2] sm:$0xff]
      %v386 = vsel %vm364, %v382, -inf
      %387 = vmax.xlane.f32.xlu0 %v386
      %v388 = vpop.xlane.xlu0 %387
      %v389 = vmax.f32 %v385, %v388
      %v390 = vsub.f32 %v385, %v389
      %v391 = vmul.f32 %v390, 1.442695
      %v392 = vpow.pop %v391
      %394 = vset.pattern.permute.xlu0 0
      %395 = vperm.xlu0 %394, %v389
      %v396 = vpop.permute.xlu0 %395
      %v398 = vsub.f32 %v382, %v396
      %v399 = vmul.f32 %v398, 1.442695
      %v400 = vpow.pop %v399
      %v401 = vld [vmem:[#allocation3] sm:$0xff]
      %v402 = vmul.f32 %v392, %v401
      %v403 = vsel %vm364, %v400, 0.0
      %404 = vadd.xlane.f32.xlu0 %v403
      %v405 = vpop.xlane.xlu0 %404
      %v406 = vadd.f32 %v402, %v405
      %vm407 = vcmask 7168
      %408 = vst.msk [vmem:[#allocation3] sm:$0xff] %vm407, %v406
      %v409 = vld [vmem:[#allocation4] sm:$0xff]
      %411 = vset.pattern.permute.xlu0 0
      %412 = vperm.xlu0 %411, %v392
      %v413 = vpop.permute.xlu0 %412
      %v415 = vmul.f32 %v413, %v409
      %v416 = vpack.c.bf16 %v400, %v400
      %v418 = vsel %vm364, %v416, 0
      %v421 = vsel %vm368, %v357, 0
      %423 = vmatpush.bf16.msra.mxu0 0
      %424 = vmatpush.bf16.msra.mxu0 0
      %425 = vmatpush.bf16.msra.mxu0 0
      %426 = vmatpush.bf16.msra.mxu0 0
      %427 = vmatpush.bf16.msra.mxu0 0
      %428 = vmatpush.bf16.msra.mxu0 0
      %429 = vmatpush.bf16.msra.mxu0 0
      %430 = vmatpush.bf16.msra.mxu0 %v421
      %431 = vmatmul.bf16.gmra.mxu0 %v418
      %v432 = vpop.f32.mrf.mxu0
      %v433 = vadd.f32 0.0, %v432
      %v434 = vpop.f32.mrf.mxu0
      %435 = vdwg.mxu0
      %v436 = vadd.f32 %v415, %v433
      %437 = vst.msk [vmem:[#allocation4] sm:$0xff] %vm364, %v436
      %438 = vst.msk [vmem:[#allocation2] sm:$0xff] %vm407, %v389
      // Predicated region
      $region41: #{transformer_forward.26} parent=35 // pred_check
        %p439 = pneg %p346
      $region42: #{transformer_forward.26} parent=35 // pred_check_branch
        %441 = sbr.rel (%p439) target = $region44
      $region43: #{transformer_forward.26} parent=35 // pred_region
        %v442 = vld [vmem:[#allocation4] sm:$0xff]
        %v443 = vld [vmem:[#allocation3] sm:$0xff]
        %445 = vset.pattern.permute.xlu0 0
        %446 = vperm.xlu0 %445, %v443
        %v447 = vpop.permute.xlu0 %446
        %v449 = vrcp.pop %v447
        %v450 = vmul.f32 %v447, %v449
        %v451 = vsub.f32 1.0, %v450
        %v452 = vmul.f32 %v449, %v451
        %v453 = vadd.f32 %v449, %v452
        %vm454 = vweird.f32 %v447
        %vm455 = vweird.f32 %v449
        %vm456 = vmor %vm454, %vm455
        %v457 = vsel %vm456, %v449, %v453
        %v458 = vand.u32 2147483647, %v447
        %vm459 = vcmp.eq.f32.partialorder %v458, 8.507059e+37
        %v460 = vand.u32 %v447, 2147483648
        %v461 = vor.u32 1.1754944e-38, %v460
        %v462 = vsel %vm459, %v461, %v457
        %v463 = vmul.f32 %v442, %v462
        %v464 = vpack.c.bf16 %v463, %v463
        %vm465 = vcmask 60416
        %466 = vst.msk [vmem:[%s344] sm:$0xf] %vm465, %v464
      $region44: #{transformer_forward.26} parent=35 // pred_fallthru
        _
      %p467 = scmp.lt.s32.totalorder %s20, 1
      %s468 = scalar_select %p467, %s20, 1
      %p469 = scmp.lt.s32.totalorder %s21, 3
      %s470 = scalar_select %p469, %s21, 3
      %s471 = smul.addr %s468, 4
      %s472 = sadd.s32 %s470, %s471
      %s473 = smul.addr %s472, 4
      %s474 = scalar_lea.vmem %s4, %s473
      // Predicated region
      $region45: #{transformer_forward.26} parent=35 // pred_check
        %p475 = pneg %p170
      $region46: #{transformer_forward.26} parent=35 // pred_check_branch
        %477 = sbr.rel (%p475) target = $region48
      $region47: #{transformer_forward.26} parent=35 // pred_region
        _
      $region48: #{transformer_forward.26} parent=35 // pred_fallthru
        _
    $region36: #{transformer_forward.26} parent=5 // pred_fallthru
      _
    %p478 = scmp.le.s32.totalorder 2, %s10
    // Predicated region
    $region49: #{transformer_forward.26} parent=5 // pred_check
      %p479 = pneg %p478
    $region50: #{transformer_forward.26} parent=5 // pred_check_branch
      %481 = sbr.rel (%p479) target = $region52
    $region51: #{transformer_forward.26} parent=5 // pred_region
      %s482 = ssub.s32 %s10, 2
      // Predicated region
      $region53: #{transformer_forward.26} parent=51 // pred_check
        %p483 = pneg %p176
      $region54: #{transformer_forward.26} parent=51 // pred_check_branch
        %485 = sbr.rel (%p483) target = $region56
      $region55: #{transformer_forward.26} parent=51 // pred_region
        %p486 = scmp.lt.s32.totalorder %s23, 1
        %s487 = scalar_select %p486, %s23, 1
        %p488 = scmp.lt.s32.totalorder %s24, 3
        %s489 = scalar_select %p488, %s24, 3
        %s490 = smul.addr %s487, 4
        %s491 = sadd.s32 %s489, %s490
        %s492 = smul.addr %s491, 4
        %s493 = scalar_lea.vmem %s4, %s492
      $region56: #{transformer_forward.26} parent=51 // pred_fallthru
        _
    $region52: #{transformer_forward.26} parent=5 // pred_fallthru
      _
  $region6: #{transformer_forward.26} parent=0 // loop_footer
    %s14 = sadd.s32 1, %s10
  $region7: #{transformer_forward.26} parent=0 // loop_footer_branch
    %9 = sbr.rel target = $region3
  $region8: #{transformer_forward.26} parent=0 // loop_exit
    _

// kernel: transformer_forward.28
$region0: #{transformer_forward.28}
  #allocation0 [shape = 'u32[]', space=smem, size = 0x4, offset = 0x4, fixed_abs, tag = 'smem constant byte address 0x4 - core index']
  #allocation1 [shape = 'u32[72,128]{1,0:T(1,128)}', space=vmem, size = 0x9000, scoped, tag = 'internal scratch']
  #allocation2 [shape = 'f32[16,32]{1,0:T(8,128)}', space=vmem, size = 0x2000, scoped, tag = 'scratch operand']
  %s0 = inlined_call_operand.vmem [shape: bf16[16,32], index: 0, kind: input, shape index: {}]
  %s1 = inlined_call_operand.vmem [shape: bf16[32,64], index: 1, kind: input, shape index: {}]
  %s2 = inlined_call_operand.vmem [shape: f32[1,64], index: 2, kind: input, shape index: {}]
  %s3 = inlined_call_operand.vmem [shape: bf16[64,32], index: 3, kind: input, shape index: {}]
  %s4 = inlined_call_operand.vmem [shape: f32[1,32], index: 4, kind: input, shape index: {}]
  %s5 = inlined_call_operand.vmem [shape: f32[1,32], index: 5, kind: input, shape index: {}]
  %s6 = inlined_call_operand.vmem [shape: f32[1,32], index: 6, kind: input, shape index: {}]
  %s7 = inlined_call_operand.vmem [shape: bf16[16,32], index: 7, kind: output, shape index: {}]
  %s8 = sld [smem:[#allocation0]]
  $region46: #{transformer_forward.28} parent=0
    _
  %s10 = ssub.s32 1, %s8
  %s11 = scalar_select 0, %s10, %s8
  // Predicated region
  $region2: #{transformer_forward.28} parent=0 // pred_check
    _
  $region3: #{transformer_forward.28} parent=0 // pred_check_branch
    %13 = sbr.rel (0) target = $region5
  $region4: #{transformer_forward.28} parent=0 // pred_region
    _
  $region5: #{transformer_forward.28} parent=0 // pred_fallthru
    _
  // Predicated region
  $region6: #{transformer_forward.28} parent=0 // pred_check
    _
  $region7: #{transformer_forward.28} parent=0 // pred_check_branch
    %15 = sbr.rel (0) target = $region9
  $region8: #{transformer_forward.28} parent=0 // pred_region
    _
  $region9: #{transformer_forward.28} parent=0 // pred_fallthru
    _
  // Predicated region
  $region10: #{transformer_forward.28} parent=0 // pred_check
    _
  $region11: #{transformer_forward.28} parent=0 // pred_check_branch
    %17 = sbr.rel (0) target = $region13
  $region12: #{transformer_forward.28} parent=0 // pred_region
    _
  $region13: #{transformer_forward.28} parent=0 // pred_fallthru
    _
  // Predicated region
  $region14: #{transformer_forward.28} parent=0 // pred_check
    _
  $region15: #{transformer_forward.28} parent=0 // pred_check_branch
    %19 = sbr.rel (0) target = $region17
  $region16: #{transformer_forward.28} parent=0 // pred_region
    _
  $region17: #{transformer_forward.28} parent=0 // pred_fallthru
    _
  // Predicated region
  $region18: #{transformer_forward.28} parent=0 // pred_check
    _
  $region19: #{transformer_forward.28} parent=0 // pred_check_branch
    %21 = sbr.rel (0) target = $region21
  $region20: #{transformer_forward.28} parent=0 // pred_region
    _
  $region21: #{transformer_forward.28} parent=0 // pred_fallthru
    _
  // Predicated region
  $region22: #{transformer_forward.28} parent=0 // pred_check
    _
  $region23: #{transformer_forward.28} parent=0 // pred_check_branch
    %23 = sbr.rel (0) target = $region25
  $region24: #{transformer_forward.28} parent=0 // pred_region
    _
  $region25: #{transformer_forward.28} parent=0 // pred_fallthru
    _
  // Predicated region
  $region26: #{transformer_forward.28} parent=0 // pred_check
    _
  $region27: #{transformer_forward.28} parent=0 // pred_check_branch
    %25 = sbr.rel (0) target = $region29
  $region28: #{transformer_forward.28} parent=0 // pred_region
    _
  $region29: #{transformer_forward.28} parent=0 // pred_fallthru
    _
  %p27 = scmp.eq.s32.totalorder 0, 0
  // Predicated region
  $region30: #{transformer_forward.28} parent=0 // pred_check
    %p28 = pneg %p27
  $region31: #{transformer_forward.28} parent=0 // pred_check_branch
    %30 = sbr.rel (%p28) target = $region33
  $region32: #{transformer_forward.28} parent=0 // pred_region
    %vm31 = vcmask 261120
    %32 = vst.msk [vmem:[#allocation2] sm:$0xff] %vm31, 0.0
    %33 = vst.msk [vmem:[#allocation2 + $0x8] sm:$0xff] %vm31, 0.0
  $region33: #{transformer_forward.28} parent=0 // pred_fallthru
    _
  %v34 = vld [vmem:[%s0] sm:$0xf]
  %v35 = vld [vmem:[%s0 + $0x4] sm:$0xf]
  %v36 = vld [vmem:[%s1] sm:$0xf]
  %v37 = vld [vmem:[%s1 + $0x4] sm:$0xf]
  %v38 = vld [vmem:[%s1 + $0x8] sm:$0xf]
  %v39 = vld [vmem:[%s1 + $0xc] sm:$0xf]
  %v40 = vld [vmem:[%s2] sm:$0x1]
  %v42 = vperm.slane %v40, 0
  %v46 = vunpack.c.l.b16 %v34
  %v47 = vunpack.c.l.b16 %v35
  %v48 = vpack.c.b16 %v47, %v46
  %v53 = vunpack.c.l.b16 %v36
  %v54 = vunpack.c.l.b16 %v37
  %v55 = vunpack.c.l.b16 %v38
  %v56 = vunpack.c.l.b16 %v39
  %v57 = vpack.c.b16 %v54, %v53
  %v58 = vpack.c.b16 %v56, %v55
  %vm61 = vcmask 261120
  %v63 = vsel %vm61, %v48, 0
  %65 = vmatpush.bf16.msra.mxu0 0
  %66 = vmatpush.bf16.msra.mxu0 0
  %67 = vmatpush.bf16.msra.mxu0 0
  %68 = vmatpush.bf16.msra.mxu0 0
  %69 = vmatpush.bf16.msra.mxu0 0
  %70 = vmatpush.bf16.msra.mxu0 0
  %71 = vmatpush.bf16.msra.mxu0 %v58
  %72 = vmatpush.bf16.msra.mxu0 %v57
  %73 = vmatmul.bf16.gmra.mxu0 %v63
  %v74 = vpop.f32.mrf.mxu0
  %v75 = vadd.f32 %v42, %v74
  %v76 = vpop.f32.mrf.mxu0
  %v77 = vadd.f32 %v42, %v76
  %78 = vdwg.mxu0
  %v79 = vmax.f32 %v75, 0.0
  %v80 = vmax.f32 %v77, 0.0
  %v81 = vld [vmem:[#allocation2] sm:$0xff]
  %v82 = vld [vmem:[#allocation2 + $0x8] sm:$0xff]
  %v83 = vpack.c.bf16 %v80, %v79
  %v84 = vld [vmem:[%s3] sm:$0xf]
  %v85 = vld [vmem:[%s3 + $0x4] sm:$0xf]
  %v86 = vld [vmem:[%s3 + $0x8] sm:$0xf]
  %v87 = vld [vmem:[%s3 + $0xc] sm:$0xf]
  %v88 = vld [vmem:[%s3 + $0x10] sm:$0xf]
  %v89 = vld [vmem:[%s3 + $0x14] sm:$0xf]
  %v90 = vld [vmem:[%s3 + $0x18] sm:$0xf]
  %v91 = vld [vmem:[%s3 + $0x1c] sm:$0xf]
  %v100 = vunpack.c.l.b16 %v84
  %v101 = vunpack.c.l.b16 %v85
  %v102 = vunpack.c.l.b16 %v86
  %v103 = vunpack.c.l.b16 %v87
  %v104 = vunpack.c.l.b16 %v88
  %v105 = vunpack.c.l.b16 %v89
  %v106 = vunpack.c.l.b16 %v90
  %v107 = vunpack.c.l.b16 %v91
  %v108 = vpack.c.b16 %v101, %v100
  %v109 = vpack.c.b16 %v103, %v102
  %v110 = vpack.c.b16 %v105, %v104
  %v111 = vpack.c.b16 %v107, %v106
  %vm116 = vcmask 523264
  %v118 = vsel %vm116, %v83, 0
  %120 = vmatpush.bf16.msra.mxu0 0
  %121 = vmatpush.bf16.msra.mxu0 0
  %122 = vmatpush.bf16.msra.mxu0 0
  %123 = vmatpush.bf16.msra.mxu0 0
  %124 = vmatpush.bf16.msra.mxu0 %v111
  %125 = vmatpush.bf16.msra.mxu0 %v110
  %126 = vmatpush.bf16.msra.mxu0 %v109
  %127 = vmatpush.bf16.msra.mxu0 %v108
  %128 = vmatmul.bf16.gmra.mxu0 %v118
  %v129 = vpop.f32.mrf.mxu0
  %v130 = vadd.f32 0.0, %v129
  %v131 = vpop.f32.mrf.mxu0
  %v132 = vadd.f32 0.0, %v131
  %133 = vdwg.mxu0
  %v134 = vadd.f32 %v81, %v130
  %v135 = vadd.f32 %v82, %v132
  %136 = vst.msk [vmem:[#allocation2] sm:$0xff] %vm61, %v134
  %137 = vst.msk [vmem:[#allocation2 + $0x8] sm:$0xff] %vm61, %v135
  // Predicated region
  $region34: #{transformer_forward.28} parent=0 // pred_check
    %p138 = pneg %p27
  $region35: #{transformer_forward.28} parent=0 // pred_check_branch
    %140 = sbr.rel (%p138) target = $region37
  $region36: #{transformer_forward.28} parent=0 // pred_region
    %v141 = vld [vmem:[#allocation2] sm:$0xff]
    %v142 = vld [vmem:[#allocation2 + $0x8] sm:$0xff]
    %v143 = vld [vmem:[%s4] sm:$0x1]
    %v145 = vperm.slane %v143, 0
    %v147 = vadd.f32 %v141, %v145
    %v148 = vadd.f32 %v142, %v145
    %v149 = vunpack.c.l.bf16 %v34
    %v150 = vunpack.c.l.bf16 %v35
    %v151 = vadd.f32 %v147, %v149
    %v152 = vadd.f32 %v148, %v150
    %v153 = vsel %vm61, %v151, 0.0
    %154 = vadd.xlane.f32.xlu0 %v153
    %v155 = vpop.xlane.xlu0 %154
    %v156 = vsel %vm61, %v152, 0.0
    %157 = vadd.xlane.f32.xlu0 %v156
    %v158 = vpop.xlane.xlu0 %157
    %v159 = vrcp.pop 32.0
    %v160 = vmul.f32 32.0, %v159
    %v161 = vsub.f32 1.0, %v160
    %v162 = vmul.f32 %v159, %v161
    %v163 = vadd.f32 %v159, %v162
    %vm164 = vweird.f32 %v159
    %v165 = vsel %vm164, %v159, %v163
    %v166 = vmul.f32 %v155, %v165
    %v167 = vmul.f32 %v158, %v165
    %v168 = vsub.f32 %v151, %v166
    %v169 = vsub.f32 %v152, %v167
    %v170 = vmul.f32 %v168, %v168
    %v171 = vmul.f32 %v169, %v169
    %v172 = vsel %vm61, %v170, 0.0
    %173 = vadd.xlane.f32.xlu0 %v172
    %v174 = vpop.xlane.xlu0 %173
    %v175 = vsel %vm61, %v171, 0.0
    %176 = vadd.xlane.f32.xlu0 %v175
    %v177 = vpop.xlane.xlu0 %176
    %v178 = vmul.f32 %v174, %v165
    %v179 = vmul.f32 %v177, %v165
    %v180 = vadd.f32 %v178, 1e-05
    %v181 = vadd.f32 %v179, 1e-05
    %v182 = vrsqrt.pop %v180
    %v183 = vmul.f32 %v182, %v180
    %v184 = vmul.f32 %v183, %v182
    %v185 = vmul.f32 0.5, %v184
    %v186 = vsub.f32 1.5, %v185
    %v187 = vmul.f32 %v182, %v186
    %vm188 = vweird.f32 %v180
    %vm189 = vweird.f32 %v182
    %vm190 = vmor %vm188, %vm189
    %v191 = vsel %vm190, %v182, %v187
    %v192 = vrsqrt.pop %v181
    %v193 = vmul.f32 %v192, %v181
    %v194 = vmul.f32 %v193, %v192
    %v195 = vmul.f32 0.5, %v194
    %v196 = vsub.f32 1.5, %v195
    %v197 = vmul.f32 %v192, %v196
    %vm198 = vweird.f32 %v181
    %vm199 = vweird.f32 %v192
    %vm200 = vmor %vm198, %vm199
    %v201 = vsel %vm200, %v192, %v197
    %v202 = vmul.f32 %v168, %v191
    %v203 = vmul.f32 %v169, %v201
    %v204 = vld [vmem:[%s5] sm:$0x1]
    %v206 = vperm.slane %v204, 0
    %v208 = vmul.f32 %v202, %v206
    %v209 = vmul.f32 %v203, %v206
    %v210 = vld [vmem:[%s6] sm:$0x1]
    %v212 = vperm.slane %v210, 0
    %v214 = vadd.f32 %v208, %v212
    %v215 = vadd.f32 %v209, %v212
    %v216 = vpack.c.bf16 %v214, %v214
    %v217 = vpack.c.bf16 %v215, %v215
    %vm218 = vcmask 257024
    %219 = vst.msk [vmem:[%s7] sm:$0xf] %vm218, %v216
    %220 = vst.msk [vmem:[%s7 + $0x4] sm:$0xf] %vm218, %v217
  $region37: #{transformer_forward.28} parent=0 // pred_fallthru
    _
  // Predicated region
  $region38: #{transformer_forward.28} parent=0 // pred_check
    _
  $region39: #{transformer_forward.28} parent=0 // pred_check_branch
    %222 = sbr.rel (0) target = $region41
  $region40: #{transformer_forward.28} parent=0 // pred_region
    _
  $region41: #{transformer_forward.28} parent=0 // pred_fallthru
    _
  // Predicated region
  $region42: #{transformer_forward.28} parent=0 // pred_check
    _
  $region43: #{transformer_forward.28} parent=0 // pred_check_branch
    %224 = sbr.rel (0) target = $region45
  $region44: #{transformer_forward.28} parent=0 // pred_region
    _
  $region45: #{transformer_forward.28} parent=0 // pred_fallthru
    _

// kernel: transformer_forward.49
$region0: #{transformer_forward.49}
  #allocation0 [shape = 'u32[]', space=smem, size = 0x4, offset = 0x4, fixed_abs, tag = 'smem constant byte address 0x4 - core index']
  #allocation1 [shape = 'u32[72,128]{1,0:T(1,128)}', space=vmem, size = 0x9000, scoped, tag = 'internal scratch']
  #allocation2 [shape = 'f32[16,128]{1,0:T(8,128)}', space=vmem, size = 0x2000, scoped, tag = 'scratch operand']
  %s0 = inlined_call_operand.vmem [shape: bf16[16,32], index: 0, kind: input, shape index: {}]
  %s1 = inlined_call_operand.vmem [shape: bf16[32,128], index: 1, kind: input, shape index: {}]
  %s2 = inlined_call_operand.vmem [shape: f32[1,128], index: 2, kind: input, shape index: {}]
  %s3 = inlined_call_operand.vmem [shape: f32[16,128], index: 3, kind: output, shape index: {}]
  %s4 = sld [smem:[#allocation0]]
  $region30: #{transformer_forward.49} parent=0
    _
  %s6 = ssub.s32 1, %s4
  %s7 = scalar_select 0, %s6, %s4
  // Predicated region
  $region2: #{transformer_forward.49} parent=0 // pred_check
    _
  $region3: #{transformer_forward.49} parent=0 // pred_check_branch
    %9 = sbr.rel (0) target = $region5
  $region4: #{transformer_forward.49} parent=0 // pred_region
    _
  $region5: #{transformer_forward.49} parent=0 // pred_fallthru
    _
  // Predicated region
  $region6: #{transformer_forward.49} parent=0 // pred_check
    _
  $region7: #{transformer_forward.49} parent=0 // pred_check_branch
    %11 = sbr.rel (0) target = $region9
  $region8: #{transformer_forward.49} parent=0 // pred_region
    _
  $region9: #{transformer_forward.49} parent=0 // pred_fallthru
    _
  // Predicated region
  $region10: #{transformer_forward.49} parent=0 // pred_check
    _
  $region11: #{transformer_forward.49} parent=0 // pred_check_branch
    %13 = sbr.rel (0) target = $region13
  $region12: #{transformer_forward.49} parent=0 // pred_region
    _
  $region13: #{transformer_forward.49} parent=0 // pred_fallthru
    _
  %p15 = scmp.eq.s32.totalorder 0, 0
  // Predicated region
  $region14: #{transformer_forward.49} parent=0 // pred_check
    %p16 = pneg %p15
  $region15: #{transformer_forward.49} parent=0 // pred_check_branch
    %18 = sbr.rel (%p16) target = $region17
  $region16: #{transformer_forward.49} parent=0 // pred_region
    %19 = vst [vmem:[#allocation2] sm:$0xff] 0.0
    %20 = vst [vmem:[#allocation2 + $0x8] sm:$0xff] 0.0
  $region17: #{transformer_forward.49} parent=0 // pred_fallthru
    _
  %v21 = vld [vmem:[#allocation2] sm:$0xff]
  %v22 = vld [vmem:[#allocation2 + $0x8] sm:$0xff]
  %v23 = vld [vmem:[%s0] sm:$0xf]
  %v24 = vld [vmem:[%s0 + $0x4] sm:$0xf]
  %v25 = vld [vmem:[%s1] sm:$0xf]
  %v26 = vld [vmem:[%s1 + $0x4] sm:$0xf]
  %v27 = vld [vmem:[%s1 + $0x8] sm:$0xf]
  %v28 = vld [vmem:[%s1 + $0xc] sm:$0xf]
  %v31 = vunpack.c.l.b16 %v23
  %v32 = vunpack.c.l.b16 %v24
  %v33 = vpack.c.b16 %v32, %v31
  %v38 = vunpack.c.l.b16 %v25
  %v39 = vunpack.c.l.b16 %v26
  %v40 = vunpack.c.l.b16 %v27
  %v41 = vunpack.c.l.b16 %v28
  %v42 = vpack.c.b16 %v39, %v38
  %v43 = vpack.c.b16 %v41, %v40
  %vm46 = vcmask 261120
  %v48 = vsel %vm46, %v33, 0
  %50 = vmatpush.bf16.msra.mxu0 0
  %51 = vmatpush.bf16.msra.mxu0 0
  %52 = vmatpush.bf16.msra.mxu0 0
  %53 = vmatpush.bf16.msra.mxu0 0
  %54 = vmatpush.bf16.msra.mxu0 0
  %55 = vmatpush.bf16.msra.mxu0 0
  %56 = vmatpush.bf16.msra.mxu0 %v43
  %57 = vmatpush.bf16.msra.mxu0 %v42
  %58 = vmatmul.bf16.gmra.mxu0 %v48
  %v59 = vpop.f32.mrf.mxu0
  %v60 = vadd.f32 0.0, %v59
  %v61 = vpop.f32.mrf.mxu0
  %v62 = vadd.f32 0.0, %v61
  %63 = vdwg.mxu0
  %v64 = vadd.f32 %v21, %v60
  %v65 = vadd.f32 %v22, %v62
  %66 = vst [vmem:[#allocation2] sm:$0xff] %v64
  %67 = vst [vmem:[#allocation2 + $0x8] sm:$0xff] %v65
  // Predicated region
  $region18: #{transformer_forward.49} parent=0 // pred_check
    %p68 = pneg %p15
  $region19: #{transformer_forward.49} parent=0 // pred_check_branch
    %70 = sbr.rel (%p68) target = $region21
  $region20: #{transformer_forward.49} parent=0 // pred_region
    %v71 = vld [vmem:[#allocation2] sm:$0xff]
    %v72 = vld [vmem:[#allocation2 + $0x8] sm:$0xff]
    %v73 = vld [vmem:[%s2] sm:$0x1]
    %v75 = vperm.slane %v73, 0
    %v77 = vadd.f32 %v71, %v75
    %v78 = vadd.f32 %v72, %v75
    %79 = vst [vmem:[%s3] sm:$0xff] %v77
    %80 = vst [vmem:[%s3 + $0x8] sm:$0xff] %v78
  $region21: #{transformer_forward.49} parent=0 // pred_fallthru
    _
  // Predicated region
  $region22: #{transformer_forward.49} parent=0 // pred_check
    _
  $region23: #{transformer_forward.49} parent=0 // pred_check_branch
    %82 = sbr.rel (0) target = $region25
  $region24: #{transformer_forward.49} parent=0 // pred_region
    _
  $region25: #{transformer_forward.49} parent=0 // pred_fallthru
    _
  // Predicated region
  $region26: #{transformer_forward.49} parent=0 // pred_check
    _
  $region27: #{transformer_forward.49} parent=0 // pred_check_branch
    %84 = sbr.rel (0) target = $region29
  $region28: #{transformer_forward.49} parent=0 // pred_region
    _
  $region29: #{transformer_forward.49} parent=0 // pred_fallthru
    _

</llo_original>
